<compile_context>
chip_gen: v7x
topology: tpu7x:2x2x1
jax: 0.10.0
libtpu: 0.0.40
codegen_flags: <defaults>
</compile_context>

<pallas_src>
import jax
import jax.numpy as jnp
from jax.experimental import pallas as pl
from jax.experimental.pallas import tpu as pltpu

LEAKY_SLOPE = 0.2
COUT = [64, 128, 256, 256, 256]    # fixed by the Discriminator spec
VMEM_LIMIT = 32 << 20


def _round_up(x, m):
    return (x + m - 1) // m * m


def _conv_out_hw(h, w, k=5, s=2, p=2):
    return (h + 2 * p - k) // s + 1, (w + 2 * p - k) // s + 1


# ---------------------------------------------------------------------------
# Pallas kernels
# ---------------------------------------------------------------------------
def _mm_lrelu_kernel(a_ref, b_ref, o_ref):
    """One-shot matmul (bf16 operands, fp32 accumulate) + fp32 LeakyReLU(0.2) epilogue."""
    y = jnp.dot(a_ref[...], b_ref[...], preferred_element_type=jnp.float32)
    o_ref[...] = jnp.maximum(y, LEAKY_SLOPE * y).astype(o_ref.dtype)


def matmul_leaky_relu(a_bf16, w_bf16, *, out_dtype=jnp.bfloat16):
    """LeakyReLU_{0.2}(a @ w).  a:(M,K) bf16, w:(K,Cout) bf16, K % 128 == 0.

    Full-K, full-Cout blocks (single grid step at this network's sizes).  The M axis is only
    tiled — and marked "parallel" so both v7x TensorCores can split it — when M is large.
    """
    M, K = a_bf16.shape
    K2, Np = w_bf16.shape
    assert K == K2 and K % 128 == 0
    tm = _round_up(M, 16) if M <= 512 else 256     # 16: bf16 sublane packing
    Mp = _round_up(M, tm)
    if Mp != M:
        a_bf16 = jnp.pad(a_bf16, ((0, Mp - M), (0, 0)))
    out = pl.pallas_call(
        _mm_lrelu_kernel,
        out_shape=jax.ShapeDtypeStruct((Mp, Np), out_dtype),
        grid=(Mp // tm,),
        in_specs=[
            pl.BlockSpec((tm, K), lambda i: (i, 0)),
            pl.BlockSpec((K, Np), lambda i: (0, 0)),
        ],
        out_specs=pl.BlockSpec((tm, Np), lambda i: (i, 0)),
        compiler_params=pltpu.CompilerParams(
            dimension_semantics=("parallel",),
            vmem_limit_bytes=VMEM_LIMIT,
        ),
    )(a_bf16, w_bf16)
    return out[:M] if Mp != M else out


def tail_fused(patches3, w3, w4_flat, w5c, n_batch):
    """Fused layers 3+4+5 (valid when layer-3 output is 2x2 spatial, layers 4/5 output 1x1).

    layer3: p3 @ w3 -> lrelu                       (rows ordered (n, ho, wo))
    layer4: its im2col degenerates to a flatten of the 2x2x256 block -> built in-kernel into a
            VMEM scratch via 8 static row stores, then a4 @ w4_flat -> lrelu
    layer5: only the center tap contributes -> h4 @ w5c -> lrelu
    """
    M3, K3 = patches3.shape
    K3b, C3 = w3.shape
    K4, C4 = w4_flat.shape
    C4b, C5 = w5c.shape
    assert K3 == K3b and K4 == 4 * C3 and C4 == C4b and M3 == 4 * n_batch
    Mp3 = _round_up(M3, 16)
    if Mp3 != M3:
        patches3 = jnp.pad(patches3, ((0, Mp3 - M3), (0, 0)))
    NBp = _round_up(n_batch, 8)

    def kernel(p3_ref, w3_ref, w4_ref, w5_ref, o_ref, a4_ref):
        # ---- layer 3 ----
        h3 = jnp.dot(p3_ref[...], w3_ref[...], preferred_element_type=jnp.float32)
        h3 = jnp.maximum(h3, LEAKY_SLOPE * h3)
        # ---- layer-4 "im2col" (2x2 input -> 1x1 output == flatten (hi, wi, c)) ----
        a4_ref[...] = jnp.zeros_like(a4_ref)
        for n in range(n_batch):
            for q in range(4):                     # q = ho*2 + wo over layer-3 output positions
                a4_ref[n:n + 1, q * C3:(q + 1) * C3] = h3[n * 4 + q:n * 4 + q + 1, :]
        # ---- layer 4 ----
        h4 = jnp.dot(a4_ref[...].astype(jnp.bfloat16), w4_ref[...],
                     preferred_element_type=jnp.float32)
        h4 = jnp.maximum(h4, LEAKY_SLOPE * h4)
        # ---- layer 5 (center tap only) ----
        y = jnp.dot(h4.astype(jnp.bfloat16), w5_ref[...], preferred_element_type=jnp.float32)
        o_ref[...] = jnp.maximum(y, LEAKY_SLOPE * y)

    return pl.pallas_call(
        kernel,
        out_shape=jax.ShapeDtypeStruct((NBp, C5), jnp.float32),
        grid=(1,),
        in_specs=[
            pl.BlockSpec((Mp3, K3), lambda i: (0, 0)),
            pl.BlockSpec((K3, C3), lambda i: (0, 0)),
            pl.BlockSpec((K4, C4), lambda i: (0, 0)),
            pl.BlockSpec((C4, C5), lambda i: (0, 0)),
        ],
        out_specs=pl.BlockSpec((NBp, C5), lambda i: (0, 0)),
        scratch_shapes=[pltpu.VMEM((NBp, 4 * C3), jnp.float32)],
        compiler_params=pltpu.CompilerParams(
            dimension_semantics=("arbitrary",),
            vmem_limit_bytes=VMEM_LIMIT,
        ),
    )(patches3, w3, w4_flat, w5c)


# ---------------------------------------------------------------------------
# im2col (patch order (ki, kj, c_in); single tail pad of K = 25*C_in up to a 128 multiple)
# ---------------------------------------------------------------------------
def im2col(x_nhwc, k=5, s=2, p=2):
    # TODO(synk): for production resolutions, move patch extraction into the kernel
    # (overlapping-window BlockSpecs / manual DMA over NHWC rows) to avoid the k*k HBM
    # duplication; also fuse layers 1+2 the same way layers 3-5 are fused below.
    N, H, W, C = x_nhwc.shape
    Ho = (H + 2 * p - k) // s + 1
    Wo = (W + 2 * p - k) // s + 1
    xp = jnp.pad(x_nhwc, ((0, 0), (p, p), (p, p), (0, 0)))
    cols = []
    for di in range(k):
        for dj in range(k):
            cols.append(xp[:, di:di + s * (Ho - 1) + 1:s, dj:dj + s * (Wo - 1) + 1:s, :])
    pat = jnp.stack(cols, axis=3).reshape(N * Ho * Wo, k * k * C)        # [M, 25*C]
    Kp = _round_up(k * k * C, 128)
    if Kp != k * k * C:
        pat = jnp.pad(pat, ((0, 0), (0, Kp - k * k * C)))
    return pat, Ho, Wo


def conv_lrelu(x_bf16, w_mat, c_out):
    """Conv2d(5,2,2,bias=False) with prepped (matmul-ready) weight + LeakyReLU(0.2)."""
    n = x_bf16.shape[0]
    patches, ho, wo = im2col(x_bf16)
    out = matmul_leaky_relu(patches, w_mat)           # (M, c_out), no column slice needed
    return out.reshape(n, ho, wo, c_out)


# ---------------------------------------------------------------------------
# Weight prep (done ONCE at init): spectral norm, transpose, reshape, K-pad, bf16
# ---------------------------------------------------------------------------
def spectral_normalize(w, key, n_iters=1, eps=1e-12):
    # NOTE: PyTorch's spectral_norm keeps a persistent `u` updated every forward; here we
    # use a fresh random `u` + power iteration once at init (deterministic parameter setup).
    assert n_iters >= 1
    c_out = w.shape[0]
    w_mat = w.reshape(c_out, -1)
    u = jax.random.normal(key, (c_out,), dtype=w.dtype)
    u = u / (jnp.linalg.norm(u) + eps)
    v = None
    for _ in range(n_iters):
        v = w_mat.T @ u
        v = v / (jnp.linalg.norm(v) + eps)
        u = w_mat @ v
        u = u / (jnp.linalg.norm(u) + eps)
    sigma = u @ (w_mat @ v)
    return w / sigma


def prep_weight_matmul(w_sn):
    """(Cout,Cin,5,5) -> matmul-ready bf16 (round_up(25*Cin,128), Cout) — no Cout padding."""
    c_out, c_in, k, _ = w_sn.shape
    kk = k * k
    w = jnp.transpose(w_sn, (2, 3, 1, 0)).reshape(kk * c_in, c_out)      # rows (ki,kj,cin)
    kp = _round_up(kk * c_in, 128)
    if kp != kk * c_in:
        w = jnp.pad(w, ((0, kp - kk * c_in), (0, 0)))
    return w.astype(jnp.bfloat16)


def prep_tail_weights(w4_sn, w5_sn):
    """Effective weights for layers 4+5 when layer-4 input is 2x2 and outputs are 1x1 spatial."""
    c_in4 = w4_sn.shape[1]
    wt4 = jnp.transpose(w4_sn, (2, 3, 1, 0))                             # (5,5,Cin,Cout)
    w4_flat = wt4[2:4, 2:4].reshape(4 * c_in4, w4_sn.shape[0]).astype(jnp.bfloat16)
    w5c = jnp.transpose(w5_sn, (2, 3, 1, 0))[2, 2].astype(jnp.bfloat16)  # center tap only
    return w4_flat, w5c                                                  # (1024,256), (256,256)


def prep_params(raw_weights, image_hw):
    sizes = [image_hw]
    for _ in range(5):
        sizes.append(_conv_out_hw(*sizes[-1]))
    w_mats = [prep_weight_matmul(w) for w in raw_weights]
    tail = None
    if sizes[3] == (2, 2):            # => layers 4 and 5 both produce 1x1 spatial output
        tail = prep_tail_weights(raw_weights[3], raw_weights[4])
    return (w_mats, tail)


# ---------------------------------------------------------------------------
# Forward
# ---------------------------------------------------------------------------
def discriminator_forward(image_nchw, mask_nchw, params):
    w_mats, tail = params
    x = jnp.concatenate([image_nchw, mask_nchw], axis=1)          # torch.cat(dim=1)
    x = jnp.transpose(x, (0, 2, 3, 1)).astype(jnp.bfloat16)       # NCHW -> NHWC, bf16 activations

    x = conv_lrelu(x, w_mats[0], COUT[0])                         # layer 1
    x = conv_lrelu(x, w_mats[1], COUT[1])                         # layer 2

    n = x.shape[0]
    ho3, wo3 = _conv_out_hw(x.shape[1], x.shape[2])
    if tail is not None and (ho3, wo3) == (2, 2):
        patches3, _, _ = im2col(x)
        w4_flat, w5c = tail
        y = tail_fused(patches3, w_mats[2], w4_flat, w5c, n)      # fused layers 3+4+5
        return y[:n]                                              # (N, 256) == nn.Flatten output

    # generic fallback (other input resolutions): per-layer conv kernels
    for li in range(2, 5):
        x = conv_lrelu(x, w_mats[li], COUT[li])
    x = jnp.transpose(x.astype(jnp.float32), (0, 3, 1, 2))        # NHWC -> NCHW
    return x.reshape(x.shape[0], -1)


def init_weights(key):
    shapes = [
        (64, 4, 5, 5),
        (128, 64, 5, 5),
        (256, 128, 5, 5),
        (256, 256, 5, 5),
        (256, 256, 5, 5),
    ]
    weights = []
    for i, shp in enumerate(shapes):
        kw, ku = jax.random.split(jax.random.fold_in(key, i))
        fan_in = shp[1] * shp[2] * shp[3]
        bound = 1.0 / (fan_in ** 0.5)   # ~ PyTorch Conv2d default kaiming_uniform scale
        w = jax.random.uniform(kw, shp, jnp.float32, -bound, bound)
        weights.append(spectral_normalize(w, ku, n_iters=1))
    return weights


if __name__ == "__main__":
    key = jax.random.PRNGKey(0)
    k_img, k_msk, k_par = jax.random.split(key, 3)
    # RGB image + 1-channel mask, 16x16 spatial, batch 2 (consistent with the module).
    image = jax.random.normal(k_img, (2, 3, 16, 16), jnp.float32)
    mask = jax.random.uniform(k_msk, (2, 1, 16, 16), jnp.float32)

    raw_weights = init_weights(k_par)
    params = prep_params(raw_weights, (16, 16))     # one-time, matmul-ready bf16 weights
    params = jax.block_until_ready(params)

    out = jax.jit(discriminator_forward)(image, mask, params)
    jax.block_until_ready(out)
    # spatial: 16 -> 8 -> 4 -> 2 -> 1 -> 1 ; channels: 4 -> 64 -> 128 -> 256 -> 256 -> 256
    assert out.shape == (2, 256), out.shape
    assert jnp.all(jnp.isfinite(out))
    print("KERNEL_OK")
</pallas_src>

<mosaic_0001>
module attributes {stable_mosaic.version = 11 : i64} {
  func.func @_mm_lrelu_kernel(%arg0: i32, %arg1: memref<128x128xbf16, #tpu.memory_space<vmem>>, %arg2: memref<128x64xbf16, #tpu.memory_space<vmem>>, %arg3: memref<128x64xbf16, #tpu.memory_space<vmem>>) attributes {dimension_semantics = [#tpu.dimension_semantics<parallel>], iteration_bounds = array<i64: 1>, scalar_prefetch = 0 : i64, scratch_operands = 0 : i64, tpu.core_type = #tpu.core_type<tc>, window_params = [{transform_indices = @transform_0, window_bounds = array<i64: 128, 128>}, {pipeline_mode = #tpu.pipeline_mode<synchronous>, transform_indices = @transform_1, window_bounds = array<i64: 128, 64>}, {transform_indices = @transform_2, window_bounds = array<i64: 128, 64>}]} {
    %c0 = arith.constant 0 : index
    %c0_0 = arith.constant 0 : index
    %0 = vector.load %arg1[%c0, %c0_0] : memref<128x128xbf16, #tpu.memory_space<vmem>>, vector<128x128xbf16>
    %c0_1 = arith.constant 0 : index
    %c0_2 = arith.constant 0 : index
    %1 = vector.load %arg2[%c0_1, %c0_2] : memref<128x64xbf16, #tpu.memory_space<vmem>>, vector<128x64xbf16>
    %cst = arith.constant dense<0.000000e+00> : vector<128x64xf32>
    %2 = tpu.matmul %0, %1, %cst {dimension_numbers = #tpu.dot_dimension_numbers<[1], [0], [0], [1], [0, 0, 1, 1], [], []>} : vector<128x128xbf16>, vector<128x64xbf16>, vector<128x64xf32> -> vector<128x64xf32>
    %cst_3 = arith.constant 2.000000e-01 : f32
    %3 = vector.broadcast %cst_3 : f32 to vector<128x64xf32>
    %4 = arith.mulf %3, %2 : vector<128x64xf32>
    %5 = arith.maximumf %2, %4 : vector<128x64xf32>
    %6 = arith.truncf %5 : vector<128x64xf32> to vector<128x64xbf16>
    %c0_4 = arith.constant 0 : index
    %c0_5 = arith.constant 0 : index
    %7 = vector.load %arg3[%c0_4, %c0_5] : memref<128x64xbf16, #tpu.memory_space<vmem>>, vector<128x64xbf16>
    tpu.vector_store %arg3[%c0_4, %c0_5], %6 {strides = array<i32>} : memref<128x64xbf16, #tpu.memory_space<vmem>>, vector<128x64xbf16>,
    return
  }
  func.func @transform_0(%arg0: i32) -> (i32, i32) {
    %c0_i32 = arith.constant 0 : i32
    %c0_i32_0 = arith.constant 0 : i32
    return %arg0, %c0_i32 : i32, i32
  }
  func.func @transform_1(%arg0: i32) -> (i32, i32) {
    %c0_i32 = arith.constant 0 : i32
    %c0_i32_0 = arith.constant 0 : i32
    %c0_i32_1 = arith.constant 0 : i32
    return %c0_i32, %c0_i32_0 : i32, i32
  }
  func.func @transform_2(%arg0: i32) -> (i32, i32) {
    %c0_i32 = arith.constant 0 : i32
    %c0_i32_0 = arith.constant 0 : i32
    return %arg0, %c0_i32 : i32, i32
  }
}

module attributes {stable_mosaic.version = 11 : i64} {
  func.func @_mm_lrelu_kernel(%arg0: i32, %arg1: memref<32x1664xbf16, #tpu.memory_space<vmem>>, %arg2: memref<1664x128xbf16, #tpu.memory_space<vmem>>, %arg3: memref<32x128xbf16, #tpu.memory_space<vmem>>) attributes {dimension_semantics = [#tpu.dimension_semantics<parallel>], iteration_bounds = array<i64: 1>, scalar_prefetch = 0 : i64, scratch_operands = 0 : i64, tpu.core_type = #tpu.core_type<tc>, window_params = [{transform_indices = @transform_0, window_bounds = array<i64: 32, 1664>}, {pipeline_mode = #tpu.pipeline_mode<synchronous>, transform_indices = @transform_1, window_bounds = array<i64: 1664, 128>}, {transform_indices = @transform_2, window_bounds = array<i64: 32, 128>}]} {
    %c0 = arith.constant 0 : index
    %c0_0 = arith.constant 0 : index
    %0 = vector.load %arg1[%c0, %c0_0] : memref<32x1664xbf16, #tpu.memory_space<vmem>>, vector<32x1664xbf16>
    %c0_1 = arith.constant 0 : index
    %c0_2 = arith.constant 0 : index
    %1 = vector.load %arg2[%c0_1, %c0_2] : memref<1664x128xbf16, #tpu.memory_space<vmem>>, vector<1664x128xbf16>
    %cst = arith.constant dense<0.000000e+00> : vector<32x128xf32>
    %2 = tpu.matmul %0, %1, %cst {dimension_numbers = #tpu.dot_dimension_numbers<[1], [0], [0], [1], [0, 0, 1, 1], [], []>} : vector<32x1664xbf16>, vector<1664x128xbf16>, vector<32x128xf32> -> vector<32x128xf32>
    %cst_3 = arith.constant 2.000000e-01 : f32
    %3 = vector.broadcast %cst_3 : f32 to vector<32x128xf32>
    %4 = arith.mulf %3, %2 : vector<32x128xf32>
    %5 = arith.maximumf %2, %4 : vector<32x128xf32>
    %6 = arith.truncf %5 : vector<32x128xf32> to vector<32x128xbf16>
    %c0_4 = arith.constant 0 : index
    %c0_5 = arith.constant 0 : index
    %7 = vector.load %arg3[%c0_4, %c0_5] : memref<32x128xbf16, #tpu.memory_space<vmem>>, vector<32x128xbf16>
    tpu.vector_store %arg3[%c0_4, %c0_5], %6 {strides = array<i32>} : memref<32x128xbf16, #tpu.memory_space<vmem>>, vector<32x128xbf16>,
    return
  }
  func.func @transform_0(%arg0: i32) -> (i32, i32) {
    %c0_i32 = arith.constant 0 : i32
    %c0_i32_0 = arith.constant 0 : i32
    return %arg0, %c0_i32 : i32, i32
  }
  func.func @transform_1(%arg0: i32) -> (i32, i32) {
    %c0_i32 = arith.constant 0 : i32
    %c0_i32_0 = arith.constant 0 : i32
    %c0_i32_1 = arith.constant 0 : i32
    return %c0_i32, %c0_i32_0 : i32, i32
  }
  func.func @transform_2(%arg0: i32) -> (i32, i32) {
    %c0_i32 = arith.constant 0 : i32
    %c0_i32_0 = arith.constant 0 : i32
    return %arg0, %c0_i32 : i32, i32
  }
}

module attributes {stable_mosaic.version = 11 : i64} {
  func.func @kernel(%arg0: i32, %arg1: memref<16x3200xbf16, #tpu.memory_space<vmem>>, %arg2: memref<3200x256xbf16, #tpu.memory_space<vmem>>, %arg3: memref<1024x256xbf16, #tpu.memory_space<vmem>>, %arg4: memref<256x256xbf16, #tpu.memory_space<vmem>>, %arg5: memref<8x256xf32, #tpu.memory_space<vmem>>, %arg6: memref<8x1024xf32, #tpu.memory_space<vmem>>) attributes {dimension_semantics = [#tpu.dimension_semantics<arbitrary>], iteration_bounds = array<i64: 1>, scalar_prefetch = 0 : i64, scratch_operands = 1 : i64, tpu.core_type = #tpu.core_type<tc>, window_params = [{pipeline_mode = #tpu.pipeline_mode<synchronous>, transform_indices = @transform_0, window_bounds = array<i64: 16, 3200>}, {pipeline_mode = #tpu.pipeline_mode<synchronous>, transform_indices = @transform_1, window_bounds = array<i64: 3200, 256>}, {pipeline_mode = #tpu.pipeline_mode<synchronous>, transform_indices = @transform_2, window_bounds = array<i64: 1024, 256>}, {pipeline_mode = #tpu.pipeline_mode<synchronous>, transform_indices = @transform_3, window_bounds = array<i64: 256, 256>}, {pipeline_mode = #tpu.pipeline_mode<synchronous>, transform_indices = @transform_4, window_bounds = array<i64: 8, 256>}]} {
    %c0 = arith.constant 0 : index
    %c0_0 = arith.constant 0 : index
    %0 = vector.load %arg1[%c0, %c0_0] : memref<16x3200xbf16, #tpu.memory_space<vmem>>, vector<16x3200xbf16>
    %c0_1 = arith.constant 0 : index
    %c0_2 = arith.constant 0 : index
    %1 = vector.load %arg2[%c0_1, %c0_2] : memref<3200x256xbf16, #tpu.memory_space<vmem>>, vector<3200x256xbf16>
    %cst = arith.constant dense<0.000000e+00> : vector<16x256xf32>
    %2 = tpu.matmul %0, %1, %cst {dimension_numbers = #tpu.dot_dimension_numbers<[1], [0], [0], [1], [0, 0, 1, 1], [], []>} : vector<16x3200xbf16>, vector<3200x256xbf16>, vector<16x256xf32> -> vector<16x256xf32>
    %cst_3 = arith.constant 2.000000e-01 : f32
    %3 = vector.broadcast %cst_3 : f32 to vector<16x256xf32>
    %4 = arith.mulf %3, %2 : vector<16x256xf32>
    %5 = arith.maximumf %2, %4 : vector<16x256xf32>
    %cst_4 = arith.constant 0.000000e+00 : f32
    %6 = vector.broadcast %cst_4 : f32 to vector<8x1024xf32>
    %c0_5 = arith.constant 0 : index
    %c0_6 = arith.constant 0 : index
    %7 = vector.load %arg6[%c0_5, %c0_6] : memref<8x1024xf32, #tpu.memory_space<vmem>>, vector<8x1024xf32>
    tpu.vector_store %arg6[%c0_5, %c0_6], %6 {strides = array<i32>} : memref<8x1024xf32, #tpu.memory_space<vmem>>, vector<8x1024xf32>,
    %8 = vector.extract_strided_slice %5 {offsets = [0, 0], sizes = [1, 256], strides = [1, 1]} : vector<16x256xf32> to vector<1x256xf32>
    %c0_7 = arith.constant 0 : index
    %c0_8 = arith.constant 0 : index
    %9 = vector.load %arg6[%c0_7, %c0_8] : memref<8x1024xf32, #tpu.memory_space<vmem>>, vector<1x256xf32>
    tpu.vector_store %arg6[%c0_7, %c0_8], %8 {strides = array<i32>} : memref<8x1024xf32, #tpu.memory_space<vmem>>, vector<1x256xf32>,
    %10 = vector.extract_strided_slice %5 {offsets = [1, 0], sizes = [1, 256], strides = [1, 1]} : vector<16x256xf32> to vector<1x256xf32>
    %c0_9 = arith.constant 0 : index
    %c256 = arith.constant 256 : index
    %11 = vector.load %arg6[%c0_9, %c256] : memref<8x1024xf32, #tpu.memory_space<vmem>>, vector<1x256xf32>
    tpu.vector_store %arg6[%c0_9, %c256], %10 {strides = array<i32>} : memref<8x1024xf32, #tpu.memory_space<vmem>>, vector<1x256xf32>,
    %12 = vector.extract_strided_slice %5 {offsets = [2, 0], sizes = [1, 256], strides = [1, 1]} : vector<16x256xf32> to vector<1x256xf32>
    %c0_10 = arith.constant 0 : index
    %c512 = arith.constant 512 : index
    %13 = vector.load %arg6[%c0_10, %c512] : memref<8x1024xf32, #tpu.memory_space<vmem>>, vector<1x256xf32>
    tpu.vector_store %arg6[%c0_10, %c512], %12 {strides = array<i32>} : memref<8x1024xf32, #tpu.memory_space<vmem>>, vector<1x256xf32>,
    %14 = vector.extract_strided_slice %5 {offsets = [3, 0], sizes = [1, 256], strides = [1, 1]} : vector<16x256xf32> to vector<1x256xf32>
    %c0_11 = arith.constant 0 : index
    %c768 = arith.constant 768 : index
    %15 = vector.load %arg6[%c0_11, %c768] : memref<8x1024xf32, #tpu.memory_space<vmem>>, vector<1x256xf32>
    tpu.vector_store %arg6[%c0_11, %c768], %14 {strides = array<i32>} : memref<8x1024xf32, #tpu.memory_space<vmem>>, vector<1x256xf32>,
    %16 = vector.extract_strided_slice %5 {offsets = [4, 0], sizes = [1, 256], strides = [1, 1]} : vector<16x256xf32> to vector<1x256xf32>
    %c1 = arith.constant 1 : index
    %c0_12 = arith.constant 0 : index
    %17 = vector.load %arg6[%c1, %c0_12] : memref<8x1024xf32, #tpu.memory_space<vmem>>, vector<1x256xf32>
    tpu.vector_store %arg6[%c1, %c0_12], %16 {strides = array<i32>} : memref<8x1024xf32, #tpu.memory_space<vmem>>, vector<1x256xf32>,
    %18 = vector.extract_strided_slice %5 {offsets = [5, 0], sizes = [1, 256], strides = [1, 1]} : vector<16x256xf32> to vector<1x256xf32>
    %c1_13 = arith.constant 1 : index
    %c256_14 = arith.constant 256 : index
    %19 = vector.load %arg6[%c1_13, %c256_14] : memref<8x1024xf32, #tpu.memory_space<vmem>>, vector<1x256xf32>
    tpu.vector_store %arg6[%c1_13, %c256_14], %18 {strides = array<i32>} : memref<8x1024xf32, #tpu.memory_space<vmem>>, vector<1x256xf32>,
    %20 = vector.extract_strided_slice %5 {offsets = [6, 0], sizes = [1, 256], strides = [1, 1]} : vector<16x256xf32> to vector<1x256xf32>
    %c1_15 = arith.constant 1 : index
    %c512_16 = arith.constant 512 : index
    %21 = vector.load %arg6[%c1_15, %c512_16] : memref<8x1024xf32, #tpu.memory_space<vmem>>, vector<1x256xf32>
    tpu.vector_store %arg6[%c1_15, %c512_16], %20 {strides = array<i32>} : memref<8x1024xf32, #tpu.memory_space<vmem>>, vector<1x256xf32>,
    %22 = vector.extract_strided_slice %5 {offsets = [7, 0], sizes = [1, 256], strides = [1, 1]} : vector<16x256xf32> to vector<1x256xf32>
    %c1_17 = arith.constant 1 : index
    %c768_18 = arith.constant 768 : index
    %23 = vector.load %arg6[%c1_17, %c768_18] : memref<8x1024xf32, #tpu.memory_space<vmem>>, vector<1x256xf32>
    tpu.vector_store %arg6[%c1_17, %c768_18], %22 {strides = array<i32>} : memref<8x1024xf32, #tpu.memory_space<vmem>>, vector<1x256xf32>,
    %c0_19 = arith.constant 0 : index
    %c0_20 = arith.constant 0 : index
    %24 = vector.load %arg6[%c0_19, %c0_20] : memref<8x1024xf32, #tpu.memory_space<vmem>>, vector<8x1024xf32>
    %25 = arith.truncf %24 : vector<8x1024xf32> to vector<8x1024xbf16>
    %c0_21 = arith.constant 0 : index
    %c0_22 = arith.constant 0 : index
    %26 = vector.load %arg3[%c0_21, %c0_22] : memref<1024x256xbf16, #tpu.memory_space<vmem>>, vector<1024x256xbf16>
    %cst_23 = arith.constant dense<0.000000e+00> : vector<8x256xf32>
    %27 = tpu.matmul %25, %26, %cst_23 {dimension_numbers = #tpu.dot_dimension_numbers<[1], [0], [0], [1], [0, 0, 1, 1], [], []>} : vector<8x1024xbf16>, vector<1024x256xbf16>, vector<8x256xf32> -> vector<8x256xf32>
    %cst_24 = arith.constant 2.000000e-01 : f32
    %28 = vector.broadcast %cst_24 : f32 to vector<8x256xf32>
    %29 = arith.mulf %28, %27 : vector<8x256xf32>
    %30 = arith.maximumf %27, %29 : vector<8x256xf32>
    %31 = arith.truncf %30 : vector<8x256xf32> to vector<8x256xbf16>
    %c0_25 = arith.constant 0 : index
    %c0_26 = arith.constant 0 : index
    %32 = vector.load %arg4[%c0_25, %c0_26] : memref<256x256xbf16, #tpu.memory_space<vmem>>, vector<256x256xbf16>
    %cst_27 = arith.constant dense<0.000000e+00> : vector<8x256xf32>
    %33 = tpu.matmul %31, %32, %cst_27 {dimension_numbers = #tpu.dot_dimension_numbers<[1], [0], [0], [1], [0, 0, 1, 1], [], []>} : vector<8x256xbf16>, vector<256x256xbf16>, vector<8x256xf32> -> vector<8x256xf32>
    %cst_28 = arith.constant 2.000000e-01 : f32
    %34 = vector.broadcast %cst_28 : f32 to vector<8x256xf32>
    %35 = arith.mulf %34, %33 : vector<8x256xf32>
    %36 = arith.maximumf %33, %35 : vector<8x256xf32>
    %c0_29 = arith.constant 0 : index
    %c0_30 = arith.constant 0 : index
    %37 = vector.load %arg5[%c0_29, %c0_30] : memref<8x256xf32, #tpu.memory_space<vmem>>, vector<8x256xf32>
    tpu.vector_store %arg5[%c0_29, %c0_30], %36 {strides = array<i32>} : memref<8x256xf32, #tpu.memory_space<vmem>>, vector<8x256xf32>,
    return
  }
  func.func @transform_0(%arg0: i32) -> (i32, i32) {
    %c0_i32 = arith.constant 0 : i32
    %c0_i32_0 = arith.constant 0 : i32
    %c0_i32_1 = arith.constant 0 : i32
    return %c0_i32, %c0_i32_0 : i32, i32
  }
  func.func @transform_1(%arg0: i32) -> (i32, i32) {
    %c0_i32 = arith.constant 0 : i32
    %c0_i32_0 = arith.constant 0 : i32
    %c0_i32_1 = arith.constant 0 : i32
    return %c0_i32, %c0_i32_0 : i32, i32
  }
  func.func @transform_2(%arg0: i32) -> (i32, i32) {
    %c0_i32 = arith.constant 0 : i32
    %c0_i32_0 = arith.constant 0 : i32
    %c0_i32_1 = arith.constant 0 : i32
    return %c0_i32, %c0_i32_0 : i32, i32
  }
  func.func @transform_3(%arg0: i32) -> (i32, i32) {
    %c0_i32 = arith.constant 0 : i32
    %c0_i32_0 = arith.constant 0 : i32
    %c0_i32_1 = arith.constant 0 : i32
    return %c0_i32, %c0_i32_0 : i32, i32
  }
  func.func @transform_4(%arg0: i32) -> (i32, i32) {
    %c0_i32 = arith.constant 0 : i32
    %c0_i32_0 = arith.constant 0 : i32
    %c0_i32_1 = arith.constant 0 : i32
    return %c0_i32, %c0_i32_0 : i32, i32
  }
}

</mosaic_0001>

<llo_original>
// kernel: discriminator_forward.3
$region0: #{discriminator_forward.3}
  #allocation0 [shape = 'u32[]', space=smem, size = 0x4, offset = 0x4, fixed_abs, tag = 'smem constant byte address 0x4 - core index']
  #allocation1 [shape = 'u32[144,128]{1,0:T(1,128)}', space=vmem, size = 0x12000, scoped, tag = 'internal scratch']
  %s0 = inlined_call_operand.vmem [shape: bf16[128,128], index: 0, kind: input, shape index: {}]
  %s1 = inlined_call_operand.vmem [shape: bf16[128,64], index: 1, kind: input, shape index: {}]
  %s2 = inlined_call_operand.vmem [shape: bf16[128,64], index: 2, kind: output, shape index: {}]
  %s3 = sld [smem:[#allocation0]]
  $region18: #{discriminator_forward.3} parent=0
    _
  %s5 = ssub.s32 1, %s3
  %s6 = scalar_select 0, %s5, %s3
  // Predicated region
  $region2: #{discriminator_forward.3} parent=0 // pred_check
    _
  $region3: #{discriminator_forward.3} parent=0 // pred_check_branch
    %8 = sbr.rel (0) target = $region5
  $region4: #{discriminator_forward.3} parent=0 // pred_region
    _
  $region5: #{discriminator_forward.3} parent=0 // pred_fallthru
    _
  // Predicated region
  $region6: #{discriminator_forward.3} parent=0 // pred_check
    _
  $region7: #{discriminator_forward.3} parent=0 // pred_check_branch
    %10 = sbr.rel (0) target = $region9
  $region8: #{discriminator_forward.3} parent=0 // pred_region
    _
  $region9: #{discriminator_forward.3} parent=0 // pred_fallthru
    _
  %v12 = vld [vmem:[%s0] sm:$0xf]
  %v13 = vld [vmem:[%s0 + $0x4] sm:$0xf]
  %v14 = vld [vmem:[%s0 + $0x8] sm:$0xf]
  %v15 = vld [vmem:[%s0 + $0xc] sm:$0xf]
  %v16 = vld [vmem:[%s0 + $0x10] sm:$0xf]
  %v17 = vld [vmem:[%s0 + $0x14] sm:$0xf]
  %v18 = vld [vmem:[%s0 + $0x18] sm:$0xf]
  %v19 = vld [vmem:[%s0 + $0x1c] sm:$0xf]
  %v20 = vld [vmem:[%s0 + $0x20] sm:$0xf]
  %v21 = vld [vmem:[%s0 + $0x24] sm:$0xf]
  %v22 = vld [vmem:[%s0 + $0x28] sm:$0xf]
  %v23 = vld [vmem:[%s0 + $0x2c] sm:$0xf]
  %v24 = vld [vmem:[%s0 + $0x30] sm:$0xf]
  %v25 = vld [vmem:[%s0 + $0x34] sm:$0xf]
  %v26 = vld [vmem:[%s0 + $0x38] sm:$0xf]
  %v27 = vld [vmem:[%s0 + $0x3c] sm:$0xf]
  %v28 = vld [vmem:[%s1] sm:$0xf]
  %v29 = vld [vmem:[%s1 + $0x4] sm:$0xf]
  %v30 = vld [vmem:[%s1 + $0x8] sm:$0xf]
  %v31 = vld [vmem:[%s1 + $0xc] sm:$0xf]
  %v32 = vld [vmem:[%s1 + $0x10] sm:$0xf]
  %v33 = vld [vmem:[%s1 + $0x14] sm:$0xf]
  %v34 = vld [vmem:[%s1 + $0x18] sm:$0xf]
  %v35 = vld [vmem:[%s1 + $0x1c] sm:$0xf]
  %v36 = vld [vmem:[%s1 + $0x20] sm:$0xf]
  %v37 = vld [vmem:[%s1 + $0x24] sm:$0xf]
  %v38 = vld [vmem:[%s1 + $0x28] sm:$0xf]
  %v39 = vld [vmem:[%s1 + $0x2c] sm:$0xf]
  %v40 = vld [vmem:[%s1 + $0x30] sm:$0xf]
  %v41 = vld [vmem:[%s1 + $0x34] sm:$0xf]
  %v42 = vld [vmem:[%s1 + $0x38] sm:$0xf]
  %v43 = vld [vmem:[%s1 + $0x3c] sm:$0xf]
  %v60 = vunpack.c.l.b16 %v12
  %v61 = vunpack.c.l.b16 %v13
  %v62 = vunpack.c.l.b16 %v14
  %v63 = vunpack.c.l.b16 %v15
  %v64 = vunpack.c.l.b16 %v16
  %v65 = vunpack.c.l.b16 %v17
  %v66 = vunpack.c.l.b16 %v18
  %v67 = vunpack.c.l.b16 %v19
  %v68 = vunpack.c.l.b16 %v20
  %v69 = vunpack.c.l.b16 %v21
  %v70 = vunpack.c.l.b16 %v22
  %v71 = vunpack.c.l.b16 %v23
  %v72 = vunpack.c.l.b16 %v24
  %v73 = vunpack.c.l.b16 %v25
  %v74 = vunpack.c.l.b16 %v26
  %v75 = vunpack.c.l.b16 %v27
  %v76 = vpack.c.b16 %v61, %v60
  %v77 = vpack.c.b16 %v63, %v62
  %v78 = vpack.c.b16 %v65, %v64
  %v79 = vpack.c.b16 %v67, %v66
  %v80 = vpack.c.b16 %v69, %v68
  %v81 = vpack.c.b16 %v71, %v70
  %v82 = vpack.c.b16 %v73, %v72
  %v83 = vpack.c.b16 %v75, %v74
  %v108 = vunpack.c.l.b16 %v28
  %v109 = vunpack.c.l.b16 %v29
  %v110 = vunpack.c.l.b16 %v30
  %v111 = vunpack.c.l.b16 %v31
  %v112 = vunpack.c.l.b16 %v32
  %v113 = vunpack.c.l.b16 %v33
  %v114 = vunpack.c.l.b16 %v34
  %v115 = vunpack.c.l.b16 %v35
  %v116 = vunpack.c.l.b16 %v36
  %v117 = vunpack.c.l.b16 %v37
  %v118 = vunpack.c.l.b16 %v38
  %v119 = vunpack.c.l.b16 %v39
  %v120 = vunpack.c.l.b16 %v40
  %v121 = vunpack.c.l.b16 %v41
  %v122 = vunpack.c.l.b16 %v42
  %v123 = vunpack.c.l.b16 %v43
  %v124 = vpack.c.b16 %v109, %v108
  %v125 = vpack.c.b16 %v111, %v110
  %v126 = vpack.c.b16 %v113, %v112
  %v127 = vpack.c.b16 %v115, %v114
  %v128 = vpack.c.b16 %v117, %v116
  %v129 = vpack.c.b16 %v119, %v118
  %v130 = vpack.c.b16 %v121, %v120
  %v131 = vpack.c.b16 %v123, %v122
  %140 = vmatprep.subr.bf16.mxu0 0
  %141 = vmatpush1.bf16.msra.mxu0 %v124
  %142 = vmatprep.subr.bf16.mxu0 0
  %143 = vmatpush1.bf16.msra.mxu0 %v125
  %144 = vmatprep.subr.bf16.mxu0 0
  %145 = vmatpush1.bf16.msra.mxu0 %v126
  %146 = vmatprep.subr.bf16.mxu0 0
  %147 = vmatpush1.bf16.msra.mxu0 %v127
  %148 = vmatprep.subr.bf16.mxu0 0
  %149 = vmatpush1.bf16.msra.mxu0 %v128
  %150 = vmatprep.subr.bf16.mxu0 0
  %151 = vmatpush1.bf16.msra.mxu0 %v129
  %152 = vmatprep.subr.bf16.mxu0 0
  %153 = vmatpush1.bf16.msra.mxu0 %v130
  %154 = vmatprep.subr.bf16.mxu0 0
  %155 = vmatpush1.bf16.msra.mxu0 %v131
  %156 = vmatprep.subr.bf16.mxu0 0
  %157 = vmatpush1.bf16.msra.mxu0 0
  %158 = vmatprep.subr.bf16.mxu0 0
  %159 = vmatpush1.bf16.msra.mxu0 0
  %160 = vmatprep.subr.bf16.mxu0 0
  %161 = vmatpush1.bf16.msra.mxu0 0
  %162 = vmatprep.subr.bf16.mxu0 0
  %163 = vmatpush1.bf16.msra.mxu0 0
  %164 = vmatprep.subr.bf16.mxu0 0
  %165 = vmatpush1.bf16.msra.mxu0 0
  %166 = vmatprep.subr.bf16.mxu0 0
  %167 = vmatpush1.bf16.msra.mxu0 0
  %168 = vmatprep.subr.bf16.mxu0 0
  %169 = vmatpush1.bf16.msra.mxu0 0
  %170 = vmatprep.subr.bf16.mxu0 0
  %171 = vmatpush1.bf16.msra.mxu0 0
  %172 = vmatprep.mubr.bf16.mxu0 0
  %173 = vmatmul.mubr.bf16.gmra.mrb[0].mxu0 %v76
  %v174 = vpop.f32.mrb[0].mxu0
  %v175 = vadd.f32 0.0, %v174
  %v176 = vpop.f32.mrb[0].mxu0
  %v177 = vpop.f32.mrb[0].mxu0
  %v178 = vadd.f32 0.0, %v177
  %v179 = vpop.f32.mrb[0].mxu0
  %180 = vmatprep.mubr.bf16.mxu0 0
  %181 = vmatmul.mubr.bf16.gmra.mrb[0].mxu0 %v77
  %v182 = vpop.f32.mrb[0].mxu0
  %v183 = vadd.f32 0.0, %v182
  %v184 = vpop.f32.mrb[0].mxu0
  %v185 = vpop.f32.mrb[0].mxu0
  %v186 = vadd.f32 0.0, %v185
  %v187 = vpop.f32.mrb[0].mxu0
  %188 = vmatprep.mubr.bf16.mxu0 0
  %189 = vmatmul.mubr.bf16.gmra.mrb[0].mxu0 %v78
  %v190 = vpop.f32.mrb[0].mxu0
  %v191 = vadd.f32 0.0, %v190
  %v192 = vpop.f32.mrb[0].mxu0
  %v193 = vpop.f32.mrb[0].mxu0
  %v194 = vadd.f32 0.0, %v193
  %v195 = vpop.f32.mrb[0].mxu0
  %196 = vmatprep.mubr.bf16.mxu0 0
  %197 = vmatmul.mubr.bf16.gmra.mrb[0].mxu0 %v79
  %v198 = vpop.f32.mrb[0].mxu0
  %v199 = vadd.f32 0.0, %v198
  %v200 = vpop.f32.mrb[0].mxu0
  %v201 = vpop.f32.mrb[0].mxu0
  %v202 = vadd.f32 0.0, %v201
  %v203 = vpop.f32.mrb[0].mxu0
  %204 = vmatprep.mubr.bf16.mxu0 0
  %205 = vmatmul.mubr.bf16.gmra.mrb[0].mxu0 %v80
  %v206 = vpop.f32.mrb[0].mxu0
  %v207 = vadd.f32 0.0, %v206
  %v208 = vpop.f32.mrb[0].mxu0
  %v209 = vpop.f32.mrb[0].mxu0
  %v210 = vadd.f32 0.0, %v209
  %v211 = vpop.f32.mrb[0].mxu0
  %212 = vmatprep.mubr.bf16.mxu0 0
  %213 = vmatmul.mubr.bf16.gmra.mrb[0].mxu0 %v81
  %v214 = vpop.f32.mrb[0].mxu0
  %v215 = vadd.f32 0.0, %v214
  %v216 = vpop.f32.mrb[0].mxu0
  %v217 = vpop.f32.mrb[0].mxu0
  %v218 = vadd.f32 0.0, %v217
  %v219 = vpop.f32.mrb[0].mxu0
  %220 = vmatprep.mubr.bf16.mxu0 0
  %221 = vmatmul.mubr.bf16.gmra.mrb[0].mxu0 %v82
  %v222 = vpop.f32.mrb[0].mxu0
  %v223 = vadd.f32 0.0, %v222
  %v224 = vpop.f32.mrb[0].mxu0
  %v225 = vpop.f32.mrb[0].mxu0
  %v226 = vadd.f32 0.0, %v225
  %v227 = vpop.f32.mrb[0].mxu0
  %228 = vmatprep.mubr.bf16.mxu0 0
  %229 = vmatmul.mubr.bf16.gmra.mrb[0].mxu0 %v83
  %v230 = vpop.f32.mrb[0].mxu0
  %v231 = vadd.f32 0.0, %v230
  %v232 = vpop.f32.mrb[0].mxu0
  %v233 = vpop.f32.mrb[0].mxu0
  %v234 = vadd.f32 0.0, %v233
  %v235 = vpop.f32.mrb[0].mxu0
  %236 = vdwg.mxu0
  %v237 = vmul.f32 %v175, 0.2
  %v238 = vmul.f32 %v178, 0.2
  %v239 = vmul.f32 %v183, 0.2
  %v240 = vmul.f32 %v186, 0.2
  %v241 = vmul.f32 %v191, 0.2
  %v242 = vmul.f32 %v194, 0.2
  %v243 = vmul.f32 %v199, 0.2
  %v244 = vmul.f32 %v202, 0.2
  %v245 = vmul.f32 %v207, 0.2
  %v246 = vmul.f32 %v210, 0.2
  %v247 = vmul.f32 %v215, 0.2
  %v248 = vmul.f32 %v218, 0.2
  %v249 = vmul.f32 %v223, 0.2
  %v250 = vmul.f32 %v226, 0.2
  %v251 = vmul.f32 %v231, 0.2
  %v252 = vmul.f32 %v234, 0.2
  %v253 = vmax.f32 %v175, %v237
  %v254 = vmax.f32 %v178, %v238
  %v255 = vmax.f32 %v183, %v239
  %v256 = vmax.f32 %v186, %v240
  %v257 = vmax.f32 %v191, %v241
  %v258 = vmax.f32 %v194, %v242
  %v259 = vmax.f32 %v199, %v243
  %v260 = vmax.f32 %v202, %v244
  %v261 = vmax.f32 %v207, %v245
  %v262 = vmax.f32 %v210, %v246
  %v263 = vmax.f32 %v215, %v247
  %v264 = vmax.f32 %v218, %v248
  %v265 = vmax.f32 %v223, %v249
  %v266 = vmax.f32 %v226, %v250
  %v267 = vmax.f32 %v231, %v251
  %v268 = vmax.f32 %v234, %v252
  %v269 = vpack.c.bf16 %v254, %v253
  %v270 = vpack.c.bf16 %v256, %v255
  %v271 = vpack.c.bf16 %v258, %v257
  %v272 = vpack.c.bf16 %v260, %v259
  %v273 = vpack.c.bf16 %v262, %v261
  %v274 = vpack.c.bf16 %v264, %v263
  %v275 = vpack.c.bf16 %v266, %v265
  %v276 = vpack.c.bf16 %v268, %v267
  %v285 = vunpack.c.l.b16 %v269
  %v286 = vunpack.c.h.b16 %v269
  %v287 = vunpack.c.l.b16 %v270
  %v288 = vunpack.c.h.b16 %v270
  %v289 = vunpack.c.l.b16 %v271
  %v290 = vunpack.c.h.b16 %v271
  %v291 = vunpack.c.l.b16 %v272
  %v292 = vunpack.c.h.b16 %v272
  %v293 = vunpack.c.l.b16 %v273
  %v294 = vunpack.c.h.b16 %v273
  %v295 = vunpack.c.l.b16 %v274
  %v296 = vunpack.c.h.b16 %v274
  %v297 = vunpack.c.l.b16 %v275
  %v298 = vunpack.c.h.b16 %v275
  %v299 = vunpack.c.l.b16 %v276
  %v300 = vunpack.c.h.b16 %v276
  %v301 = vpack.c.b16 %v285, %v285
  %v302 = vpack.c.b16 %v286, %v286
  %v303 = vpack.c.b16 %v287, %v287
  %v304 = vpack.c.b16 %v288, %v288
  %v305 = vpack.c.b16 %v289, %v289
  %v306 = vpack.c.b16 %v290, %v290
  %v307 = vpack.c.b16 %v291, %v291
  %v308 = vpack.c.b16 %v292, %v292
  %v309 = vpack.c.b16 %v293, %v293
  %v310 = vpack.c.b16 %v294, %v294
  %v311 = vpack.c.b16 %v295, %v295
  %v312 = vpack.c.b16 %v296, %v296
  %v313 = vpack.c.b16 %v297, %v297
  %v314 = vpack.c.b16 %v298, %v298
  %v315 = vpack.c.b16 %v299, %v299
  %v316 = vpack.c.b16 %v300, %v300
  %vm333 = vcmask 519168
  %334 = vst.msk [vmem:[%s2] sm:$0xf] %vm333, %v301
  %335 = vst.msk [vmem:[%s2 + $0x4] sm:$0xf] %vm333, %v302
  %336 = vst.msk [vmem:[%s2 + $0x8] sm:$0xf] %vm333, %v303
  %337 = vst.msk [vmem:[%s2 + $0xc] sm:$0xf] %vm333, %v304
  %338 = vst.msk [vmem:[%s2 + $0x10] sm:$0xf] %vm333, %v305
  %339 = vst.msk [vmem:[%s2 + $0x14] sm:$0xf] %vm333, %v306
  %340 = vst.msk [vmem:[%s2 + $0x18] sm:$0xf] %vm333, %v307
  %341 = vst.msk [vmem:[%s2 + $0x1c] sm:$0xf] %vm333, %v308
  %342 = vst.msk [vmem:[%s2 + $0x20] sm:$0xf] %vm333, %v309
  %343 = vst.msk [vmem:[%s2 + $0x24] sm:$0xf] %vm333, %v310
  %344 = vst.msk [vmem:[%s2 + $0x28] sm:$0xf] %vm333, %v311
  %345 = vst.msk [vmem:[%s2 + $0x2c] sm:$0xf] %vm333, %v312
  %346 = vst.msk [vmem:[%s2 + $0x30] sm:$0xf] %vm333, %v313
  %347 = vst.msk [vmem:[%s2 + $0x34] sm:$0xf] %vm333, %v314
  %348 = vst.msk [vmem:[%s2 + $0x38] sm:$0xf] %vm333, %v315
  %349 = vst.msk [vmem:[%s2 + $0x3c] sm:$0xf] %vm333, %v316
  // Predicated region
  $region10: #{discriminator_forward.3} parent=0 // pred_check
    _
  $region11: #{discriminator_forward.3} parent=0 // pred_check_branch
    %351 = sbr.rel (0) target = $region13
  $region12: #{discriminator_forward.3} parent=0 // pred_region
    _
  $region13: #{discriminator_forward.3} parent=0 // pred_fallthru
    _
  // Predicated region
  $region14: #{discriminator_forward.3} parent=0 // pred_check
    _
  $region15: #{discriminator_forward.3} parent=0 // pred_check_branch
    %353 = sbr.rel (0) target = $region17
  $region16: #{discriminator_forward.3} parent=0 // pred_region
    _
  $region17: #{discriminator_forward.3} parent=0 // pred_fallthru
    _

// kernel: discriminator_forward.4
$region0: #{discriminator_forward.4}
  #allocation0 [shape = 'u32[]', space=smem, size = 0x4, offset = 0x4, fixed_abs, tag = 'smem constant byte address 0x4 - core index']
  #allocation1 [shape = 'u32[144,128]{1,0:T(1,128)}', space=vmem, size = 0x12000, scoped, tag = 'internal scratch']
  %s0 = inlined_call_operand.vmem [shape: bf16[32,1664], index: 0, kind: input, shape index: {}]
  %s1 = inlined_call_operand.vmem [shape: bf16[1664,128], index: 1, kind: input, shape index: {}]
  %s2 = inlined_call_operand.vmem [shape: bf16[32,128], index: 2, kind: output, shape index: {}]
  %s3 = sld [smem:[#allocation0]]
  $region18: #{discriminator_forward.4} parent=0
    _
  %s5 = ssub.s32 1, %s3
  %s6 = scalar_select 0, %s5, %s3
  // Predicated region
  $region2: #{discriminator_forward.4} parent=0 // pred_check
    _
  $region3: #{discriminator_forward.4} parent=0 // pred_check_branch
    %8 = sbr.rel (0) target = $region5
  $region4: #{discriminator_forward.4} parent=0 // pred_region
    _
  $region5: #{discriminator_forward.4} parent=0 // pred_fallthru
    _
  // Predicated region
  $region6: #{discriminator_forward.4} parent=0 // pred_check
    _
  $region7: #{discriminator_forward.4} parent=0 // pred_check_branch
    %10 = sbr.rel (0) target = $region9
  $region8: #{discriminator_forward.4} parent=0 // pred_region
    _
  $region9: #{discriminator_forward.4} parent=0 // pred_fallthru
    _
  %v12 = vld [vmem:[%s0] sm:$0xff]
  %v13 = vld [vmem:[%s0 + $0x8] sm:$0xff]
  %v14 = vld [vmem:[%s0 + $0x10] sm:$0xff]
  %v15 = vld [vmem:[%s0 + $0x18] sm:$0xff]
  %v16 = vld [vmem:[%s0 + $0x20] sm:$0xff]
  %v17 = vld [vmem:[%s0 + $0x28] sm:$0xff]
  %v18 = vld [vmem:[%s0 + $0x30] sm:$0xf]
  %v19 = vld [vmem:[%s0 + $0x34] sm:$0xff]
  %v20 = vld [vmem:[%s0 + $0x3c] sm:$0xff]
  %v21 = vld [vmem:[%s0 + $0x44] sm:$0xff]
  %v22 = vld [vmem:[%s0 + $0x4c] sm:$0xff]
  %v23 = vld [vmem:[%s0 + $0x54] sm:$0xff]
  %v24 = vld [vmem:[%s0 + $0x5c] sm:$0xff]
  %v25 = vld [vmem:[%s0 + $0x64] sm:$0xf]
  %v26 = vld [vmem:[%s0 + $0x68] sm:$0xff]
  %v27 = vld [vmem:[%s0 + $0x70] sm:$0xff]
  %v28 = vld [vmem:[%s0 + $0x78] sm:$0xff]
  %v29 = vld [vmem:[%s0 + $0x80] sm:$0xff]
  %v30 = vld [vmem:[%s0 + $0x88] sm:$0xff]
  %v31 = vld [vmem:[%s0 + $0x90] sm:$0xff]
  %v32 = vld [vmem:[%s0 + $0x98] sm:$0xf]
  %v33 = vld [vmem:[%s0 + $0x9c] sm:$0xff]
  %v34 = vld [vmem:[%s0 + $0xa4] sm:$0xff]
  %v35 = vld [vmem:[%s0 + $0xac] sm:$0xff]
  %v36 = vld [vmem:[%s0 + $0xb4] sm:$0xff]
  %v37 = vld [vmem:[%s0 + $0xbc] sm:$0xff]
  %v38 = vld [vmem:[%s0 + $0xc4] sm:$0xff]
  %v39 = vld [vmem:[%s0 + $0xcc] sm:$0xf]
  %v40 = vld [vmem:[%s1] sm:$0xf]
  %v41 = vld [vmem:[%s1 + $0x4] sm:$0xf]
  %v42 = vld [vmem:[%s1 + $0x8] sm:$0xf]
  %v43 = vld [vmem:[%s1 + $0xc] sm:$0xf]
  %v44 = vld [vmem:[%s1 + $0x10] sm:$0xf]
  %v45 = vld [vmem:[%s1 + $0x14] sm:$0xf]
  %v46 = vld [vmem:[%s1 + $0x18] sm:$0xf]
  %v47 = vld [vmem:[%s1 + $0x1c] sm:$0xf]
  %v48 = vld [vmem:[%s1 + $0x20] sm:$0xf]
  %v49 = vld [vmem:[%s1 + $0x24] sm:$0xf]
  %v50 = vld [vmem:[%s1 + $0x28] sm:$0xf]
  %v51 = vld [vmem:[%s1 + $0x2c] sm:$0xf]
  %v52 = vld [vmem:[%s1 + $0x30] sm:$0xf]
  %v53 = vld [vmem:[%s1 + $0x34] sm:$0xf]
  %v54 = vld [vmem:[%s1 + $0x38] sm:$0xf]
  %v55 = vld [vmem:[%s1 + $0x3c] sm:$0xf]
  %v56 = vld [vmem:[%s1 + $0x40] sm:$0xf]
  %v57 = vld [vmem:[%s1 + $0x44] sm:$0xf]
  %v58 = vld [vmem:[%s1 + $0x48] sm:$0xf]
  %v59 = vld [vmem:[%s1 + $0x4c] sm:$0xf]
  %v60 = vld [vmem:[%s1 + $0x50] sm:$0xf]
  %v61 = vld [vmem:[%s1 + $0x54] sm:$0xf]
  %v62 = vld [vmem:[%s1 + $0x58] sm:$0xf]
  %v63 = vld [vmem:[%s1 + $0x5c] sm:$0xf]
  %v64 = vld [vmem:[%s1 + $0x60] sm:$0xf]
  %v65 = vld [vmem:[%s1 + $0x64] sm:$0xf]
  %v66 = vld [vmem:[%s1 + $0x68] sm:$0xf]
  %v67 = vld [vmem:[%s1 + $0x6c] sm:$0xf]
  %v68 = vld [vmem:[%s1 + $0x70] sm:$0xf]
  %v69 = vld [vmem:[%s1 + $0x74] sm:$0xf]
  %v70 = vld [vmem:[%s1 + $0x78] sm:$0xf]
  %v71 = vld [vmem:[%s1 + $0x7c] sm:$0xf]
  %v72 = vld [vmem:[%s1 + $0x80] sm:$0xf]
  %v73 = vld [vmem:[%s1 + $0x84] sm:$0xf]
  %v74 = vld [vmem:[%s1 + $0x88] sm:$0xf]
  %v75 = vld [vmem:[%s1 + $0x8c] sm:$0xf]
  %v76 = vld [vmem:[%s1 + $0x90] sm:$0xf]
  %v77 = vld [vmem:[%s1 + $0x94] sm:$0xf]
  %v78 = vld [vmem:[%s1 + $0x98] sm:$0xf]
  %v79 = vld [vmem:[%s1 + $0x9c] sm:$0xf]
  %v80 = vld [vmem:[%s1 + $0xa0] sm:$0xf]
  %v81 = vld [vmem:[%s1 + $0xa4] sm:$0xf]
  %v82 = vld [vmem:[%s1 + $0xa8] sm:$0xf]
  %v83 = vld [vmem:[%s1 + $0xac] sm:$0xf]
  %v84 = vld [vmem:[%s1 + $0xb0] sm:$0xf]
  %v85 = vld [vmem:[%s1 + $0xb4] sm:$0xf]
  %v86 = vld [vmem:[%s1 + $0xb8] sm:$0xf]
  %v87 = vld [vmem:[%s1 + $0xbc] sm:$0xf]
  %v88 = vld [vmem:[%s1 + $0xc0] sm:$0xf]
  %v89 = vld [vmem:[%s1 + $0xc4] sm:$0xf]
  %v90 = vld [vmem:[%s1 + $0xc8] sm:$0xf]
  %v91 = vld [vmem:[%s1 + $0xcc] sm:$0xf]
  %v92 = vld [vmem:[%s1 + $0xd0] sm:$0xf]
  %v93 = vld [vmem:[%s1 + $0xd4] sm:$0xf]
  %v94 = vld [vmem:[%s1 + $0xd8] sm:$0xf]
  %v95 = vld [vmem:[%s1 + $0xdc] sm:$0xf]
  %v96 = vld [vmem:[%s1 + $0xe0] sm:$0xf]
  %v97 = vld [vmem:[%s1 + $0xe4] sm:$0xf]
  %v98 = vld [vmem:[%s1 + $0xe8] sm:$0xf]
  %v99 = vld [vmem:[%s1 + $0xec] sm:$0xf]
  %v100 = vld [vmem:[%s1 + $0xf0] sm:$0xf]
  %v101 = vld [vmem:[%s1 + $0xf4] sm:$0xf]
  %v102 = vld [vmem:[%s1 + $0xf8] sm:$0xf]
  %v103 = vld [vmem:[%s1 + $0xfc] sm:$0xf]
  %v104 = vld [vmem:[%s1 + $0x100] sm:$0xf]
  %v105 = vld [vmem:[%s1 + $0x104] sm:$0xf]
  %v106 = vld [vmem:[%s1 + $0x108] sm:$0xf]
  %v107 = vld [vmem:[%s1 + $0x10c] sm:$0xf]
  %v108 = vld [vmem:[%s1 + $0x110] sm:$0xf]
  %v109 = vld [vmem:[%s1 + $0x114] sm:$0xf]
  %v110 = vld [vmem:[%s1 + $0x118] sm:$0xf]
  %v111 = vld [vmem:[%s1 + $0x11c] sm:$0xf]
  %v112 = vld [vmem:[%s1 + $0x120] sm:$0xf]
  %v113 = vld [vmem:[%s1 + $0x124] sm:$0xf]
  %v114 = vld [vmem:[%s1 + $0x128] sm:$0xf]
  %v115 = vld [vmem:[%s1 + $0x12c] sm:$0xf]
  %v116 = vld [vmem:[%s1 + $0x130] sm:$0xf]
  %v117 = vld [vmem:[%s1 + $0x134] sm:$0xf]
  %v118 = vld [vmem:[%s1 + $0x138] sm:$0xf]
  %v119 = vld [vmem:[%s1 + $0x13c] sm:$0xf]
  %v120 = vld [vmem:[%s1 + $0x140] sm:$0xf]
  %v121 = vld [vmem:[%s1 + $0x144] sm:$0xf]
  %v122 = vld [vmem:[%s1 + $0x148] sm:$0xf]
  %v123 = vld [vmem:[%s1 + $0x14c] sm:$0xf]
  %v124 = vld [vmem:[%s1 + $0x150] sm:$0xf]
  %v125 = vld [vmem:[%s1 + $0x154] sm:$0xf]
  %v126 = vld [vmem:[%s1 + $0x158] sm:$0xf]
  %v127 = vld [vmem:[%s1 + $0x15c] sm:$0xf]
  %v128 = vld [vmem:[%s1 + $0x160] sm:$0xf]
  %v129 = vld [vmem:[%s1 + $0x164] sm:$0xf]
  %v130 = vld [vmem:[%s1 + $0x168] sm:$0xf]
  %v131 = vld [vmem:[%s1 + $0x16c] sm:$0xf]
  %v132 = vld [vmem:[%s1 + $0x170] sm:$0xf]
  %v133 = vld [vmem:[%s1 + $0x174] sm:$0xf]
  %v134 = vld [vmem:[%s1 + $0x178] sm:$0xf]
  %v135 = vld [vmem:[%s1 + $0x17c] sm:$0xf]
  %v136 = vld [vmem:[%s1 + $0x180] sm:$0xf]
  %v137 = vld [vmem:[%s1 + $0x184] sm:$0xf]
  %v138 = vld [vmem:[%s1 + $0x188] sm:$0xf]
  %v139 = vld [vmem:[%s1 + $0x18c] sm:$0xf]
  %v140 = vld [vmem:[%s1 + $0x190] sm:$0xf]
  %v141 = vld [vmem:[%s1 + $0x194] sm:$0xf]
  %v142 = vld [vmem:[%s1 + $0x198] sm:$0xf]
  %v143 = vld [vmem:[%s1 + $0x19c] sm:$0xf]
  %v144 = vld [vmem:[%s1 + $0x1a0] sm:$0xf]
  %v145 = vld [vmem:[%s1 + $0x1a4] sm:$0xf]
  %v146 = vld [vmem:[%s1 + $0x1a8] sm:$0xf]
  %v147 = vld [vmem:[%s1 + $0x1ac] sm:$0xf]
  %v148 = vld [vmem:[%s1 + $0x1b0] sm:$0xf]
  %v149 = vld [vmem:[%s1 + $0x1b4] sm:$0xf]
  %v150 = vld [vmem:[%s1 + $0x1b8] sm:$0xf]
  %v151 = vld [vmem:[%s1 + $0x1bc] sm:$0xf]
  %v152 = vld [vmem:[%s1 + $0x1c0] sm:$0xf]
  %v153 = vld [vmem:[%s1 + $0x1c4] sm:$0xf]
  %v154 = vld [vmem:[%s1 + $0x1c8] sm:$0xf]
  %v155 = vld [vmem:[%s1 + $0x1cc] sm:$0xf]
  %v156 = vld [vmem:[%s1 + $0x1d0] sm:$0xf]
  %v157 = vld [vmem:[%s1 + $0x1d4] sm:$0xf]
  %v158 = vld [vmem:[%s1 + $0x1d8] sm:$0xf]
  %v159 = vld [vmem:[%s1 + $0x1dc] sm:$0xf]
  %v160 = vld [vmem:[%s1 + $0x1e0] sm:$0xf]
  %v161 = vld [vmem:[%s1 + $0x1e4] sm:$0xf]
  %v162 = vld [vmem:[%s1 + $0x1e8] sm:$0xf]
  %v163 = vld [vmem:[%s1 + $0x1ec] sm:$0xf]
  %v164 = vld [vmem:[%s1 + $0x1f0] sm:$0xf]
  %v165 = vld [vmem:[%s1 + $0x1f4] sm:$0xf]
  %v166 = vld [vmem:[%s1 + $0x1f8] sm:$0xf]
  %v167 = vld [vmem:[%s1 + $0x1fc] sm:$0xf]
  %v168 = vld [vmem:[%s1 + $0x200] sm:$0xf]
  %v169 = vld [vmem:[%s1 + $0x204] sm:$0xf]
  %v170 = vld [vmem:[%s1 + $0x208] sm:$0xf]
  %v171 = vld [vmem:[%s1 + $0x20c] sm:$0xf]
  %v172 = vld [vmem:[%s1 + $0x210] sm:$0xf]
  %v173 = vld [vmem:[%s1 + $0x214] sm:$0xf]
  %v174 = vld [vmem:[%s1 + $0x218] sm:$0xf]
  %v175 = vld [vmem:[%s1 + $0x21c] sm:$0xf]
  %v176 = vld [vmem:[%s1 + $0x220] sm:$0xf]
  %v177 = vld [vmem:[%s1 + $0x224] sm:$0xf]
  %v178 = vld [vmem:[%s1 + $0x228] sm:$0xf]
  %v179 = vld [vmem:[%s1 + $0x22c] sm:$0xf]
  %v180 = vld [vmem:[%s1 + $0x230] sm:$0xf]
  %v181 = vld [vmem:[%s1 + $0x234] sm:$0xf]
  %v182 = vld [vmem:[%s1 + $0x238] sm:$0xf]
  %v183 = vld [vmem:[%s1 + $0x23c] sm:$0xf]
  %v184 = vld [vmem:[%s1 + $0x240] sm:$0xf]
  %v185 = vld [vmem:[%s1 + $0x244] sm:$0xf]
  %v186 = vld [vmem:[%s1 + $0x248] sm:$0xf]
  %v187 = vld [vmem:[%s1 + $0x24c] sm:$0xf]
  %v188 = vld [vmem:[%s1 + $0x250] sm:$0xf]
  %v189 = vld [vmem:[%s1 + $0x254] sm:$0xf]
  %v190 = vld [vmem:[%s1 + $0x258] sm:$0xf]
  %v191 = vld [vmem:[%s1 + $0x25c] sm:$0xf]
  %v192 = vld [vmem:[%s1 + $0x260] sm:$0xf]
  %v193 = vld [vmem:[%s1 + $0x264] sm:$0xf]
  %v194 = vld [vmem:[%s1 + $0x268] sm:$0xf]
  %v195 = vld [vmem:[%s1 + $0x26c] sm:$0xf]
  %v196 = vld [vmem:[%s1 + $0x270] sm:$0xf]
  %v197 = vld [vmem:[%s1 + $0x274] sm:$0xf]
  %v198 = vld [vmem:[%s1 + $0x278] sm:$0xf]
  %v199 = vld [vmem:[%s1 + $0x27c] sm:$0xf]
  %v200 = vld [vmem:[%s1 + $0x280] sm:$0xf]
  %v201 = vld [vmem:[%s1 + $0x284] sm:$0xf]
  %v202 = vld [vmem:[%s1 + $0x288] sm:$0xf]
  %v203 = vld [vmem:[%s1 + $0x28c] sm:$0xf]
  %v204 = vld [vmem:[%s1 + $0x290] sm:$0xf]
  %v205 = vld [vmem:[%s1 + $0x294] sm:$0xf]
  %v206 = vld [vmem:[%s1 + $0x298] sm:$0xf]
  %v207 = vld [vmem:[%s1 + $0x29c] sm:$0xf]
  %v208 = vld [vmem:[%s1 + $0x2a0] sm:$0xf]
  %v209 = vld [vmem:[%s1 + $0x2a4] sm:$0xf]
  %v210 = vld [vmem:[%s1 + $0x2a8] sm:$0xf]
  %v211 = vld [vmem:[%s1 + $0x2ac] sm:$0xf]
  %v212 = vld [vmem:[%s1 + $0x2b0] sm:$0xf]
  %v213 = vld [vmem:[%s1 + $0x2b4] sm:$0xf]
  %v214 = vld [vmem:[%s1 + $0x2b8] sm:$0xf]
  %v215 = vld [vmem:[%s1 + $0x2bc] sm:$0xf]
  %v216 = vld [vmem:[%s1 + $0x2c0] sm:$0xf]
  %v217 = vld [vmem:[%s1 + $0x2c4] sm:$0xf]
  %v218 = vld [vmem:[%s1 + $0x2c8] sm:$0xf]
  %v219 = vld [vmem:[%s1 + $0x2cc] sm:$0xf]
  %v220 = vld [vmem:[%s1 + $0x2d0] sm:$0xf]
  %v221 = vld [vmem:[%s1 + $0x2d4] sm:$0xf]
  %v222 = vld [vmem:[%s1 + $0x2d8] sm:$0xf]
  %v223 = vld [vmem:[%s1 + $0x2dc] sm:$0xf]
  %v224 = vld [vmem:[%s1 + $0x2e0] sm:$0xf]
  %v225 = vld [vmem:[%s1 + $0x2e4] sm:$0xf]
  %v226 = vld [vmem:[%s1 + $0x2e8] sm:$0xf]
  %v227 = vld [vmem:[%s1 + $0x2ec] sm:$0xf]
  %v228 = vld [vmem:[%s1 + $0x2f0] sm:$0xf]
  %v229 = vld [vmem:[%s1 + $0x2f4] sm:$0xf]
  %v230 = vld [vmem:[%s1 + $0x2f8] sm:$0xf]
  %v231 = vld [vmem:[%s1 + $0x2fc] sm:$0xf]
  %v232 = vld [vmem:[%s1 + $0x300] sm:$0xf]
  %v233 = vld [vmem:[%s1 + $0x304] sm:$0xf]
  %v234 = vld [vmem:[%s1 + $0x308] sm:$0xf]
  %v235 = vld [vmem:[%s1 + $0x30c] sm:$0xf]
  %v236 = vld [vmem:[%s1 + $0x310] sm:$0xf]
  %v237 = vld [vmem:[%s1 + $0x314] sm:$0xf]
  %v238 = vld [vmem:[%s1 + $0x318] sm:$0xf]
  %v239 = vld [vmem:[%s1 + $0x31c] sm:$0xf]
  %v240 = vld [vmem:[%s1 + $0x320] sm:$0xf]
  %v241 = vld [vmem:[%s1 + $0x324] sm:$0xf]
  %v242 = vld [vmem:[%s1 + $0x328] sm:$0xf]
  %v243 = vld [vmem:[%s1 + $0x32c] sm:$0xf]
  %v244 = vld [vmem:[%s1 + $0x330] sm:$0xf]
  %v245 = vld [vmem:[%s1 + $0x334] sm:$0xf]
  %v246 = vld [vmem:[%s1 + $0x338] sm:$0xf]
  %v247 = vld [vmem:[%s1 + $0x33c] sm:$0xf]
  %v276 = vunpack.c.l.b16 %v12
  %v277 = vunpack.c.h.b16 %v12
  %v278 = vunpack.c.l.b16 %v13
  %v279 = vunpack.c.h.b16 %v13
  %v280 = vunpack.c.l.b16 %v14
  %v281 = vunpack.c.h.b16 %v14
  %v282 = vunpack.c.l.b16 %v15
  %v283 = vunpack.c.h.b16 %v15
  %v284 = vunpack.c.l.b16 %v16
  %v285 = vunpack.c.h.b16 %v16
  %v286 = vunpack.c.l.b16 %v17
  %v287 = vunpack.c.h.b16 %v17
  %v288 = vunpack.c.l.b16 %v18
  %v289 = vunpack.c.l.b16 %v19
  %v290 = vunpack.c.h.b16 %v19
  %v291 = vunpack.c.l.b16 %v20
  %v292 = vunpack.c.h.b16 %v20
  %v293 = vunpack.c.l.b16 %v21
  %v294 = vunpack.c.h.b16 %v21
  %v295 = vunpack.c.l.b16 %v22
  %v296 = vunpack.c.h.b16 %v22
  %v297 = vunpack.c.l.b16 %v23
  %v298 = vunpack.c.h.b16 %v23
  %v299 = vunpack.c.l.b16 %v24
  %v300 = vunpack.c.h.b16 %v24
  %v301 = vunpack.c.l.b16 %v25
  %v302 = vunpack.c.l.b16 %v26
  %v303 = vunpack.c.h.b16 %v26
  %v304 = vunpack.c.l.b16 %v27
  %v305 = vunpack.c.h.b16 %v27
  %v306 = vunpack.c.l.b16 %v28
  %v307 = vunpack.c.h.b16 %v28
  %v308 = vunpack.c.l.b16 %v29
  %v309 = vunpack.c.h.b16 %v29
  %v310 = vunpack.c.l.b16 %v30
  %v311 = vunpack.c.h.b16 %v30
  %v312 = vunpack.c.l.b16 %v31
  %v313 = vunpack.c.h.b16 %v31
  %v314 = vunpack.c.l.b16 %v32
  %v315 = vunpack.c.l.b16 %v33
  %v316 = vunpack.c.h.b16 %v33
  %v317 = vunpack.c.l.b16 %v34
  %v318 = vunpack.c.h.b16 %v34
  %v319 = vunpack.c.l.b16 %v35
  %v320 = vunpack.c.h.b16 %v35
  %v321 = vunpack.c.l.b16 %v36
  %v322 = vunpack.c.h.b16 %v36
  %v323 = vunpack.c.l.b16 %v37
  %v324 = vunpack.c.h.b16 %v37
  %v325 = vunpack.c.l.b16 %v38
  %v326 = vunpack.c.h.b16 %v38
  %v327 = vunpack.c.l.b16 %v39
  %v328 = vpack.c.b16 %v289, %v276
  %v329 = vpack.c.b16 %v290, %v277
  %v330 = vpack.c.b16 %v291, %v278
  %v331 = vpack.c.b16 %v292, %v279
  %v332 = vpack.c.b16 %v293, %v280
  %v333 = vpack.c.b16 %v294, %v281
  %v334 = vpack.c.b16 %v295, %v282
  %v335 = vpack.c.b16 %v296, %v283
  %v336 = vpack.c.b16 %v297, %v284
  %v337 = vpack.c.b16 %v298, %v285
  %v338 = vpack.c.b16 %v299, %v286
  %v339 = vpack.c.b16 %v300, %v287
  %v340 = vpack.c.b16 %v301, %v288
  %v341 = vpack.c.b16 %v315, %v302
  %v342 = vpack.c.b16 %v316, %v303
  %v343 = vpack.c.b16 %v317, %v304
  %v344 = vpack.c.b16 %v318, %v305
  %v345 = vpack.c.b16 %v319, %v306
  %v346 = vpack.c.b16 %v320, %v307
  %v347 = vpack.c.b16 %v321, %v308
  %v348 = vpack.c.b16 %v322, %v309
  %v349 = vpack.c.b16 %v323, %v310
  %v350 = vpack.c.b16 %v324, %v311
  %v351 = vpack.c.b16 %v325, %v312
  %v352 = vpack.c.b16 %v326, %v313
  %v353 = vpack.c.b16 %v327, %v314
  %v588 = vunpack.c.l.b16 %v40
  %v589 = vunpack.c.l.b16 %v41
  %v590 = vunpack.c.l.b16 %v42
  %v591 = vunpack.c.l.b16 %v43
  %v592 = vunpack.c.l.b16 %v44
  %v593 = vunpack.c.l.b16 %v45
  %v594 = vunpack.c.l.b16 %v46
  %v595 = vunpack.c.l.b16 %v47
  %v596 = vunpack.c.l.b16 %v48
  %v597 = vunpack.c.l.b16 %v49
  %v598 = vunpack.c.l.b16 %v50
  %v599 = vunpack.c.l.b16 %v51
  %v600 = vunpack.c.l.b16 %v52
  %v601 = vunpack.c.l.b16 %v53
  %v602 = vunpack.c.l.b16 %v54
  %v603 = vunpack.c.l.b16 %v55
  %v604 = vunpack.c.l.b16 %v56
  %v605 = vunpack.c.l.b16 %v57
  %v606 = vunpack.c.l.b16 %v58
  %v607 = vunpack.c.l.b16 %v59
  %v608 = vunpack.c.l.b16 %v60
  %v609 = vunpack.c.l.b16 %v61
  %v610 = vunpack.c.l.b16 %v62
  %v611 = vunpack.c.l.b16 %v63
  %v612 = vunpack.c.l.b16 %v64
  %v613 = vunpack.c.l.b16 %v65
  %v614 = vunpack.c.l.b16 %v66
  %v615 = vunpack.c.l.b16 %v67
  %v616 = vunpack.c.l.b16 %v68
  %v617 = vunpack.c.l.b16 %v69
  %v618 = vunpack.c.l.b16 %v70
  %v619 = vunpack.c.l.b16 %v71
  %v620 = vunpack.c.l.b16 %v72
  %v621 = vunpack.c.l.b16 %v73
  %v622 = vunpack.c.l.b16 %v74
  %v623 = vunpack.c.l.b16 %v75
  %v624 = vunpack.c.l.b16 %v76
  %v625 = vunpack.c.l.b16 %v77
  %v626 = vunpack.c.l.b16 %v78
  %v627 = vunpack.c.l.b16 %v79
  %v628 = vunpack.c.l.b16 %v80
  %v629 = vunpack.c.l.b16 %v81
  %v630 = vunpack.c.l.b16 %v82
  %v631 = vunpack.c.l.b16 %v83
  %v632 = vunpack.c.l.b16 %v84
  %v633 = vunpack.c.l.b16 %v85
  %v634 = vunpack.c.l.b16 %v86
  %v635 = vunpack.c.l.b16 %v87
  %v636 = vunpack.c.l.b16 %v88
  %v637 = vunpack.c.l.b16 %v89
  %v638 = vunpack.c.l.b16 %v90
  %v639 = vunpack.c.l.b16 %v91
  %v640 = vunpack.c.l.b16 %v92
  %v641 = vunpack.c.l.b16 %v93
  %v642 = vunpack.c.l.b16 %v94
  %v643 = vunpack.c.l.b16 %v95
  %v644 = vunpack.c.l.b16 %v96
  %v645 = vunpack.c.l.b16 %v97
  %v646 = vunpack.c.l.b16 %v98
  %v647 = vunpack.c.l.b16 %v99
  %v648 = vunpack.c.l.b16 %v100
  %v649 = vunpack.c.l.b16 %v101
  %v650 = vunpack.c.l.b16 %v102
  %v651 = vunpack.c.l.b16 %v103
  %v652 = vunpack.c.l.b16 %v104
  %v653 = vunpack.c.l.b16 %v105
  %v654 = vunpack.c.l.b16 %v106
  %v655 = vunpack.c.l.b16 %v107
  %v656 = vunpack.c.l.b16 %v108
  %v657 = vunpack.c.l.b16 %v109
  %v658 = vunpack.c.l.b16 %v110
  %v659 = vunpack.c.l.b16 %v111
  %v660 = vunpack.c.l.b16 %v112
  %v661 = vunpack.c.l.b16 %v113
  %v662 = vunpack.c.l.b16 %v114
  %v663 = vunpack.c.l.b16 %v115
  %v664 = vunpack.c.l.b16 %v116
  %v665 = vunpack.c.l.b16 %v117
  %v666 = vunpack.c.l.b16 %v118
  %v667 = vunpack.c.l.b16 %v119
  %v668 = vunpack.c.l.b16 %v120
  %v669 = vunpack.c.l.b16 %v121
  %v670 = vunpack.c.l.b16 %v122
  %v671 = vunpack.c.l.b16 %v123
  %v672 = vunpack.c.l.b16 %v124
  %v673 = vunpack.c.l.b16 %v125
  %v674 = vunpack.c.l.b16 %v126
  %v675 = vunpack.c.l.b16 %v127
  %v676 = vunpack.c.l.b16 %v128
  %v677 = vunpack.c.l.b16 %v129
  %v678 = vunpack.c.l.b16 %v130
  %v679 = vunpack.c.l.b16 %v131
  %v680 = vunpack.c.l.b16 %v132
  %v681 = vunpack.c.l.b16 %v133
  %v682 = vunpack.c.l.b16 %v134
  %v683 = vunpack.c.l.b16 %v135
  %v684 = vunpack.c.l.b16 %v136
  %v685 = vunpack.c.l.b16 %v137
  %v686 = vunpack.c.l.b16 %v138
  %v687 = vunpack.c.l.b16 %v139
  %v688 = vunpack.c.l.b16 %v140
  %v689 = vunpack.c.l.b16 %v141
  %v690 = vunpack.c.l.b16 %v142
  %v691 = vunpack.c.l.b16 %v143
  %v692 = vunpack.c.l.b16 %v144
  %v693 = vunpack.c.l.b16 %v145
  %v694 = vunpack.c.l.b16 %v146
  %v695 = vunpack.c.l.b16 %v147
  %v696 = vunpack.c.l.b16 %v148
  %v697 = vunpack.c.l.b16 %v149
  %v698 = vunpack.c.l.b16 %v150
  %v699 = vunpack.c.l.b16 %v151
  %v700 = vunpack.c.l.b16 %v152
  %v701 = vunpack.c.l.b16 %v153
  %v702 = vunpack.c.l.b16 %v154
  %v703 = vunpack.c.l.b16 %v155
  %v704 = vunpack.c.l.b16 %v156
  %v705 = vunpack.c.l.b16 %v157
  %v706 = vunpack.c.l.b16 %v158
  %v707 = vunpack.c.l.b16 %v159
  %v708 = vunpack.c.l.b16 %v160
  %v709 = vunpack.c.l.b16 %v161
  %v710 = vunpack.c.l.b16 %v162
  %v711 = vunpack.c.l.b16 %v163
  %v712 = vunpack.c.l.b16 %v164
  %v713 = vunpack.c.l.b16 %v165
  %v714 = vunpack.c.l.b16 %v166
  %v715 = vunpack.c.l.b16 %v167
  %v716 = vunpack.c.l.b16 %v168
  %v717 = vunpack.c.l.b16 %v169
  %v718 = vunpack.c.l.b16 %v170
  %v719 = vunpack.c.l.b16 %v171
  %v720 = vunpack.c.l.b16 %v172
  %v721 = vunpack.c.l.b16 %v173
  %v722 = vunpack.c.l.b16 %v174
  %v723 = vunpack.c.l.b16 %v175
  %v724 = vunpack.c.l.b16 %v176
  %v725 = vunpack.c.l.b16 %v177
  %v726 = vunpack.c.l.b16 %v178
  %v727 = vunpack.c.l.b16 %v179
  %v728 = vunpack.c.l.b16 %v180
  %v729 = vunpack.c.l.b16 %v181
  %v730 = vunpack.c.l.b16 %v182
  %v731 = vunpack.c.l.b16 %v183
  %v732 = vunpack.c.l.b16 %v184
  %v733 = vunpack.c.l.b16 %v185
  %v734 = vunpack.c.l.b16 %v186
  %v735 = vunpack.c.l.b16 %v187
  %v736 = vunpack.c.l.b16 %v188
  %v737 = vunpack.c.l.b16 %v189
  %v738 = vunpack.c.l.b16 %v190
  %v739 = vunpack.c.l.b16 %v191
  %v740 = vunpack.c.l.b16 %v192
  %v741 = vunpack.c.l.b16 %v193
  %v742 = vunpack.c.l.b16 %v194
  %v743 = vunpack.c.l.b16 %v195
  %v744 = vunpack.c.l.b16 %v196
  %v745 = vunpack.c.l.b16 %v197
  %v746 = vunpack.c.l.b16 %v198
  %v747 = vunpack.c.l.b16 %v199
  %v748 = vunpack.c.l.b16 %v200
  %v749 = vunpack.c.l.b16 %v201
  %v750 = vunpack.c.l.b16 %v202
  %v751 = vunpack.c.l.b16 %v203
  %v752 = vunpack.c.l.b16 %v204
  %v753 = vunpack.c.l.b16 %v205
  %v754 = vunpack.c.l.b16 %v206
  %v755 = vunpack.c.l.b16 %v207
  %v756 = vunpack.c.l.b16 %v208
  %v757 = vunpack.c.l.b16 %v209
  %v758 = vunpack.c.l.b16 %v210
  %v759 = vunpack.c.l.b16 %v211
  %v760 = vunpack.c.l.b16 %v212
  %v761 = vunpack.c.l.b16 %v213
  %v762 = vunpack.c.l.b16 %v214
  %v763 = vunpack.c.l.b16 %v215
  %v764 = vunpack.c.l.b16 %v216
  %v765 = vunpack.c.l.b16 %v217
  %v766 = vunpack.c.l.b16 %v218
  %v767 = vunpack.c.l.b16 %v219
  %v768 = vunpack.c.l.b16 %v220
  %v769 = vunpack.c.l.b16 %v221
  %v770 = vunpack.c.l.b16 %v222
  %v771 = vunpack.c.l.b16 %v223
  %v772 = vunpack.c.l.b16 %v224
  %v773 = vunpack.c.l.b16 %v225
  %v774 = vunpack.c.l.b16 %v226
  %v775 = vunpack.c.l.b16 %v227
  %v776 = vunpack.c.l.b16 %v228
  %v777 = vunpack.c.l.b16 %v229
  %v778 = vunpack.c.l.b16 %v230
  %v779 = vunpack.c.l.b16 %v231
  %v780 = vunpack.c.l.b16 %v232
  %v781 = vunpack.c.l.b16 %v233
  %v782 = vunpack.c.l.b16 %v234
  %v783 = vunpack.c.l.b16 %v235
  %v784 = vunpack.c.l.b16 %v236
  %v785 = vunpack.c.l.b16 %v237
  %v786 = vunpack.c.l.b16 %v238
  %v787 = vunpack.c.l.b16 %v239
  %v788 = vunpack.c.l.b16 %v240
  %v789 = vunpack.c.l.b16 %v241
  %v790 = vunpack.c.l.b16 %v242
  %v791 = vunpack.c.l.b16 %v243
  %v792 = vunpack.c.l.b16 %v244
  %v793 = vunpack.c.l.b16 %v245
  %v794 = vunpack.c.l.b16 %v246
  %v795 = vunpack.c.l.b16 %v247
  %v796 = vpack.c.b16 %v589, %v588
  %v797 = vpack.c.b16 %v591, %v590
  %v798 = vpack.c.b16 %v593, %v592
  %v799 = vpack.c.b16 %v595, %v594
  %v800 = vpack.c.b16 %v597, %v596
  %v801 = vpack.c.b16 %v599, %v598
  %v802 = vpack.c.b16 %v601, %v600
  %v803 = vpack.c.b16 %v603, %v602
  %v804 = vpack.c.b16 %v605, %v604
  %v805 = vpack.c.b16 %v607, %v606
  %v806 = vpack.c.b16 %v609, %v608
  %v807 = vpack.c.b16 %v611, %v610
  %v808 = vpack.c.b16 %v613, %v612
  %v809 = vpack.c.b16 %v615, %v614
  %v810 = vpack.c.b16 %v617, %v616
  %v811 = vpack.c.b16 %v619, %v618
  %v812 = vpack.c.b16 %v621, %v620
  %v813 = vpack.c.b16 %v623, %v622
  %v814 = vpack.c.b16 %v625, %v624
  %v815 = vpack.c.b16 %v627, %v626
  %v816 = vpack.c.b16 %v629, %v628
  %v817 = vpack.c.b16 %v631, %v630
  %v818 = vpack.c.b16 %v633, %v632
  %v819 = vpack.c.b16 %v635, %v634
  %v820 = vpack.c.b16 %v637, %v636
  %v821 = vpack.c.b16 %v639, %v638
  %v822 = vpack.c.b16 %v641, %v640
  %v823 = vpack.c.b16 %v643, %v642
  %v824 = vpack.c.b16 %v645, %v644
  %v825 = vpack.c.b16 %v647, %v646
  %v826 = vpack.c.b16 %v649, %v648
  %v827 = vpack.c.b16 %v651, %v650
  %v828 = vpack.c.b16 %v653, %v652
  %v829 = vpack.c.b16 %v655, %v654
  %v830 = vpack.c.b16 %v657, %v656
  %v831 = vpack.c.b16 %v659, %v658
  %v832 = vpack.c.b16 %v661, %v660
  %v833 = vpack.c.b16 %v663, %v662
  %v834 = vpack.c.b16 %v665, %v664
  %v835 = vpack.c.b16 %v667, %v666
  %v836 = vpack.c.b16 %v669, %v668
  %v837 = vpack.c.b16 %v671, %v670
  %v838 = vpack.c.b16 %v673, %v672
  %v839 = vpack.c.b16 %v675, %v674
  %v840 = vpack.c.b16 %v677, %v676
  %v841 = vpack.c.b16 %v679, %v678
  %v842 = vpack.c.b16 %v681, %v680
  %v843 = vpack.c.b16 %v683, %v682
  %v844 = vpack.c.b16 %v685, %v684
  %v845 = vpack.c.b16 %v687, %v686
  %v846 = vpack.c.b16 %v689, %v688
  %v847 = vpack.c.b16 %v691, %v690
  %v848 = vpack.c.b16 %v693, %v692
  %v849 = vpack.c.b16 %v695, %v694
  %v850 = vpack.c.b16 %v697, %v696
  %v851 = vpack.c.b16 %v699, %v698
  %v852 = vpack.c.b16 %v701, %v700
  %v853 = vpack.c.b16 %v703, %v702
  %v854 = vpack.c.b16 %v705, %v704
  %v855 = vpack.c.b16 %v707, %v706
  %v856 = vpack.c.b16 %v709, %v708
  %v857 = vpack.c.b16 %v711, %v710
  %v858 = vpack.c.b16 %v713, %v712
  %v859 = vpack.c.b16 %v715, %v714
  %v860 = vpack.c.b16 %v717, %v716
  %v861 = vpack.c.b16 %v719, %v718
  %v862 = vpack.c.b16 %v721, %v720
  %v863 = vpack.c.b16 %v723, %v722
  %v864 = vpack.c.b16 %v725, %v724
  %v865 = vpack.c.b16 %v727, %v726
  %v866 = vpack.c.b16 %v729, %v728
  %v867 = vpack.c.b16 %v731, %v730
  %v868 = vpack.c.b16 %v733, %v732
  %v869 = vpack.c.b16 %v735, %v734
  %v870 = vpack.c.b16 %v737, %v736
  %v871 = vpack.c.b16 %v739, %v738
  %v872 = vpack.c.b16 %v741, %v740
  %v873 = vpack.c.b16 %v743, %v742
  %v874 = vpack.c.b16 %v745, %v744
  %v875 = vpack.c.b16 %v747, %v746
  %v876 = vpack.c.b16 %v749, %v748
  %v877 = vpack.c.b16 %v751, %v750
  %v878 = vpack.c.b16 %v753, %v752
  %v879 = vpack.c.b16 %v755, %v754
  %v880 = vpack.c.b16 %v757, %v756
  %v881 = vpack.c.b16 %v759, %v758
  %v882 = vpack.c.b16 %v761, %v760
  %v883 = vpack.c.b16 %v763, %v762
  %v884 = vpack.c.b16 %v765, %v764
  %v885 = vpack.c.b16 %v767, %v766
  %v886 = vpack.c.b16 %v769, %v768
  %v887 = vpack.c.b16 %v771, %v770
  %v888 = vpack.c.b16 %v773, %v772
  %v889 = vpack.c.b16 %v775, %v774
  %v890 = vpack.c.b16 %v777, %v776
  %v891 = vpack.c.b16 %v779, %v778
  %v892 = vpack.c.b16 %v781, %v780
  %v893 = vpack.c.b16 %v783, %v782
  %v894 = vpack.c.b16 %v785, %v784
  %v895 = vpack.c.b16 %v787, %v786
  %v896 = vpack.c.b16 %v789, %v788
  %v897 = vpack.c.b16 %v791, %v790
  %v898 = vpack.c.b16 %v793, %v792
  %v899 = vpack.c.b16 %v795, %v794
  %1004 = vmatprep.subr.bf16.mxu0 0
  %1005 = vmatpush1.bf16.msra.mxu0 %v796
  %1006 = vmatprep.subr.bf16.mxu0 0
  %1007 = vmatpush1.bf16.msra.mxu0 %v797
  %1008 = vmatprep.subr.bf16.mxu0 0
  %1009 = vmatpush1.bf16.msra.mxu0 %v798
  %1010 = vmatprep.subr.bf16.mxu0 0
  %1011 = vmatpush1.bf16.msra.mxu0 %v799
  %1012 = vmatprep.subr.bf16.mxu0 0
  %1013 = vmatpush1.bf16.msra.mxu0 %v800
  %1014 = vmatprep.subr.bf16.mxu0 0
  %1015 = vmatpush1.bf16.msra.mxu0 %v801
  %1016 = vmatprep.subr.bf16.mxu0 0
  %1017 = vmatpush1.bf16.msra.mxu0 %v802
  %1018 = vmatprep.subr.bf16.mxu0 0
  %1019 = vmatpush1.bf16.msra.mxu0 %v803
  %1020 = vmatprep.subr.bf16.mxu0 0
  %1021 = vmatpush1.bf16.msra.mxu0 %v804
  %1022 = vmatprep.subr.bf16.mxu0 0
  %1023 = vmatpush1.bf16.msra.mxu0 %v805
  %1024 = vmatprep.subr.bf16.mxu0 0
  %1025 = vmatpush1.bf16.msra.mxu0 %v806
  %1026 = vmatprep.subr.bf16.mxu0 0
  %1027 = vmatpush1.bf16.msra.mxu0 %v807
  %1028 = vmatprep.subr.bf16.mxu0 0
  %1029 = vmatpush1.bf16.msra.mxu0 %v808
  %1030 = vmatprep.subr.bf16.mxu0 0
  %1031 = vmatpush1.bf16.msra.mxu0 %v809
  %1032 = vmatprep.subr.bf16.mxu0 0
  %1033 = vmatpush1.bf16.msra.mxu0 %v810
  %1034 = vmatprep.subr.bf16.mxu0 0
  %1035 = vmatpush1.bf16.msra.mxu0 %v811
  %1036 = vmatprep.mubr.bf16.mxu0 %v329
  %1037 = vmatmul.mubr.bf16.gmra.mrb[0].mxu0 %v328
  %v1038 = vpop.f32.mrb[0].mxu0
  %v1039 = vadd.f32 0.0, %v1038
  %v1040 = vpop.f32.mrb[0].mxu0
  %v1041 = vpop.f32.mrb[0].mxu0
  %v1042 = vadd.f32 0.0, %v1041
  %v1043 = vpop.f32.mrb[0].mxu0
  %1044 = vmatprep.mubr.bf16.mxu0 %v342
  %1045 = vmatmul.mubr.bf16.gmra.mrb[0].mxu0 %v341
  %v1046 = vpop.f32.mrb[0].mxu0
  %v1047 = vadd.f32 0.0, %v1046
  %v1048 = vpop.f32.mrb[0].mxu0
  %v1049 = vpop.f32.mrb[0].mxu0
  %v1050 = vadd.f32 0.0, %v1049
  %v1051 = vpop.f32.mrb[0].mxu0
  %1052 = vdwg.mxu0
  %1053 = vmatprep.subr.bf16.mxu0 0
  %1054 = vmatpush1.bf16.msra.mxu0 %v812
  %1055 = vmatprep.subr.bf16.mxu0 0
  %1056 = vmatpush1.bf16.msra.mxu0 %v813
  %1057 = vmatprep.subr.bf16.mxu0 0
  %1058 = vmatpush1.bf16.msra.mxu0 %v814
  %1059 = vmatprep.subr.bf16.mxu0 0
  %1060 = vmatpush1.bf16.msra.mxu0 %v815
  %1061 = vmatprep.subr.bf16.mxu0 0
  %1062 = vmatpush1.bf16.msra.mxu0 %v816
  %1063 = vmatprep.subr.bf16.mxu0 0
  %1064 = vmatpush1.bf16.msra.mxu0 %v817
  %1065 = vmatprep.subr.bf16.mxu0 0
  %1066 = vmatpush1.bf16.msra.mxu0 %v818
  %1067 = vmatprep.subr.bf16.mxu0 0
  %1068 = vmatpush1.bf16.msra.mxu0 %v819
  %1069 = vmatprep.subr.bf16.mxu0 0
  %1070 = vmatpush1.bf16.msra.mxu0 %v820
  %1071 = vmatprep.subr.bf16.mxu0 0
  %1072 = vmatpush1.bf16.msra.mxu0 %v821
  %1073 = vmatprep.subr.bf16.mxu0 0
  %1074 = vmatpush1.bf16.msra.mxu0 %v822
  %1075 = vmatprep.subr.bf16.mxu0 0
  %1076 = vmatpush1.bf16.msra.mxu0 %v823
  %1077 = vmatprep.subr.bf16.mxu0 0
  %1078 = vmatpush1.bf16.msra.mxu0 %v824
  %1079 = vmatprep.subr.bf16.mxu0 0
  %1080 = vmatpush1.bf16.msra.mxu0 %v825
  %1081 = vmatprep.subr.bf16.mxu0 0
  %1082 = vmatpush1.bf16.msra.mxu0 %v826
  %1083 = vmatprep.subr.bf16.mxu0 0
  %1084 = vmatpush1.bf16.msra.mxu0 %v827
  %1085 = vmatprep.mubr.bf16.mxu0 %v331
  %1086 = vmatmul.mubr.bf16.gmra.mrb[0].mxu0 %v330
  %v1087 = vpop.f32.mrb[0].mxu0
  %v1088 = vadd.f32 %v1039, %v1087
  %v1089 = vpop.f32.mrb[0].mxu0
  %v1090 = vpop.f32.mrb[0].mxu0
  %v1091 = vadd.f32 %v1042, %v1090
  %v1092 = vpop.f32.mrb[0].mxu0
  %1093 = vmatprep.mubr.bf16.mxu0 %v344
  %1094 = vmatmul.mubr.bf16.gmra.mrb[0].mxu0 %v343
  %v1095 = vpop.f32.mrb[0].mxu0
  %v1096 = vadd.f32 %v1047, %v1095
  %v1097 = vpop.f32.mrb[0].mxu0
  %v1098 = vpop.f32.mrb[0].mxu0
  %v1099 = vadd.f32 %v1050, %v1098
  %v1100 = vpop.f32.mrb[0].mxu0
  %1101 = vdwg.mxu0
  %1102 = vmatprep.subr.bf16.mxu0 0
  %1103 = vmatpush1.bf16.msra.mxu0 %v828
  %1104 = vmatprep.subr.bf16.mxu0 0
  %1105 = vmatpush1.bf16.msra.mxu0 %v829
  %1106 = vmatprep.subr.bf16.mxu0 0
  %1107 = vmatpush1.bf16.msra.mxu0 %v830
  %1108 = vmatprep.subr.bf16.mxu0 0
  %1109 = vmatpush1.bf16.msra.mxu0 %v831
  %1110 = vmatprep.subr.bf16.mxu0 0
  %1111 = vmatpush1.bf16.msra.mxu0 %v832
  %1112 = vmatprep.subr.bf16.mxu0 0
  %1113 = vmatpush1.bf16.msra.mxu0 %v833
  %1114 = vmatprep.subr.bf16.mxu0 0
  %1115 = vmatpush1.bf16.msra.mxu0 %v834
  %1116 = vmatprep.subr.bf16.mxu0 0
  %1117 = vmatpush1.bf16.msra.mxu0 %v835
  %1118 = vmatprep.subr.bf16.mxu0 0
  %1119 = vmatpush1.bf16.msra.mxu0 %v836
  %1120 = vmatprep.subr.bf16.mxu0 0
  %1121 = vmatpush1.bf16.msra.mxu0 %v837
  %1122 = vmatprep.subr.bf16.mxu0 0
  %1123 = vmatpush1.bf16.msra.mxu0 %v838
  %1124 = vmatprep.subr.bf16.mxu0 0
  %1125 = vmatpush1.bf16.msra.mxu0 %v839
  %1126 = vmatprep.subr.bf16.mxu0 0
  %1127 = vmatpush1.bf16.msra.mxu0 %v840
  %1128 = vmatprep.subr.bf16.mxu0 0
  %1129 = vmatpush1.bf16.msra.mxu0 %v841
  %1130 = vmatprep.subr.bf16.mxu0 0
  %1131 = vmatpush1.bf16.msra.mxu0 %v842
  %1132 = vmatprep.subr.bf16.mxu0 0
  %1133 = vmatpush1.bf16.msra.mxu0 %v843
  %1134 = vmatprep.mubr.bf16.mxu0 %v333
  %1135 = vmatmul.mubr.bf16.gmra.mrb[0].mxu0 %v332
  %v1136 = vpop.f32.mrb[0].mxu0
  %v1137 = vadd.f32 %v1088, %v1136
  %v1138 = vpop.f32.mrb[0].mxu0
  %v1139 = vpop.f32.mrb[0].mxu0
  %v1140 = vadd.f32 %v1091, %v1139
  %v1141 = vpop.f32.mrb[0].mxu0
  %1142 = vmatprep.mubr.bf16.mxu0 %v346
  %1143 = vmatmul.mubr.bf16.gmra.mrb[0].mxu0 %v345
  %v1144 = vpop.f32.mrb[0].mxu0
  %v1145 = vadd.f32 %v1096, %v1144
  %v1146 = vpop.f32.mrb[0].mxu0
  %v1147 = vpop.f32.mrb[0].mxu0
  %v1148 = vadd.f32 %v1099, %v1147
  %v1149 = vpop.f32.mrb[0].mxu0
  %1150 = vdwg.mxu0
  %1151 = vmatprep.subr.bf16.mxu0 0
  %1152 = vmatpush1.bf16.msra.mxu0 %v844
  %1153 = vmatprep.subr.bf16.mxu0 0
  %1154 = vmatpush1.bf16.msra.mxu0 %v845
  %1155 = vmatprep.subr.bf16.mxu0 0
  %1156 = vmatpush1.bf16.msra.mxu0 %v846
  %1157 = vmatprep.subr.bf16.mxu0 0
  %1158 = vmatpush1.bf16.msra.mxu0 %v847
  %1159 = vmatprep.subr.bf16.mxu0 0
  %1160 = vmatpush1.bf16.msra.mxu0 %v848
  %1161 = vmatprep.subr.bf16.mxu0 0
  %1162 = vmatpush1.bf16.msra.mxu0 %v849
  %1163 = vmatprep.subr.bf16.mxu0 0
  %1164 = vmatpush1.bf16.msra.mxu0 %v850
  %1165 = vmatprep.subr.bf16.mxu0 0
  %1166 = vmatpush1.bf16.msra.mxu0 %v851
  %1167 = vmatprep.subr.bf16.mxu0 0
  %1168 = vmatpush1.bf16.msra.mxu0 %v852
  %1169 = vmatprep.subr.bf16.mxu0 0
  %1170 = vmatpush1.bf16.msra.mxu0 %v853
  %1171 = vmatprep.subr.bf16.mxu0 0
  %1172 = vmatpush1.bf16.msra.mxu0 %v854
  %1173 = vmatprep.subr.bf16.mxu0 0
  %1174 = vmatpush1.bf16.msra.mxu0 %v855
  %1175 = vmatprep.subr.bf16.mxu0 0
  %1176 = vmatpush1.bf16.msra.mxu0 %v856
  %1177 = vmatprep.subr.bf16.mxu0 0
  %1178 = vmatpush1.bf16.msra.mxu0 %v857
  %1179 = vmatprep.subr.bf16.mxu0 0
  %1180 = vmatpush1.bf16.msra.mxu0 %v858
  %1181 = vmatprep.subr.bf16.mxu0 0
  %1182 = vmatpush1.bf16.msra.mxu0 %v859
  %1183 = vmatprep.mubr.bf16.mxu0 %v335
  %1184 = vmatmul.mubr.bf16.gmra.mrb[0].mxu0 %v334
  %v1185 = vpop.f32.mrb[0].mxu0
  %v1186 = vadd.f32 %v1137, %v1185
  %v1187 = vpop.f32.mrb[0].mxu0
  %v1188 = vpop.f32.mrb[0].mxu0
  %v1189 = vadd.f32 %v1140, %v1188
  %v1190 = vpop.f32.mrb[0].mxu0
  %1191 = vmatprep.mubr.bf16.mxu0 %v348
  %1192 = vmatmul.mubr.bf16.gmra.mrb[0].mxu0 %v347
  %v1193 = vpop.f32.mrb[0].mxu0
  %v1194 = vadd.f32 %v1145, %v1193
  %v1195 = vpop.f32.mrb[0].mxu0
  %v1196 = vpop.f32.mrb[0].mxu0
  %v1197 = vadd.f32 %v1148, %v1196
  %v1198 = vpop.f32.mrb[0].mxu0
  %1199 = vdwg.mxu0
  %1200 = vmatprep.subr.bf16.mxu0 0
  %1201 = vmatpush1.bf16.msra.mxu0 %v860
  %1202 = vmatprep.subr.bf16.mxu0 0
  %1203 = vmatpush1.bf16.msra.mxu0 %v861
  %1204 = vmatprep.subr.bf16.mxu0 0
  %1205 = vmatpush1.bf16.msra.mxu0 %v862
  %1206 = vmatprep.subr.bf16.mxu0 0
  %1207 = vmatpush1.bf16.msra.mxu0 %v863
  %1208 = vmatprep.subr.bf16.mxu0 0
  %1209 = vmatpush1.bf16.msra.mxu0 %v864
  %1210 = vmatprep.subr.bf16.mxu0 0
  %1211 = vmatpush1.bf16.msra.mxu0 %v865
  %1212 = vmatprep.subr.bf16.mxu0 0
  %1213 = vmatpush1.bf16.msra.mxu0 %v866
  %1214 = vmatprep.subr.bf16.mxu0 0
  %1215 = vmatpush1.bf16.msra.mxu0 %v867
  %1216 = vmatprep.subr.bf16.mxu0 0
  %1217 = vmatpush1.bf16.msra.mxu0 %v868
  %1218 = vmatprep.subr.bf16.mxu0 0
  %1219 = vmatpush1.bf16.msra.mxu0 %v869
  %1220 = vmatprep.subr.bf16.mxu0 0
  %1221 = vmatpush1.bf16.msra.mxu0 %v870
  %1222 = vmatprep.subr.bf16.mxu0 0
  %1223 = vmatpush1.bf16.msra.mxu0 %v871
  %1224 = vmatprep.subr.bf16.mxu0 0
  %1225 = vmatpush1.bf16.msra.mxu0 %v872
  %1226 = vmatprep.subr.bf16.mxu0 0
  %1227 = vmatpush1.bf16.msra.mxu0 %v873
  %1228 = vmatprep.subr.bf16.mxu0 0
  %1229 = vmatpush1.bf16.msra.mxu0 %v874
  %1230 = vmatprep.subr.bf16.mxu0 0
  %1231 = vmatpush1.bf16.msra.mxu0 %v875
  %1232 = vmatprep.mubr.bf16.mxu0 %v337
  %1233 = vmatmul.mubr.bf16.gmra.mrb[0].mxu0 %v336
  %v1234 = vpop.f32.mrb[0].mxu0
  %v1235 = vadd.f32 %v1186, %v1234
  %v1236 = vpop.f32.mrb[0].mxu0
  %v1237 = vpop.f32.mrb[0].mxu0
  %v1238 = vadd.f32 %v1189, %v1237
  %v1239 = vpop.f32.mrb[0].mxu0
  %1240 = vmatprep.mubr.bf16.mxu0 %v350
  %1241 = vmatmul.mubr.bf16.gmra.mrb[0].mxu0 %v349
  %v1242 = vpop.f32.mrb[0].mxu0
  %v1243 = vadd.f32 %v1194, %v1242
  %v1244 = vpop.f32.mrb[0].mxu0
  %v1245 = vpop.f32.mrb[0].mxu0
  %v1246 = vadd.f32 %v1197, %v1245
  %v1247 = vpop.f32.mrb[0].mxu0
  %1248 = vdwg.mxu0
  %1249 = vmatprep.subr.bf16.mxu0 0
  %1250 = vmatpush1.bf16.msra.mxu0 %v876
  %1251 = vmatprep.subr.bf16.mxu0 0
  %1252 = vmatpush1.bf16.msra.mxu0 %v877
  %1253 = vmatprep.subr.bf16.mxu0 0
  %1254 = vmatpush1.bf16.msra.mxu0 %v878
  %1255 = vmatprep.subr.bf16.mxu0 0
  %1256 = vmatpush1.bf16.msra.mxu0 %v879
  %1257 = vmatprep.subr.bf16.mxu0 0
  %1258 = vmatpush1.bf16.msra.mxu0 %v880
  %1259 = vmatprep.subr.bf16.mxu0 0
  %1260 = vmatpush1.bf16.msra.mxu0 %v881
  %1261 = vmatprep.subr.bf16.mxu0 0
  %1262 = vmatpush1.bf16.msra.mxu0 %v882
  %1263 = vmatprep.subr.bf16.mxu0 0
  %1264 = vmatpush1.bf16.msra.mxu0 %v883
  %1265 = vmatprep.subr.bf16.mxu0 0
  %1266 = vmatpush1.bf16.msra.mxu0 %v884
  %1267 = vmatprep.subr.bf16.mxu0 0
  %1268 = vmatpush1.bf16.msra.mxu0 %v885
  %1269 = vmatprep.subr.bf16.mxu0 0
  %1270 = vmatpush1.bf16.msra.mxu0 %v886
  %1271 = vmatprep.subr.bf16.mxu0 0
  %1272 = vmatpush1.bf16.msra.mxu0 %v887
  %1273 = vmatprep.subr.bf16.mxu0 0
  %1274 = vmatpush1.bf16.msra.mxu0 %v888
  %1275 = vmatprep.subr.bf16.mxu0 0
  %1276 = vmatpush1.bf16.msra.mxu0 %v889
  %1277 = vmatprep.subr.bf16.mxu0 0
  %1278 = vmatpush1.bf16.msra.mxu0 %v890
  %1279 = vmatprep.subr.bf16.mxu0 0
  %1280 = vmatpush1.bf16.msra.mxu0 %v891
  %1281 = vmatprep.mubr.bf16.mxu0 %v339
  %1282 = vmatmul.mubr.bf16.gmra.mrb[0].mxu0 %v338
  %v1283 = vpop.f32.mrb[0].mxu0
  %v1284 = vadd.f32 %v1235, %v1283
  %v1285 = vpop.f32.mrb[0].mxu0
  %v1286 = vpop.f32.mrb[0].mxu0
  %v1287 = vadd.f32 %v1238, %v1286
  %v1288 = vpop.f32.mrb[0].mxu0
  %1289 = vmatprep.mubr.bf16.mxu0 %v352
  %1290 = vmatmul.mubr.bf16.gmra.mrb[0].mxu0 %v351
  %v1291 = vpop.f32.mrb[0].mxu0
  %v1292 = vadd.f32 %v1243, %v1291
  %v1293 = vpop.f32.mrb[0].mxu0
  %v1294 = vpop.f32.mrb[0].mxu0
  %v1295 = vadd.f32 %v1246, %v1294
  %v1296 = vpop.f32.mrb[0].mxu0
  %1297 = vdwg.mxu0
  %1298 = vmatprep.subr.bf16.mxu0 0
  %1299 = vmatpush1.bf16.msra.mxu0 %v892
  %1300 = vmatprep.subr.bf16.mxu0 0
  %1301 = vmatpush1.bf16.msra.mxu0 %v893
  %1302 = vmatprep.subr.bf16.mxu0 0
  %1303 = vmatpush1.bf16.msra.mxu0 %v894
  %1304 = vmatprep.subr.bf16.mxu0 0
  %1305 = vmatpush1.bf16.msra.mxu0 %v895
  %1306 = vmatprep.subr.bf16.mxu0 0
  %1307 = vmatpush1.bf16.msra.mxu0 %v896
  %1308 = vmatprep.subr.bf16.mxu0 0
  %1309 = vmatpush1.bf16.msra.mxu0 %v897
  %1310 = vmatprep.subr.bf16.mxu0 0
  %1311 = vmatpush1.bf16.msra.mxu0 %v898
  %1312 = vmatprep.subr.bf16.mxu0 0
  %1313 = vmatpush1.bf16.msra.mxu0 %v899
  %1314 = vmatprep.subr.bf16.mxu0 0
  %1315 = vmatpush1.bf16.msra.mxu0 0
  %1316 = vmatprep.subr.bf16.mxu0 0
  %1317 = vmatpush1.bf16.msra.mxu0 0
  %1318 = vmatprep.subr.bf16.mxu0 0
  %1319 = vmatpush1.bf16.msra.mxu0 0
  %1320 = vmatprep.subr.bf16.mxu0 0
  %1321 = vmatpush1.bf16.msra.mxu0 0
  %1322 = vmatprep.subr.bf16.mxu0 0
  %1323 = vmatpush1.bf16.msra.mxu0 0
  %1324 = vmatprep.subr.bf16.mxu0 0
  %1325 = vmatpush1.bf16.msra.mxu0 0
  %1326 = vmatprep.subr.bf16.mxu0 0
  %1327 = vmatpush1.bf16.msra.mxu0 0
  %1328 = vmatprep.subr.bf16.mxu0 0
  %1329 = vmatpush1.bf16.msra.mxu0 0
  %1330 = vmatprep.mubr.bf16.mxu0 0
  %1331 = vmatmul.mubr.bf16.gmra.mrb[0].mxu0 %v340
  %v1332 = vpop.f32.mrb[0].mxu0
  %v1333 = vadd.f32 %v1284, %v1332
  %v1334 = vpop.f32.mrb[0].mxu0
  %v1335 = vpop.f32.mrb[0].mxu0
  %v1336 = vadd.f32 %v1287, %v1335
  %v1337 = vpop.f32.mrb[0].mxu0
  %1338 = vmatprep.mubr.bf16.mxu0 0
  %1339 = vmatmul.mubr.bf16.gmra.mrb[0].mxu0 %v353
  %v1340 = vpop.f32.mrb[0].mxu0
  %v1341 = vadd.f32 %v1292, %v1340
  %v1342 = vpop.f32.mrb[0].mxu0
  %v1343 = vpop.f32.mrb[0].mxu0
  %v1344 = vadd.f32 %v1295, %v1343
  %v1345 = vpop.f32.mrb[0].mxu0
  %1346 = vdwg.mxu0
  %v1347 = vmul.f32 %v1333, 0.2
  %v1348 = vmul.f32 %v1336, 0.2
  %v1349 = vmul.f32 %v1341, 0.2
  %v1350 = vmul.f32 %v1344, 0.2
  %v1351 = vmax.f32 %v1333, %v1347
  %v1352 = vmax.f32 %v1336, %v1348
  %v1353 = vmax.f32 %v1341, %v1349
  %v1354 = vmax.f32 %v1344, %v1350
  %v1355 = vpack.c.bf16 %v1352, %v1351
  %v1356 = vpack.c.bf16 %v1354, %v1353
  %v1359 = vunpack.c.l.b16 %v1355
  %v1360 = vunpack.c.h.b16 %v1355
  %v1361 = vunpack.c.l.b16 %v1356
  %v1362 = vunpack.c.h.b16 %v1356
  %v1363 = vpack.c.b16 %v1359, %v1359
  %v1364 = vpack.c.b16 %v1360, %v1360
  %v1365 = vpack.c.b16 %v1361, %v1361
  %v1366 = vpack.c.b16 %v1362, %v1362
  %1371 = vst [vmem:[%s2] sm:$0xf] %v1363
  %1372 = vst [vmem:[%s2 + $0x4] sm:$0xf] %v1364
  %1373 = vst [vmem:[%s2 + $0x8] sm:$0xf] %v1365
  %1374 = vst [vmem:[%s2 + $0xc] sm:$0xf] %v1366
  // Predicated region
  $region10: #{discriminator_forward.4} parent=0 // pred_check
    _
  $region11: #{discriminator_forward.4} parent=0 // pred_check_branch
    %1376 = sbr.rel (0) target = $region13
  $region12: #{discriminator_forward.4} parent=0 // pred_region
    _
  $region13: #{discriminator_forward.4} parent=0 // pred_fallthru
    _
  // Predicated region
  $region14: #{discriminator_forward.4} parent=0 // pred_check
    _
  $region15: #{discriminator_forward.4} parent=0 // pred_check_branch
    %1378 = sbr.rel (0) target = $region17
  $region16: #{discriminator_forward.4} parent=0 // pred_region
    _
  $region17: #{discriminator_forward.4} parent=0 // pred_fallthru
    _

// kernel: discriminator_forward.5
$region0: #{discriminator_forward.5}
  #allocation0 [shape = 'u32[]', space=smem, size = 0x4, offset = 0x4, fixed_abs, tag = 'smem constant byte address 0x4 - core index']
  #allocation1 [shape = 'u32[144,128]{1,0:T(1,128)}', space=vmem, size = 0x12000, scoped, tag = 'internal scratch']
  #allocation2 [shape = 'f32[8,1024]{1,0:T(8,128)}', space=vmem, size = 0x8000, scoped, tag = 'scratch operand']
  %s0 = inlined_call_operand.vmem [shape: bf16[16,3200], index: 0, kind: input, shape index: {}]
  %s1 = inlined_call_operand.vmem [shape: bf16[3200,256], index: 1, kind: input, shape index: {}]
  %s2 = inlined_call_operand.vmem [shape: bf16[1024,256], index: 2, kind: input, shape index: {}]
  %s3 = inlined_call_operand.vmem [shape: bf16[256,256], index: 3, kind: input, shape index: {}]
  %s4 = inlined_call_operand.vmem [shape: f32[8,256], index: 4, kind: output, shape index: {}]
  %s5 = sld [smem:[#allocation0]]
  $region26: #{discriminator_forward.5} parent=0
    _
  %s7 = ssub.s32 1, %s5
  %s8 = scalar_select 0, %s7, %s5
  // Predicated region
  $region2: #{discriminator_forward.5} parent=0 // pred_check
    _
  $region3: #{discriminator_forward.5} parent=0 // pred_check_branch
    %10 = sbr.rel (0) target = $region5
  $region4: #{discriminator_forward.5} parent=0 // pred_region
    _
  $region5: #{discriminator_forward.5} parent=0 // pred_fallthru
    _
  // Predicated region
  $region6: #{discriminator_forward.5} parent=0 // pred_check
    _
  $region7: #{discriminator_forward.5} parent=0 // pred_check_branch
    %12 = sbr.rel (0) target = $region9
  $region8: #{discriminator_forward.5} parent=0 // pred_region
    _
  $region9: #{discriminator_forward.5} parent=0 // pred_fallthru
    _
  // Predicated region
  $region10: #{discriminator_forward.5} parent=0 // pred_check
    _
  $region11: #{discriminator_forward.5} parent=0 // pred_check_branch
    %14 = sbr.rel (0) target = $region13
  $region12: #{discriminator_forward.5} parent=0 // pred_region
    _
  $region13: #{discriminator_forward.5} parent=0 // pred_fallthru
    _
  // Predicated region
  $region14: #{discriminator_forward.5} parent=0 // pred_check
    _
  $region15: #{discriminator_forward.5} parent=0 // pred_check_branch
    %16 = sbr.rel (0) target = $region17
  $region16: #{discriminator_forward.5} parent=0 // pred_region
    _
  $region17: #{discriminator_forward.5} parent=0 // pred_fallthru
    _
  %v18 = vld [vmem:[%s0] sm:$0xff]
  %v19 = vld [vmem:[%s0 + $0x8] sm:$0xff]
  %v20 = vld [vmem:[%s0 + $0x10] sm:$0xff]
  %v21 = vld [vmem:[%s0 + $0x18] sm:$0xff]
  %v22 = vld [vmem:[%s0 + $0x20] sm:$0xff]
  %v23 = vld [vmem:[%s0 + $0x28] sm:$0xff]
  %v24 = vld [vmem:[%s0 + $0x30] sm:$0xff]
  %v25 = vld [vmem:[%s0 + $0x38] sm:$0xff]
  %v26 = vld [vmem:[%s0 + $0x40] sm:$0xff]
  %v27 = vld [vmem:[%s0 + $0x48] sm:$0xff]
  %v28 = vld [vmem:[%s0 + $0x50] sm:$0xff]
  %v29 = vld [vmem:[%s0 + $0x58] sm:$0xff]
  %v30 = vld [vmem:[%s0 + $0x60] sm:$0xf]
  %v31 = vld [vmem:[%s0 + $0x64] sm:$0xff]
  %v32 = vld [vmem:[%s0 + $0x6c] sm:$0xff]
  %v33 = vld [vmem:[%s0 + $0x74] sm:$0xff]
  %v34 = vld [vmem:[%s0 + $0x7c] sm:$0xff]
  %v35 = vld [vmem:[%s0 + $0x84] sm:$0xff]
  %v36 = vld [vmem:[%s0 + $0x8c] sm:$0xff]
  %v37 = vld [vmem:[%s0 + $0x94] sm:$0xff]
  %v38 = vld [vmem:[%s0 + $0x9c] sm:$0xff]
  %v39 = vld [vmem:[%s0 + $0xa4] sm:$0xff]
  %v40 = vld [vmem:[%s0 + $0xac] sm:$0xff]
  %v41 = vld [vmem:[%s0 + $0xb4] sm:$0xff]
  %v42 = vld [vmem:[%s0 + $0xbc] sm:$0xff]
  %v43 = vld [vmem:[%s0 + $0xc4] sm:$0xf]
  %v44 = vld [vmem:[%s1] sm:$0xff]
  %v45 = vld [vmem:[%s1 + $0x8] sm:$0xff]
  %v46 = vld [vmem:[%s1 + $0x10] sm:$0xff]
  %v47 = vld [vmem:[%s1 + $0x18] sm:$0xff]
  %v48 = vld [vmem:[%s1 + $0x20] sm:$0xff]
  %v49 = vld [vmem:[%s1 + $0x28] sm:$0xff]
  %v50 = vld [vmem:[%s1 + $0x30] sm:$0xff]
  %v51 = vld [vmem:[%s1 + $0x38] sm:$0xff]
  %v52 = vld [vmem:[%s1 + $0x40] sm:$0xff]
  %v53 = vld [vmem:[%s1 + $0x48] sm:$0xff]
  %v54 = vld [vmem:[%s1 + $0x50] sm:$0xff]
  %v55 = vld [vmem:[%s1 + $0x58] sm:$0xff]
  %v56 = vld [vmem:[%s1 + $0x60] sm:$0xff]
  %v57 = vld [vmem:[%s1 + $0x68] sm:$0xff]
  %v58 = vld [vmem:[%s1 + $0x70] sm:$0xff]
  %v59 = vld [vmem:[%s1 + $0x78] sm:$0xff]
  %v60 = vld [vmem:[%s1 + $0x80] sm:$0xff]
  %v61 = vld [vmem:[%s1 + $0x88] sm:$0xff]
  %v62 = vld [vmem:[%s1 + $0x90] sm:$0xff]
  %v63 = vld [vmem:[%s1 + $0x98] sm:$0xff]
  %v64 = vld [vmem:[%s1 + $0xa0] sm:$0xff]
  %v65 = vld [vmem:[%s1 + $0xa8] sm:$0xff]
  %v66 = vld [vmem:[%s1 + $0xb0] sm:$0xff]
  %v67 = vld [vmem:[%s1 + $0xb8] sm:$0xff]
  %v68 = vld [vmem:[%s1 + $0xc0] sm:$0xff]
  %v69 = vld [vmem:[%s1 + $0xc8] sm:$0xff]
  %v70 = vld [vmem:[%s1 + $0xd0] sm:$0xff]
  %v71 = vld [vmem:[%s1 + $0xd8] sm:$0xff]
  %v72 = vld [vmem:[%s1 + $0xe0] sm:$0xff]
  %v73 = vld [vmem:[%s1 + $0xe8] sm:$0xff]
  %v74 = vld [vmem:[%s1 + $0xf0] sm:$0xff]
  %v75 = vld [vmem:[%s1 + $0xf8] sm:$0xff]
  %v76 = vld [vmem:[%s1 + $0x100] sm:$0xff]
  %v77 = vld [vmem:[%s1 + $0x108] sm:$0xff]
  %v78 = vld [vmem:[%s1 + $0x110] sm:$0xff]
  %v79 = vld [vmem:[%s1 + $0x118] sm:$0xff]
  %v80 = vld [vmem:[%s1 + $0x120] sm:$0xff]
  %v81 = vld [vmem:[%s1 + $0x128] sm:$0xff]
  %v82 = vld [vmem:[%s1 + $0x130] sm:$0xff]
  %v83 = vld [vmem:[%s1 + $0x138] sm:$0xff]
  %v84 = vld [vmem:[%s1 + $0x140] sm:$0xff]
  %v85 = vld [vmem:[%s1 + $0x148] sm:$0xff]
  %v86 = vld [vmem:[%s1 + $0x150] sm:$0xff]
  %v87 = vld [vmem:[%s1 + $0x158] sm:$0xff]
  %v88 = vld [vmem:[%s1 + $0x160] sm:$0xff]
  %v89 = vld [vmem:[%s1 + $0x168] sm:$0xff]
  %v90 = vld [vmem:[%s1 + $0x170] sm:$0xff]
  %v91 = vld [vmem:[%s1 + $0x178] sm:$0xff]
  %v92 = vld [vmem:[%s1 + $0x180] sm:$0xff]
  %v93 = vld [vmem:[%s1 + $0x188] sm:$0xff]
  %v94 = vld [vmem:[%s1 + $0x190] sm:$0xff]
  %v95 = vld [vmem:[%s1 + $0x198] sm:$0xff]
  %v96 = vld [vmem:[%s1 + $0x1a0] sm:$0xff]
  %v97 = vld [vmem:[%s1 + $0x1a8] sm:$0xff]
  %v98 = vld [vmem:[%s1 + $0x1b0] sm:$0xff]
  %v99 = vld [vmem:[%s1 + $0x1b8] sm:$0xff]
  %v100 = vld [vmem:[%s1 + $0x1c0] sm:$0xff]
  %v101 = vld [vmem:[%s1 + $0x1c8] sm:$0xff]
  %v102 = vld [vmem:[%s1 + $0x1d0] sm:$0xff]
  %v103 = vld [vmem:[%s1 + $0x1d8] sm:$0xff]
  %v104 = vld [vmem:[%s1 + $0x1e0] sm:$0xff]
  %v105 = vld [vmem:[%s1 + $0x1e8] sm:$0xff]
  %v106 = vld [vmem:[%s1 + $0x1f0] sm:$0xff]
  %v107 = vld [vmem:[%s1 + $0x1f8] sm:$0xff]
  %v108 = vld [vmem:[%s1 + $0x200] sm:$0xff]
  %v109 = vld [vmem:[%s1 + $0x208] sm:$0xff]
  %v110 = vld [vmem:[%s1 + $0x210] sm:$0xff]
  %v111 = vld [vmem:[%s1 + $0x218] sm:$0xff]
  %v112 = vld [vmem:[%s1 + $0x220] sm:$0xff]
  %v113 = vld [vmem:[%s1 + $0x228] sm:$0xff]
  %v114 = vld [vmem:[%s1 + $0x230] sm:$0xff]
  %v115 = vld [vmem:[%s1 + $0x238] sm:$0xff]
  %v116 = vld [vmem:[%s1 + $0x240] sm:$0xff]
  %v117 = vld [vmem:[%s1 + $0x248] sm:$0xff]
  %v118 = vld [vmem:[%s1 + $0x250] sm:$0xff]
  %v119 = vld [vmem:[%s1 + $0x258] sm:$0xff]
  %v120 = vld [vmem:[%s1 + $0x260] sm:$0xff]
  %v121 = vld [vmem:[%s1 + $0x268] sm:$0xff]
  %v122 = vld [vmem:[%s1 + $0x270] sm:$0xff]
  %v123 = vld [vmem:[%s1 + $0x278] sm:$0xff]
  %v124 = vld [vmem:[%s1 + $0x280] sm:$0xff]
  %v125 = vld [vmem:[%s1 + $0x288] sm:$0xff]
  %v126 = vld [vmem:[%s1 + $0x290] sm:$0xff]
  %v127 = vld [vmem:[%s1 + $0x298] sm:$0xff]
  %v128 = vld [vmem:[%s1 + $0x2a0] sm:$0xff]
  %v129 = vld [vmem:[%s1 + $0x2a8] sm:$0xff]
  %v130 = vld [vmem:[%s1 + $0x2b0] sm:$0xff]
  %v131 = vld [vmem:[%s1 + $0x2b8] sm:$0xff]
  %v132 = vld [vmem:[%s1 + $0x2c0] sm:$0xff]
  %v133 = vld [vmem:[%s1 + $0x2c8] sm:$0xff]
  %v134 = vld [vmem:[%s1 + $0x2d0] sm:$0xff]
  %v135 = vld [vmem:[%s1 + $0x2d8] sm:$0xff]
  %v136 = vld [vmem:[%s1 + $0x2e0] sm:$0xff]
  %v137 = vld [vmem:[%s1 + $0x2e8] sm:$0xff]
  %v138 = vld [vmem:[%s1 + $0x2f0] sm:$0xff]
  %v139 = vld [vmem:[%s1 + $0x2f8] sm:$0xff]
  %v140 = vld [vmem:[%s1 + $0x300] sm:$0xff]
  %v141 = vld [vmem:[%s1 + $0x308] sm:$0xff]
  %v142 = vld [vmem:[%s1 + $0x310] sm:$0xff]
  %v143 = vld [vmem:[%s1 + $0x318] sm:$0xff]
  %v144 = vld [vmem:[%s1 + $0x320] sm:$0xff]
  %v145 = vld [vmem:[%s1 + $0x328] sm:$0xff]
  %v146 = vld [vmem:[%s1 + $0x330] sm:$0xff]
  %v147 = vld [vmem:[%s1 + $0x338] sm:$0xff]
  %v148 = vld [vmem:[%s1 + $0x340] sm:$0xff]
  %v149 = vld [vmem:[%s1 + $0x348] sm:$0xff]
  %v150 = vld [vmem:[%s1 + $0x350] sm:$0xff]
  %v151 = vld [vmem:[%s1 + $0x358] sm:$0xff]
  %v152 = vld [vmem:[%s1 + $0x360] sm:$0xff]
  %v153 = vld [vmem:[%s1 + $0x368] sm:$0xff]
  %v154 = vld [vmem:[%s1 + $0x370] sm:$0xff]
  %v155 = vld [vmem:[%s1 + $0x378] sm:$0xff]
  %v156 = vld [vmem:[%s1 + $0x380] sm:$0xff]
  %v157 = vld [vmem:[%s1 + $0x388] sm:$0xff]
  %v158 = vld [vmem:[%s1 + $0x390] sm:$0xff]
  %v159 = vld [vmem:[%s1 + $0x398] sm:$0xff]
  %v160 = vld [vmem:[%s1 + $0x3a0] sm:$0xff]
  %v161 = vld [vmem:[%s1 + $0x3a8] sm:$0xff]
  %v162 = vld [vmem:[%s1 + $0x3b0] sm:$0xff]
  %v163 = vld [vmem:[%s1 + $0x3b8] sm:$0xff]
  %v164 = vld [vmem:[%s1 + $0x3c0] sm:$0xff]
  %v165 = vld [vmem:[%s1 + $0x3c8] sm:$0xff]
  %v166 = vld [vmem:[%s1 + $0x3d0] sm:$0xff]
  %v167 = vld [vmem:[%s1 + $0x3d8] sm:$0xff]
  %v168 = vld [vmem:[%s1 + $0x3e0] sm:$0xff]
  %v169 = vld [vmem:[%s1 + $0x3e8] sm:$0xff]
  %v170 = vld [vmem:[%s1 + $0x3f0] sm:$0xff]
  %v171 = vld [vmem:[%s1 + $0x3f8] sm:$0xff]
  %v172 = vld [vmem:[%s1 + $0x400] sm:$0xff]
  %v173 = vld [vmem:[%s1 + $0x408] sm:$0xff]
  %v174 = vld [vmem:[%s1 + $0x410] sm:$0xff]
  %v175 = vld [vmem:[%s1 + $0x418] sm:$0xff]
  %v176 = vld [vmem:[%s1 + $0x420] sm:$0xff]
  %v177 = vld [vmem:[%s1 + $0x428] sm:$0xff]
  %v178 = vld [vmem:[%s1 + $0x430] sm:$0xff]
  %v179 = vld [vmem:[%s1 + $0x438] sm:$0xff]
  %v180 = vld [vmem:[%s1 + $0x440] sm:$0xff]
  %v181 = vld [vmem:[%s1 + $0x448] sm:$0xff]
  %v182 = vld [vmem:[%s1 + $0x450] sm:$0xff]
  %v183 = vld [vmem:[%s1 + $0x458] sm:$0xff]
  %v184 = vld [vmem:[%s1 + $0x460] sm:$0xff]
  %v185 = vld [vmem:[%s1 + $0x468] sm:$0xff]
  %v186 = vld [vmem:[%s1 + $0x470] sm:$0xff]
  %v187 = vld [vmem:[%s1 + $0x478] sm:$0xff]
  %v188 = vld [vmem:[%s1 + $0x480] sm:$0xff]
  %v189 = vld [vmem:[%s1 + $0x488] sm:$0xff]
  %v190 = vld [vmem:[%s1 + $0x490] sm:$0xff]
  %v191 = vld [vmem:[%s1 + $0x498] sm:$0xff]
  %v192 = vld [vmem:[%s1 + $0x4a0] sm:$0xff]
  %v193 = vld [vmem:[%s1 + $0x4a8] sm:$0xff]
  %v194 = vld [vmem:[%s1 + $0x4b0] sm:$0xff]
  %v195 = vld [vmem:[%s1 + $0x4b8] sm:$0xff]
  %v196 = vld [vmem:[%s1 + $0x4c0] sm:$0xff]
  %v197 = vld [vmem:[%s1 + $0x4c8] sm:$0xff]
  %v198 = vld [vmem:[%s1 + $0x4d0] sm:$0xff]
  %v199 = vld [vmem:[%s1 + $0x4d8] sm:$0xff]
  %v200 = vld [vmem:[%s1 + $0x4e0] sm:$0xff]
  %v201 = vld [vmem:[%s1 + $0x4e8] sm:$0xff]
  %v202 = vld [vmem:[%s1 + $0x4f0] sm:$0xff]
  %v203 = vld [vmem:[%s1 + $0x4f8] sm:$0xff]
  %v204 = vld [vmem:[%s1 + $0x500] sm:$0xff]
  %v205 = vld [vmem:[%s1 + $0x508] sm:$0xff]
  %v206 = vld [vmem:[%s1 + $0x510] sm:$0xff]
  %v207 = vld [vmem:[%s1 + $0x518] sm:$0xff]
  %v208 = vld [vmem:[%s1 + $0x520] sm:$0xff]
  %v209 = vld [vmem:[%s1 + $0x528] sm:$0xff]
  %v210 = vld [vmem:[%s1 + $0x530] sm:$0xff]
  %v211 = vld [vmem:[%s1 + $0x538] sm:$0xff]
  %v212 = vld [vmem:[%s1 + $0x540] sm:$0xff]
  %v213 = vld [vmem:[%s1 + $0x548] sm:$0xff]
  %v214 = vld [vmem:[%s1 + $0x550] sm:$0xff]
  %v215 = vld [vmem:[%s1 + $0x558] sm:$0xff]
  %v216 = vld [vmem:[%s1 + $0x560] sm:$0xff]
  %v217 = vld [vmem:[%s1 + $0x568] sm:$0xff]
  %v218 = vld [vmem:[%s1 + $0x570] sm:$0xff]
  %v219 = vld [vmem:[%s1 + $0x578] sm:$0xff]
  %v220 = vld [vmem:[%s1 + $0x580] sm:$0xff]
  %v221 = vld [vmem:[%s1 + $0x588] sm:$0xff]
  %v222 = vld [vmem:[%s1 + $0x590] sm:$0xff]
  %v223 = vld [vmem:[%s1 + $0x598] sm:$0xff]
  %v224 = vld [vmem:[%s1 + $0x5a0] sm:$0xff]
  %v225 = vld [vmem:[%s1 + $0x5a8] sm:$0xff]
  %v226 = vld [vmem:[%s1 + $0x5b0] sm:$0xff]
  %v227 = vld [vmem:[%s1 + $0x5b8] sm:$0xff]
  %v228 = vld [vmem:[%s1 + $0x5c0] sm:$0xff]
  %v229 = vld [vmem:[%s1 + $0x5c8] sm:$0xff]
  %v230 = vld [vmem:[%s1 + $0x5d0] sm:$0xff]
  %v231 = vld [vmem:[%s1 + $0x5d8] sm:$0xff]
  %v232 = vld [vmem:[%s1 + $0x5e0] sm:$0xff]
  %v233 = vld [vmem:[%s1 + $0x5e8] sm:$0xff]
  %v234 = vld [vmem:[%s1 + $0x5f0] sm:$0xff]
  %v235 = vld [vmem:[%s1 + $0x5f8] sm:$0xff]
  %v236 = vld [vmem:[%s1 + $0x600] sm:$0xff]
  %v237 = vld [vmem:[%s1 + $0x608] sm:$0xff]
  %v238 = vld [vmem:[%s1 + $0x610] sm:$0xff]
  %v239 = vld [vmem:[%s1 + $0x618] sm:$0xff]
  %v240 = vld [vmem:[%s1 + $0x620] sm:$0xff]
  %v241 = vld [vmem:[%s1 + $0x628] sm:$0xff]
  %v242 = vld [vmem:[%s1 + $0x630] sm:$0xff]
  %v243 = vld [vmem:[%s1 + $0x638] sm:$0xff]
  %v244 = vld [vmem:[%s1 + $0x640] sm:$0xff]
  %v245 = vld [vmem:[%s1 + $0x648] sm:$0xff]
  %v246 = vld [vmem:[%s1 + $0x650] sm:$0xff]
  %v247 = vld [vmem:[%s1 + $0x658] sm:$0xff]
  %v248 = vld [vmem:[%s1 + $0x660] sm:$0xff]
  %v249 = vld [vmem:[%s1 + $0x668] sm:$0xff]
  %v250 = vld [vmem:[%s1 + $0x670] sm:$0xff]
  %v251 = vld [vmem:[%s1 + $0x678] sm:$0xff]
  %v252 = vld [vmem:[%s1 + $0x680] sm:$0xff]
  %v253 = vld [vmem:[%s1 + $0x688] sm:$0xff]
  %v254 = vld [vmem:[%s1 + $0x690] sm:$0xff]
  %v255 = vld [vmem:[%s1 + $0x698] sm:$0xff]
  %v256 = vld [vmem:[%s1 + $0x6a0] sm:$0xff]
  %v257 = vld [vmem:[%s1 + $0x6a8] sm:$0xff]
  %v258 = vld [vmem:[%s1 + $0x6b0] sm:$0xff]
  %v259 = vld [vmem:[%s1 + $0x6b8] sm:$0xff]
  %v260 = vld [vmem:[%s1 + $0x6c0] sm:$0xff]
  %v261 = vld [vmem:[%s1 + $0x6c8] sm:$0xff]
  %v262 = vld [vmem:[%s1 + $0x6d0] sm:$0xff]
  %v263 = vld [vmem:[%s1 + $0x6d8] sm:$0xff]
  %v264 = vld [vmem:[%s1 + $0x6e0] sm:$0xff]
  %v265 = vld [vmem:[%s1 + $0x6e8] sm:$0xff]
  %v266 = vld [vmem:[%s1 + $0x6f0] sm:$0xff]
  %v267 = vld [vmem:[%s1 + $0x6f8] sm:$0xff]
  %v268 = vld [vmem:[%s1 + $0x700] sm:$0xff]
  %v269 = vld [vmem:[%s1 + $0x708] sm:$0xff]
  %v270 = vld [vmem:[%s1 + $0x710] sm:$0xff]
  %v271 = vld [vmem:[%s1 + $0x718] sm:$0xff]
  %v272 = vld [vmem:[%s1 + $0x720] sm:$0xff]
  %v273 = vld [vmem:[%s1 + $0x728] sm:$0xff]
  %v274 = vld [vmem:[%s1 + $0x730] sm:$0xff]
  %v275 = vld [vmem:[%s1 + $0x738] sm:$0xff]
  %v276 = vld [vmem:[%s1 + $0x740] sm:$0xff]
  %v277 = vld [vmem:[%s1 + $0x748] sm:$0xff]
  %v278 = vld [vmem:[%s1 + $0x750] sm:$0xff]
  %v279 = vld [vmem:[%s1 + $0x758] sm:$0xff]
  %v280 = vld [vmem:[%s1 + $0x760] sm:$0xff]
  %v281 = vld [vmem:[%s1 + $0x768] sm:$0xff]
  %v282 = vld [vmem:[%s1 + $0x770] sm:$0xff]
  %v283 = vld [vmem:[%s1 + $0x778] sm:$0xff]
  %v284 = vld [vmem:[%s1 + $0x780] sm:$0xff]
  %v285 = vld [vmem:[%s1 + $0x788] sm:$0xff]
  %v286 = vld [vmem:[%s1 + $0x790] sm:$0xff]
  %v287 = vld [vmem:[%s1 + $0x798] sm:$0xff]
  %v288 = vld [vmem:[%s1 + $0x7a0] sm:$0xff]
  %v289 = vld [vmem:[%s1 + $0x7a8] sm:$0xff]
  %v290 = vld [vmem:[%s1 + $0x7b0] sm:$0xff]
  %v291 = vld [vmem:[%s1 + $0x7b8] sm:$0xff]
  %v292 = vld [vmem:[%s1 + $0x7c0] sm:$0xff]
  %v293 = vld [vmem:[%s1 + $0x7c8] sm:$0xff]
  %v294 = vld [vmem:[%s1 + $0x7d0] sm:$0xff]
  %v295 = vld [vmem:[%s1 + $0x7d8] sm:$0xff]
  %v296 = vld [vmem:[%s1 + $0x7e0] sm:$0xff]
  %v297 = vld [vmem:[%s1 + $0x7e8] sm:$0xff]
  %v298 = vld [vmem:[%s1 + $0x7f0] sm:$0xff]
  %v299 = vld [vmem:[%s1 + $0x7f8] sm:$0xff]
  %v300 = vld [vmem:[%s1 + $0x800] sm:$0xff]
  %v301 = vld [vmem:[%s1 + $0x808] sm:$0xff]
  %v302 = vld [vmem:[%s1 + $0x810] sm:$0xff]
  %v303 = vld [vmem:[%s1 + $0x818] sm:$0xff]
  %v304 = vld [vmem:[%s1 + $0x820] sm:$0xff]
  %v305 = vld [vmem:[%s1 + $0x828] sm:$0xff]
  %v306 = vld [vmem:[%s1 + $0x830] sm:$0xff]
  %v307 = vld [vmem:[%s1 + $0x838] sm:$0xff]
  %v308 = vld [vmem:[%s1 + $0x840] sm:$0xff]
  %v309 = vld [vmem:[%s1 + $0x848] sm:$0xff]
  %v310 = vld [vmem:[%s1 + $0x850] sm:$0xff]
  %v311 = vld [vmem:[%s1 + $0x858] sm:$0xff]
  %v312 = vld [vmem:[%s1 + $0x860] sm:$0xff]
  %v313 = vld [vmem:[%s1 + $0x868] sm:$0xff]
  %v314 = vld [vmem:[%s1 + $0x870] sm:$0xff]
  %v315 = vld [vmem:[%s1 + $0x878] sm:$0xff]
  %v316 = vld [vmem:[%s1 + $0x880] sm:$0xff]
  %v317 = vld [vmem:[%s1 + $0x888] sm:$0xff]
  %v318 = vld [vmem:[%s1 + $0x890] sm:$0xff]
  %v319 = vld [vmem:[%s1 + $0x898] sm:$0xff]
  %v320 = vld [vmem:[%s1 + $0x8a0] sm:$0xff]
  %v321 = vld [vmem:[%s1 + $0x8a8] sm:$0xff]
  %v322 = vld [vmem:[%s1 + $0x8b0] sm:$0xff]
  %v323 = vld [vmem:[%s1 + $0x8b8] sm:$0xff]
  %v324 = vld [vmem:[%s1 + $0x8c0] sm:$0xff]
  %v325 = vld [vmem:[%s1 + $0x8c8] sm:$0xff]
  %v326 = vld [vmem:[%s1 + $0x8d0] sm:$0xff]
  %v327 = vld [vmem:[%s1 + $0x8d8] sm:$0xff]
  %v328 = vld [vmem:[%s1 + $0x8e0] sm:$0xff]
  %v329 = vld [vmem:[%s1 + $0x8e8] sm:$0xff]
  %v330 = vld [vmem:[%s1 + $0x8f0] sm:$0xff]
  %v331 = vld [vmem:[%s1 + $0x8f8] sm:$0xff]
  %v332 = vld [vmem:[%s1 + $0x900] sm:$0xff]
  %v333 = vld [vmem:[%s1 + $0x908] sm:$0xff]
  %v334 = vld [vmem:[%s1 + $0x910] sm:$0xff]
  %v335 = vld [vmem:[%s1 + $0x918] sm:$0xff]
  %v336 = vld [vmem:[%s1 + $0x920] sm:$0xff]
  %v337 = vld [vmem:[%s1 + $0x928] sm:$0xff]
  %v338 = vld [vmem:[%s1 + $0x930] sm:$0xff]
  %v339 = vld [vmem:[%s1 + $0x938] sm:$0xff]
  %v340 = vld [vmem:[%s1 + $0x940] sm:$0xff]
  %v341 = vld [vmem:[%s1 + $0x948] sm:$0xff]
  %v342 = vld [vmem:[%s1 + $0x950] sm:$0xff]
  %v343 = vld [vmem:[%s1 + $0x958] sm:$0xff]
  %v344 = vld [vmem:[%s1 + $0x960] sm:$0xff]
  %v345 = vld [vmem:[%s1 + $0x968] sm:$0xff]
  %v346 = vld [vmem:[%s1 + $0x970] sm:$0xff]
  %v347 = vld [vmem:[%s1 + $0x978] sm:$0xff]
  %v348 = vld [vmem:[%s1 + $0x980] sm:$0xff]
  %v349 = vld [vmem:[%s1 + $0x988] sm:$0xff]
  %v350 = vld [vmem:[%s1 + $0x990] sm:$0xff]
  %v351 = vld [vmem:[%s1 + $0x998] sm:$0xff]
  %v352 = vld [vmem:[%s1 + $0x9a0] sm:$0xff]
  %v353 = vld [vmem:[%s1 + $0x9a8] sm:$0xff]
  %v354 = vld [vmem:[%s1 + $0x9b0] sm:$0xff]
  %v355 = vld [vmem:[%s1 + $0x9b8] sm:$0xff]
  %v356 = vld [vmem:[%s1 + $0x9c0] sm:$0xff]
  %v357 = vld [vmem:[%s1 + $0x9c8] sm:$0xff]
  %v358 = vld [vmem:[%s1 + $0x9d0] sm:$0xff]
  %v359 = vld [vmem:[%s1 + $0x9d8] sm:$0xff]
  %v360 = vld [vmem:[%s1 + $0x9e0] sm:$0xff]
  %v361 = vld [vmem:[%s1 + $0x9e8] sm:$0xff]
  %v362 = vld [vmem:[%s1 + $0x9f0] sm:$0xff]
  %v363 = vld [vmem:[%s1 + $0x9f8] sm:$0xff]
  %v364 = vld [vmem:[%s1 + $0xa00] sm:$0xff]
  %v365 = vld [vmem:[%s1 + $0xa08] sm:$0xff]
  %v366 = vld [vmem:[%s1 + $0xa10] sm:$0xff]
  %v367 = vld [vmem:[%s1 + $0xa18] sm:$0xff]
  %v368 = vld [vmem:[%s1 + $0xa20] sm:$0xff]
  %v369 = vld [vmem:[%s1 + $0xa28] sm:$0xff]
  %v370 = vld [vmem:[%s1 + $0xa30] sm:$0xff]
  %v371 = vld [vmem:[%s1 + $0xa38] sm:$0xff]
  %v372 = vld [vmem:[%s1 + $0xa40] sm:$0xff]
  %v373 = vld [vmem:[%s1 + $0xa48] sm:$0xff]
  %v374 = vld [vmem:[%s1 + $0xa50] sm:$0xff]
  %v375 = vld [vmem:[%s1 + $0xa58] sm:$0xff]
  %v376 = vld [vmem:[%s1 + $0xa60] sm:$0xff]
  %v377 = vld [vmem:[%s1 + $0xa68] sm:$0xff]
  %v378 = vld [vmem:[%s1 + $0xa70] sm:$0xff]
  %v379 = vld [vmem:[%s1 + $0xa78] sm:$0xff]
  %v380 = vld [vmem:[%s1 + $0xa80] sm:$0xff]
  %v381 = vld [vmem:[%s1 + $0xa88] sm:$0xff]
  %v382 = vld [vmem:[%s1 + $0xa90] sm:$0xff]
  %v383 = vld [vmem:[%s1 + $0xa98] sm:$0xff]
  %v384 = vld [vmem:[%s1 + $0xaa0] sm:$0xff]
  %v385 = vld [vmem:[%s1 + $0xaa8] sm:$0xff]
  %v386 = vld [vmem:[%s1 + $0xab0] sm:$0xff]
  %v387 = vld [vmem:[%s1 + $0xab8] sm:$0xff]
  %v388 = vld [vmem:[%s1 + $0xac0] sm:$0xff]
  %v389 = vld [vmem:[%s1 + $0xac8] sm:$0xff]
  %v390 = vld [vmem:[%s1 + $0xad0] sm:$0xff]
  %v391 = vld [vmem:[%s1 + $0xad8] sm:$0xff]
  %v392 = vld [vmem:[%s1 + $0xae0] sm:$0xff]
  %v393 = vld [vmem:[%s1 + $0xae8] sm:$0xff]
  %v394 = vld [vmem:[%s1 + $0xaf0] sm:$0xff]
  %v395 = vld [vmem:[%s1 + $0xaf8] sm:$0xff]
  %v396 = vld [vmem:[%s1 + $0xb00] sm:$0xff]
  %v397 = vld [vmem:[%s1 + $0xb08] sm:$0xff]
  %v398 = vld [vmem:[%s1 + $0xb10] sm:$0xff]
  %v399 = vld [vmem:[%s1 + $0xb18] sm:$0xff]
  %v400 = vld [vmem:[%s1 + $0xb20] sm:$0xff]
  %v401 = vld [vmem:[%s1 + $0xb28] sm:$0xff]
  %v402 = vld [vmem:[%s1 + $0xb30] sm:$0xff]
  %v403 = vld [vmem:[%s1 + $0xb38] sm:$0xff]
  %v404 = vld [vmem:[%s1 + $0xb40] sm:$0xff]
  %v405 = vld [vmem:[%s1 + $0xb48] sm:$0xff]
  %v406 = vld [vmem:[%s1 + $0xb50] sm:$0xff]
  %v407 = vld [vmem:[%s1 + $0xb58] sm:$0xff]
  %v408 = vld [vmem:[%s1 + $0xb60] sm:$0xff]
  %v409 = vld [vmem:[%s1 + $0xb68] sm:$0xff]
  %v410 = vld [vmem:[%s1 + $0xb70] sm:$0xff]
  %v411 = vld [vmem:[%s1 + $0xb78] sm:$0xff]
  %v412 = vld [vmem:[%s1 + $0xb80] sm:$0xff]
  %v413 = vld [vmem:[%s1 + $0xb88] sm:$0xff]
  %v414 = vld [vmem:[%s1 + $0xb90] sm:$0xff]
  %v415 = vld [vmem:[%s1 + $0xb98] sm:$0xff]
  %v416 = vld [vmem:[%s1 + $0xba0] sm:$0xff]
  %v417 = vld [vmem:[%s1 + $0xba8] sm:$0xff]
  %v418 = vld [vmem:[%s1 + $0xbb0] sm:$0xff]
  %v419 = vld [vmem:[%s1 + $0xbb8] sm:$0xff]
  %v420 = vld [vmem:[%s1 + $0xbc0] sm:$0xff]
  %v421 = vld [vmem:[%s1 + $0xbc8] sm:$0xff]
  %v422 = vld [vmem:[%s1 + $0xbd0] sm:$0xff]
  %v423 = vld [vmem:[%s1 + $0xbd8] sm:$0xff]
  %v424 = vld [vmem:[%s1 + $0xbe0] sm:$0xff]
  %v425 = vld [vmem:[%s1 + $0xbe8] sm:$0xff]
  %v426 = vld [vmem:[%s1 + $0xbf0] sm:$0xff]
  %v427 = vld [vmem:[%s1 + $0xbf8] sm:$0xff]
  %v428 = vld [vmem:[%s1 + $0xc00] sm:$0xff]
  %v429 = vld [vmem:[%s1 + $0xc08] sm:$0xff]
  %v430 = vld [vmem:[%s1 + $0xc10] sm:$0xff]
  %v431 = vld [vmem:[%s1 + $0xc18] sm:$0xff]
  %v432 = vld [vmem:[%s1 + $0xc20] sm:$0xff]
  %v433 = vld [vmem:[%s1 + $0xc28] sm:$0xff]
  %v434 = vld [vmem:[%s1 + $0xc30] sm:$0xff]
  %v435 = vld [vmem:[%s1 + $0xc38] sm:$0xff]
  %v436 = vld [vmem:[%s1 + $0xc40] sm:$0xff]
  %v437 = vld [vmem:[%s1 + $0xc48] sm:$0xff]
  %v438 = vld [vmem:[%s1 + $0xc50] sm:$0xff]
  %v439 = vld [vmem:[%s1 + $0xc58] sm:$0xff]
  %v440 = vld [vmem:[%s1 + $0xc60] sm:$0xff]
  %v441 = vld [vmem:[%s1 + $0xc68] sm:$0xff]
  %v442 = vld [vmem:[%s1 + $0xc70] sm:$0xff]
  %v443 = vld [vmem:[%s1 + $0xc78] sm:$0xff]
  %v470 = vunpack.c.l.b16 %v18
  %v471 = vunpack.c.h.b16 %v18
  %v472 = vunpack.c.l.b16 %v19
  %v473 = vunpack.c.h.b16 %v19
  %v474 = vunpack.c.l.b16 %v20
  %v475 = vunpack.c.h.b16 %v20
  %v476 = vunpack.c.l.b16 %v21
  %v477 = vunpack.c.h.b16 %v21
  %v478 = vunpack.c.l.b16 %v22
  %v479 = vunpack.c.h.b16 %v22
  %v480 = vunpack.c.l.b16 %v23
  %v481 = vunpack.c.h.b16 %v23
  %v482 = vunpack.c.l.b16 %v24
  %v483 = vunpack.c.h.b16 %v24
  %v484 = vunpack.c.l.b16 %v25
  %v485 = vunpack.c.h.b16 %v25
  %v486 = vunpack.c.l.b16 %v26
  %v487 = vunpack.c.h.b16 %v26
  %v488 = vunpack.c.l.b16 %v27
  %v489 = vunpack.c.h.b16 %v27
  %v490 = vunpack.c.l.b16 %v28
  %v491 = vunpack.c.h.b16 %v28
  %v492 = vunpack.c.l.b16 %v29
  %v493 = vunpack.c.h.b16 %v29
  %v494 = vunpack.c.l.b16 %v30
  %v495 = vunpack.c.l.b16 %v31
  %v496 = vunpack.c.h.b16 %v31
  %v497 = vunpack.c.l.b16 %v32
  %v498 = vunpack.c.h.b16 %v32
  %v499 = vunpack.c.l.b16 %v33
  %v500 = vunpack.c.h.b16 %v33
  %v501 = vunpack.c.l.b16 %v34
  %v502 = vunpack.c.h.b16 %v34
  %v503 = vunpack.c.l.b16 %v35
  %v504 = vunpack.c.h.b16 %v35
  %v505 = vunpack.c.l.b16 %v36
  %v506 = vunpack.c.h.b16 %v36
  %v507 = vunpack.c.l.b16 %v37
  %v508 = vunpack.c.h.b16 %v37
  %v509 = vunpack.c.l.b16 %v38
  %v510 = vunpack.c.h.b16 %v38
  %v511 = vunpack.c.l.b16 %v39
  %v512 = vunpack.c.h.b16 %v39
  %v513 = vunpack.c.l.b16 %v40
  %v514 = vunpack.c.h.b16 %v40
  %v515 = vunpack.c.l.b16 %v41
  %v516 = vunpack.c.h.b16 %v41
  %v517 = vunpack.c.l.b16 %v42
  %v518 = vunpack.c.h.b16 %v42
  %v519 = vunpack.c.l.b16 %v43
  %v520 = vpack.c.b16 %v495, %v470
  %v521 = vpack.c.b16 %v496, %v471
  %v522 = vpack.c.b16 %v497, %v472
  %v523 = vpack.c.b16 %v498, %v473
  %v524 = vpack.c.b16 %v499, %v474
  %v525 = vpack.c.b16 %v500, %v475
  %v526 = vpack.c.b16 %v501, %v476
  %v527 = vpack.c.b16 %v502, %v477
  %v528 = vpack.c.b16 %v503, %v478
  %v529 = vpack.c.b16 %v504, %v479
  %v530 = vpack.c.b16 %v505, %v480
  %v531 = vpack.c.b16 %v506, %v481
  %v532 = vpack.c.b16 %v507, %v482
  %v533 = vpack.c.b16 %v508, %v483
  %v534 = vpack.c.b16 %v509, %v484
  %v535 = vpack.c.b16 %v510, %v485
  %v536 = vpack.c.b16 %v511, %v486
  %v537 = vpack.c.b16 %v512, %v487
  %v538 = vpack.c.b16 %v513, %v488
  %v539 = vpack.c.b16 %v514, %v489
  %v540 = vpack.c.b16 %v515, %v490
  %v541 = vpack.c.b16 %v516, %v491
  %v542 = vpack.c.b16 %v517, %v492
  %v543 = vpack.c.b16 %v518, %v493
  %v544 = vpack.c.b16 %v519, %v494
  %v970 = vunpack.c.l.b16 %v44
  %v971 = vunpack.c.h.b16 %v44
  %v972 = vunpack.c.l.b16 %v45
  %v973 = vunpack.c.h.b16 %v45
  %v974 = vunpack.c.l.b16 %v46
  %v975 = vunpack.c.h.b16 %v46
  %v976 = vunpack.c.l.b16 %v47
  %v977 = vunpack.c.h.b16 %v47
  %v978 = vunpack.c.l.b16 %v48
  %v979 = vunpack.c.h.b16 %v48
  %v980 = vunpack.c.l.b16 %v49
  %v981 = vunpack.c.h.b16 %v49
  %v982 = vunpack.c.l.b16 %v50
  %v983 = vunpack.c.h.b16 %v50
  %v984 = vunpack.c.l.b16 %v51
  %v985 = vunpack.c.h.b16 %v51
  %v986 = vunpack.c.l.b16 %v52
  %v987 = vunpack.c.h.b16 %v52
  %v988 = vunpack.c.l.b16 %v53
  %v989 = vunpack.c.h.b16 %v53
  %v990 = vunpack.c.l.b16 %v54
  %v991 = vunpack.c.h.b16 %v54
  %v992 = vunpack.c.l.b16 %v55
  %v993 = vunpack.c.h.b16 %v55
  %v994 = vunpack.c.l.b16 %v56
  %v995 = vunpack.c.h.b16 %v56
  %v996 = vunpack.c.l.b16 %v57
  %v997 = vunpack.c.h.b16 %v57
  %v998 = vunpack.c.l.b16 %v58
  %v999 = vunpack.c.h.b16 %v58
  %v1000 = vunpack.c.l.b16 %v59
  %v1001 = vunpack.c.h.b16 %v59
  %v1002 = vunpack.c.l.b16 %v60
  %v1003 = vunpack.c.h.b16 %v60
  %v1004 = vunpack.c.l.b16 %v61
  %v1005 = vunpack.c.h.b16 %v61
  %v1006 = vunpack.c.l.b16 %v62
  %v1007 = vunpack.c.h.b16 %v62
  %v1008 = vunpack.c.l.b16 %v63
  %v1009 = vunpack.c.h.b16 %v63
  %v1010 = vunpack.c.l.b16 %v64
  %v1011 = vunpack.c.h.b16 %v64
  %v1012 = vunpack.c.l.b16 %v65
  %v1013 = vunpack.c.h.b16 %v65
  %v1014 = vunpack.c.l.b16 %v66
  %v1015 = vunpack.c.h.b16 %v66
  %v1016 = vunpack.c.l.b16 %v67
  %v1017 = vunpack.c.h.b16 %v67
  %v1018 = vunpack.c.l.b16 %v68
  %v1019 = vunpack.c.h.b16 %v68
  %v1020 = vunpack.c.l.b16 %v69
  %v1021 = vunpack.c.h.b16 %v69
  %v1022 = vunpack.c.l.b16 %v70
  %v1023 = vunpack.c.h.b16 %v70
  %v1024 = vunpack.c.l.b16 %v71
  %v1025 = vunpack.c.h.b16 %v71
  %v1026 = vunpack.c.l.b16 %v72
  %v1027 = vunpack.c.h.b16 %v72
  %v1028 = vunpack.c.l.b16 %v73
  %v1029 = vunpack.c.h.b16 %v73
  %v1030 = vunpack.c.l.b16 %v74
  %v1031 = vunpack.c.h.b16 %v74
  %v1032 = vunpack.c.l.b16 %v75
  %v1033 = vunpack.c.h.b16 %v75
  %v1034 = vunpack.c.l.b16 %v76
  %v1035 = vunpack.c.h.b16 %v76
  %v1036 = vunpack.c.l.b16 %v77
  %v1037 = vunpack.c.h.b16 %v77
  %v1038 = vunpack.c.l.b16 %v78
  %v1039 = vunpack.c.h.b16 %v78
  %v1040 = vunpack.c.l.b16 %v79
  %v1041 = vunpack.c.h.b16 %v79
  %v1042 = vunpack.c.l.b16 %v80
  %v1043 = vunpack.c.h.b16 %v80
  %v1044 = vunpack.c.l.b16 %v81
  %v1045 = vunpack.c.h.b16 %v81
  %v1046 = vunpack.c.l.b16 %v82
  %v1047 = vunpack.c.h.b16 %v82
  %v1048 = vunpack.c.l.b16 %v83
  %v1049 = vunpack.c.h.b16 %v83
  %v1050 = vunpack.c.l.b16 %v84
  %v1051 = vunpack.c.h.b16 %v84
  %v1052 = vunpack.c.l.b16 %v85
  %v1053 = vunpack.c.h.b16 %v85
  %v1054 = vunpack.c.l.b16 %v86
  %v1055 = vunpack.c.h.b16 %v86
  %v1056 = vunpack.c.l.b16 %v87
  %v1057 = vunpack.c.h.b16 %v87
  %v1058 = vunpack.c.l.b16 %v88
  %v1059 = vunpack.c.h.b16 %v88
  %v1060 = vunpack.c.l.b16 %v89
  %v1061 = vunpack.c.h.b16 %v89
  %v1062 = vunpack.c.l.b16 %v90
  %v1063 = vunpack.c.h.b16 %v90
  %v1064 = vunpack.c.l.b16 %v91
  %v1065 = vunpack.c.h.b16 %v91
  %v1066 = vunpack.c.l.b16 %v92
  %v1067 = vunpack.c.h.b16 %v92
  %v1068 = vunpack.c.l.b16 %v93
  %v1069 = vunpack.c.h.b16 %v93
  %v1070 = vunpack.c.l.b16 %v94
  %v1071 = vunpack.c.h.b16 %v94
  %v1072 = vunpack.c.l.b16 %v95
  %v1073 = vunpack.c.h.b16 %v95
  %v1074 = vunpack.c.l.b16 %v96
  %v1075 = vunpack.c.h.b16 %v96
  %v1076 = vunpack.c.l.b16 %v97
  %v1077 = vunpack.c.h.b16 %v97
  %v1078 = vunpack.c.l.b16 %v98
  %v1079 = vunpack.c.h.b16 %v98
  %v1080 = vunpack.c.l.b16 %v99
  %v1081 = vunpack.c.h.b16 %v99
  %v1082 = vunpack.c.l.b16 %v100
  %v1083 = vunpack.c.h.b16 %v100
  %v1084 = vunpack.c.l.b16 %v101
  %v1085 = vunpack.c.h.b16 %v101
  %v1086 = vunpack.c.l.b16 %v102
  %v1087 = vunpack.c.h.b16 %v102
  %v1088 = vunpack.c.l.b16 %v103
  %v1089 = vunpack.c.h.b16 %v103
  %v1090 = vunpack.c.l.b16 %v104
  %v1091 = vunpack.c.h.b16 %v104
  %v1092 = vunpack.c.l.b16 %v105
  %v1093 = vunpack.c.h.b16 %v105
  %v1094 = vunpack.c.l.b16 %v106
  %v1095 = vunpack.c.h.b16 %v106
  %v1096 = vunpack.c.l.b16 %v107
  %v1097 = vunpack.c.h.b16 %v107
  %v1098 = vunpack.c.l.b16 %v108
  %v1099 = vunpack.c.h.b16 %v108
  %v1100 = vunpack.c.l.b16 %v109
  %v1101 = vunpack.c.h.b16 %v109
  %v1102 = vunpack.c.l.b16 %v110
  %v1103 = vunpack.c.h.b16 %v110
  %v1104 = vunpack.c.l.b16 %v111
  %v1105 = vunpack.c.h.b16 %v111
  %v1106 = vunpack.c.l.b16 %v112
  %v1107 = vunpack.c.h.b16 %v112
  %v1108 = vunpack.c.l.b16 %v113
  %v1109 = vunpack.c.h.b16 %v113
  %v1110 = vunpack.c.l.b16 %v114
  %v1111 = vunpack.c.h.b16 %v114
  %v1112 = vunpack.c.l.b16 %v115
  %v1113 = vunpack.c.h.b16 %v115
  %v1114 = vunpack.c.l.b16 %v116
  %v1115 = vunpack.c.h.b16 %v116
  %v1116 = vunpack.c.l.b16 %v117
  %v1117 = vunpack.c.h.b16 %v117
  %v1118 = vunpack.c.l.b16 %v118
  %v1119 = vunpack.c.h.b16 %v118
  %v1120 = vunpack.c.l.b16 %v119
  %v1121 = vunpack.c.h.b16 %v119
  %v1122 = vunpack.c.l.b16 %v120
  %v1123 = vunpack.c.h.b16 %v120
  %v1124 = vunpack.c.l.b16 %v121
  %v1125 = vunpack.c.h.b16 %v121
  %v1126 = vunpack.c.l.b16 %v122
  %v1127 = vunpack.c.h.b16 %v122
  %v1128 = vunpack.c.l.b16 %v123
  %v1129 = vunpack.c.h.b16 %v123
  %v1130 = vunpack.c.l.b16 %v124
  %v1131 = vunpack.c.h.b16 %v124
  %v1132 = vunpack.c.l.b16 %v125
  %v1133 = vunpack.c.h.b16 %v125
  %v1134 = vunpack.c.l.b16 %v126
  %v1135 = vunpack.c.h.b16 %v126
  %v1136 = vunpack.c.l.b16 %v127
  %v1137 = vunpack.c.h.b16 %v127
  %v1138 = vunpack.c.l.b16 %v128
  %v1139 = vunpack.c.h.b16 %v128
  %v1140 = vunpack.c.l.b16 %v129
  %v1141 = vunpack.c.h.b16 %v129
  %v1142 = vunpack.c.l.b16 %v130
  %v1143 = vunpack.c.h.b16 %v130
  %v1144 = vunpack.c.l.b16 %v131
  %v1145 = vunpack.c.h.b16 %v131
  %v1146 = vunpack.c.l.b16 %v132
  %v1147 = vunpack.c.h.b16 %v132
  %v1148 = vunpack.c.l.b16 %v133
  %v1149 = vunpack.c.h.b16 %v133
  %v1150 = vunpack.c.l.b16 %v134
  %v1151 = vunpack.c.h.b16 %v134
  %v1152 = vunpack.c.l.b16 %v135
  %v1153 = vunpack.c.h.b16 %v135
  %v1154 = vunpack.c.l.b16 %v136
  %v1155 = vunpack.c.h.b16 %v136
  %v1156 = vunpack.c.l.b16 %v137
  %v1157 = vunpack.c.h.b16 %v137
  %v1158 = vunpack.c.l.b16 %v138
  %v1159 = vunpack.c.h.b16 %v138
  %v1160 = vunpack.c.l.b16 %v139
  %v1161 = vunpack.c.h.b16 %v139
  %v1162 = vunpack.c.l.b16 %v140
  %v1163 = vunpack.c.h.b16 %v140
  %v1164 = vunpack.c.l.b16 %v141
  %v1165 = vunpack.c.h.b16 %v141
  %v1166 = vunpack.c.l.b16 %v142
  %v1167 = vunpack.c.h.b16 %v142
  %v1168 = vunpack.c.l.b16 %v143
  %v1169 = vunpack.c.h.b16 %v143
  %v1170 = vunpack.c.l.b16 %v144
  %v1171 = vunpack.c.h.b16 %v144
  %v1172 = vunpack.c.l.b16 %v145
  %v1173 = vunpack.c.h.b16 %v145
  %v1174 = vunpack.c.l.b16 %v146
  %v1175 = vunpack.c.h.b16 %v146
  %v1176 = vunpack.c.l.b16 %v147
  %v1177 = vunpack.c.h.b16 %v147
  %v1178 = vunpack.c.l.b16 %v148
  %v1179 = vunpack.c.h.b16 %v148
  %v1180 = vunpack.c.l.b16 %v149
  %v1181 = vunpack.c.h.b16 %v149
  %v1182 = vunpack.c.l.b16 %v150
  %v1183 = vunpack.c.h.b16 %v150
  %v1184 = vunpack.c.l.b16 %v151
  %v1185 = vunpack.c.h.b16 %v151
  %v1186 = vunpack.c.l.b16 %v152
  %v1187 = vunpack.c.h.b16 %v152
  %v1188 = vunpack.c.l.b16 %v153
  %v1189 = vunpack.c.h.b16 %v153
  %v1190 = vunpack.c.l.b16 %v154
  %v1191 = vunpack.c.h.b16 %v154
  %v1192 = vunpack.c.l.b16 %v155
  %v1193 = vunpack.c.h.b16 %v155
  %v1194 = vunpack.c.l.b16 %v156
  %v1195 = vunpack.c.h.b16 %v156
  %v1196 = vunpack.c.l.b16 %v157
  %v1197 = vunpack.c.h.b16 %v157
  %v1198 = vunpack.c.l.b16 %v158
  %v1199 = vunpack.c.h.b16 %v158
  %v1200 = vunpack.c.l.b16 %v159
  %v1201 = vunpack.c.h.b16 %v159
  %v1202 = vunpack.c.l.b16 %v160
  %v1203 = vunpack.c.h.b16 %v160
  %v1204 = vunpack.c.l.b16 %v161
  %v1205 = vunpack.c.h.b16 %v161
  %v1206 = vunpack.c.l.b16 %v162
  %v1207 = vunpack.c.h.b16 %v162
  %v1208 = vunpack.c.l.b16 %v163
  %v1209 = vunpack.c.h.b16 %v163
  %v1210 = vunpack.c.l.b16 %v164
  %v1211 = vunpack.c.h.b16 %v164
  %v1212 = vunpack.c.l.b16 %v165
  %v1213 = vunpack.c.h.b16 %v165
  %v1214 = vunpack.c.l.b16 %v166
  %v1215 = vunpack.c.h.b16 %v166
  %v1216 = vunpack.c.l.b16 %v167
  %v1217 = vunpack.c.h.b16 %v167
  %v1218 = vunpack.c.l.b16 %v168
  %v1219 = vunpack.c.h.b16 %v168
  %v1220 = vunpack.c.l.b16 %v169
  %v1221 = vunpack.c.h.b16 %v169
  %v1222 = vunpack.c.l.b16 %v170
  %v1223 = vunpack.c.h.b16 %v170
  %v1224 = vunpack.c.l.b16 %v171
  %v1225 = vunpack.c.h.b16 %v171
  %v1226 = vunpack.c.l.b16 %v172
  %v1227 = vunpack.c.h.b16 %v172
  %v1228 = vunpack.c.l.b16 %v173
  %v1229 = vunpack.c.h.b16 %v173
  %v1230 = vunpack.c.l.b16 %v174
  %v1231 = vunpack.c.h.b16 %v174
  %v1232 = vunpack.c.l.b16 %v175
  %v1233 = vunpack.c.h.b16 %v175
  %v1234 = vunpack.c.l.b16 %v176
  %v1235 = vunpack.c.h.b16 %v176
  %v1236 = vunpack.c.l.b16 %v177
  %v1237 = vunpack.c.h.b16 %v177
  %v1238 = vunpack.c.l.b16 %v178
  %v1239 = vunpack.c.h.b16 %v178
  %v1240 = vunpack.c.l.b16 %v179
  %v1241 = vunpack.c.h.b16 %v179
  %v1242 = vunpack.c.l.b16 %v180
  %v1243 = vunpack.c.h.b16 %v180
  %v1244 = vunpack.c.l.b16 %v181
  %v1245 = vunpack.c.h.b16 %v181
  %v1246 = vunpack.c.l.b16 %v182
  %v1247 = vunpack.c.h.b16 %v182
  %v1248 = vunpack.c.l.b16 %v183
  %v1249 = vunpack.c.h.b16 %v183
  %v1250 = vunpack.c.l.b16 %v184
  %v1251 = vunpack.c.h.b16 %v184
  %v1252 = vunpack.c.l.b16 %v185
  %v1253 = vunpack.c.h.b16 %v185
  %v1254 = vunpack.c.l.b16 %v186
  %v1255 = vunpack.c.h.b16 %v186
  %v1256 = vunpack.c.l.b16 %v187
  %v1257 = vunpack.c.h.b16 %v187
  %v1258 = vunpack.c.l.b16 %v188
  %v1259 = vunpack.c.h.b16 %v188
  %v1260 = vunpack.c.l.b16 %v189
  %v1261 = vunpack.c.h.b16 %v189
  %v1262 = vunpack.c.l.b16 %v190
  %v1263 = vunpack.c.h.b16 %v190
  %v1264 = vunpack.c.l.b16 %v191
  %v1265 = vunpack.c.h.b16 %v191
  %v1266 = vunpack.c.l.b16 %v192
  %v1267 = vunpack.c.h.b16 %v192
  %v1268 = vunpack.c.l.b16 %v193
  %v1269 = vunpack.c.h.b16 %v193
  %v1270 = vunpack.c.l.b16 %v194
  %v1271 = vunpack.c.h.b16 %v194
  %v1272 = vunpack.c.l.b16 %v195
  %v1273 = vunpack.c.h.b16 %v195
  %v1274 = vunpack.c.l.b16 %v196
  %v1275 = vunpack.c.h.b16 %v196
  %v1276 = vunpack.c.l.b16 %v197
  %v1277 = vunpack.c.h.b16 %v197
  %v1278 = vunpack.c.l.b16 %v198
  %v1279 = vunpack.c.h.b16 %v198
  %v1280 = vunpack.c.l.b16 %v199
  %v1281 = vunpack.c.h.b16 %v199
  %v1282 = vunpack.c.l.b16 %v200
  %v1283 = vunpack.c.h.b16 %v200
  %v1284 = vunpack.c.l.b16 %v201
  %v1285 = vunpack.c.h.b16 %v201
  %v1286 = vunpack.c.l.b16 %v202
  %v1287 = vunpack.c.h.b16 %v202
  %v1288 = vunpack.c.l.b16 %v203
  %v1289 = vunpack.c.h.b16 %v203
  %v1290 = vunpack.c.l.b16 %v204
  %v1291 = vunpack.c.h.b16 %v204
  %v1292 = vunpack.c.l.b16 %v205
  %v1293 = vunpack.c.h.b16 %v205
  %v1294 = vunpack.c.l.b16 %v206
  %v1295 = vunpack.c.h.b16 %v206
  %v1296 = vunpack.c.l.b16 %v207
  %v1297 = vunpack.c.h.b16 %v207
  %v1298 = vunpack.c.l.b16 %v208
  %v1299 = vunpack.c.h.b16 %v208
  %v1300 = vunpack.c.l.b16 %v209
  %v1301 = vunpack.c.h.b16 %v209
  %v1302 = vunpack.c.l.b16 %v210
  %v1303 = vunpack.c.h.b16 %v210
  %v1304 = vunpack.c.l.b16 %v211
  %v1305 = vunpack.c.h.b16 %v211
  %v1306 = vunpack.c.l.b16 %v212
  %v1307 = vunpack.c.h.b16 %v212
  %v1308 = vunpack.c.l.b16 %v213
  %v1309 = vunpack.c.h.b16 %v213
  %v1310 = vunpack.c.l.b16 %v214
  %v1311 = vunpack.c.h.b16 %v214
  %v1312 = vunpack.c.l.b16 %v215
  %v1313 = vunpack.c.h.b16 %v215
  %v1314 = vunpack.c.l.b16 %v216
  %v1315 = vunpack.c.h.b16 %v216
  %v1316 = vunpack.c.l.b16 %v217
  %v1317 = vunpack.c.h.b16 %v217
  %v1318 = vunpack.c.l.b16 %v218
  %v1319 = vunpack.c.h.b16 %v218
  %v1320 = vunpack.c.l.b16 %v219
  %v1321 = vunpack.c.h.b16 %v219
  %v1322 = vunpack.c.l.b16 %v220
  %v1323 = vunpack.c.h.b16 %v220
  %v1324 = vunpack.c.l.b16 %v221
  %v1325 = vunpack.c.h.b16 %v221
  %v1326 = vunpack.c.l.b16 %v222
  %v1327 = vunpack.c.h.b16 %v222
  %v1328 = vunpack.c.l.b16 %v223
  %v1329 = vunpack.c.h.b16 %v223
  %v1330 = vunpack.c.l.b16 %v224
  %v1331 = vunpack.c.h.b16 %v224
  %v1332 = vunpack.c.l.b16 %v225
  %v1333 = vunpack.c.h.b16 %v225
  %v1334 = vunpack.c.l.b16 %v226
  %v1335 = vunpack.c.h.b16 %v226
  %v1336 = vunpack.c.l.b16 %v227
  %v1337 = vunpack.c.h.b16 %v227
  %v1338 = vunpack.c.l.b16 %v228
  %v1339 = vunpack.c.h.b16 %v228
  %v1340 = vunpack.c.l.b16 %v229
  %v1341 = vunpack.c.h.b16 %v229
  %v1342 = vunpack.c.l.b16 %v230
  %v1343 = vunpack.c.h.b16 %v230
  %v1344 = vunpack.c.l.b16 %v231
  %v1345 = vunpack.c.h.b16 %v231
  %v1346 = vunpack.c.l.b16 %v232
  %v1347 = vunpack.c.h.b16 %v232
  %v1348 = vunpack.c.l.b16 %v233
  %v1349 = vunpack.c.h.b16 %v233
  %v1350 = vunpack.c.l.b16 %v234
  %v1351 = vunpack.c.h.b16 %v234
  %v1352 = vunpack.c.l.b16 %v235
  %v1353 = vunpack.c.h.b16 %v235
  %v1354 = vunpack.c.l.b16 %v236
  %v1355 = vunpack.c.h.b16 %v236
  %v1356 = vunpack.c.l.b16 %v237
  %v1357 = vunpack.c.h.b16 %v237
  %v1358 = vunpack.c.l.b16 %v238
  %v1359 = vunpack.c.h.b16 %v238
  %v1360 = vunpack.c.l.b16 %v239
  %v1361 = vunpack.c.h.b16 %v239
  %v1362 = vunpack.c.l.b16 %v240
  %v1363 = vunpack.c.h.b16 %v240
  %v1364 = vunpack.c.l.b16 %v241
  %v1365 = vunpack.c.h.b16 %v241
  %v1366 = vunpack.c.l.b16 %v242
  %v1367 = vunpack.c.h.b16 %v242
  %v1368 = vunpack.c.l.b16 %v243
  %v1369 = vunpack.c.h.b16 %v243
  %v1370 = vunpack.c.l.b16 %v244
  %v1371 = vunpack.c.h.b16 %v244
  %v1372 = vunpack.c.l.b16 %v245
  %v1373 = vunpack.c.h.b16 %v245
  %v1374 = vunpack.c.l.b16 %v246
  %v1375 = vunpack.c.h.b16 %v246
  %v1376 = vunpack.c.l.b16 %v247
  %v1377 = vunpack.c.h.b16 %v247
  %v1378 = vunpack.c.l.b16 %v248
  %v1379 = vunpack.c.h.b16 %v248
  %v1380 = vunpack.c.l.b16 %v249
  %v1381 = vunpack.c.h.b16 %v249
  %v1382 = vunpack.c.l.b16 %v250
  %v1383 = vunpack.c.h.b16 %v250
  %v1384 = vunpack.c.l.b16 %v251
  %v1385 = vunpack.c.h.b16 %v251
  %v1386 = vunpack.c.l.b16 %v252
  %v1387 = vunpack.c.h.b16 %v252
  %v1388 = vunpack.c.l.b16 %v253
  %v1389 = vunpack.c.h.b16 %v253
  %v1390 = vunpack.c.l.b16 %v254
  %v1391 = vunpack.c.h.b16 %v254
  %v1392 = vunpack.c.l.b16 %v255
  %v1393 = vunpack.c.h.b16 %v255
  %v1394 = vunpack.c.l.b16 %v256
  %v1395 = vunpack.c.h.b16 %v256
  %v1396 = vunpack.c.l.b16 %v257
  %v1397 = vunpack.c.h.b16 %v257
  %v1398 = vunpack.c.l.b16 %v258
  %v1399 = vunpack.c.h.b16 %v258
  %v1400 = vunpack.c.l.b16 %v259
  %v1401 = vunpack.c.h.b16 %v259
  %v1402 = vunpack.c.l.b16 %v260
  %v1403 = vunpack.c.h.b16 %v260
  %v1404 = vunpack.c.l.b16 %v261
  %v1405 = vunpack.c.h.b16 %v261
  %v1406 = vunpack.c.l.b16 %v262
  %v1407 = vunpack.c.h.b16 %v262
  %v1408 = vunpack.c.l.b16 %v263
  %v1409 = vunpack.c.h.b16 %v263
  %v1410 = vunpack.c.l.b16 %v264
  %v1411 = vunpack.c.h.b16 %v264
  %v1412 = vunpack.c.l.b16 %v265
  %v1413 = vunpack.c.h.b16 %v265
  %v1414 = vunpack.c.l.b16 %v266
  %v1415 = vunpack.c.h.b16 %v266
  %v1416 = vunpack.c.l.b16 %v267
  %v1417 = vunpack.c.h.b16 %v267
  %v1418 = vunpack.c.l.b16 %v268
  %v1419 = vunpack.c.h.b16 %v268
  %v1420 = vunpack.c.l.b16 %v269
  %v1421 = vunpack.c.h.b16 %v269
  %v1422 = vunpack.c.l.b16 %v270
  %v1423 = vunpack.c.h.b16 %v270
  %v1424 = vunpack.c.l.b16 %v271
  %v1425 = vunpack.c.h.b16 %v271
  %v1426 = vunpack.c.l.b16 %v272
  %v1427 = vunpack.c.h.b16 %v272
  %v1428 = vunpack.c.l.b16 %v273
  %v1429 = vunpack.c.h.b16 %v273
  %v1430 = vunpack.c.l.b16 %v274
  %v1431 = vunpack.c.h.b16 %v274
  %v1432 = vunpack.c.l.b16 %v275
  %v1433 = vunpack.c.h.b16 %v275
  %v1434 = vunpack.c.l.b16 %v276
  %v1435 = vunpack.c.h.b16 %v276
  %v1436 = vunpack.c.l.b16 %v277
  %v1437 = vunpack.c.h.b16 %v277
  %v1438 = vunpack.c.l.b16 %v278
  %v1439 = vunpack.c.h.b16 %v278
  %v1440 = vunpack.c.l.b16 %v279
  %v1441 = vunpack.c.h.b16 %v279
  %v1442 = vunpack.c.l.b16 %v280
  %v1443 = vunpack.c.h.b16 %v280
  %v1444 = vunpack.c.l.b16 %v281
  %v1445 = vunpack.c.h.b16 %v281
  %v1446 = vunpack.c.l.b16 %v282
  %v1447 = vunpack.c.h.b16 %v282
  %v1448 = vunpack.c.l.b16 %v283
  %v1449 = vunpack.c.h.b16 %v283
  %v1450 = vunpack.c.l.b16 %v284
  %v1451 = vunpack.c.h.b16 %v284
  %v1452 = vunpack.c.l.b16 %v285
  %v1453 = vunpack.c.h.b16 %v285
  %v1454 = vunpack.c.l.b16 %v286
  %v1455 = vunpack.c.h.b16 %v286
  %v1456 = vunpack.c.l.b16 %v287
  %v1457 = vunpack.c.h.b16 %v287
  %v1458 = vunpack.c.l.b16 %v288
  %v1459 = vunpack.c.h.b16 %v288
  %v1460 = vunpack.c.l.b16 %v289
  %v1461 = vunpack.c.h.b16 %v289
  %v1462 = vunpack.c.l.b16 %v290
  %v1463 = vunpack.c.h.b16 %v290
  %v1464 = vunpack.c.l.b16 %v291
  %v1465 = vunpack.c.h.b16 %v291
  %v1466 = vunpack.c.l.b16 %v292
  %v1467 = vunpack.c.h.b16 %v292
  %v1468 = vunpack.c.l.b16 %v293
  %v1469 = vunpack.c.h.b16 %v293
  %v1470 = vunpack.c.l.b16 %v294
  %v1471 = vunpack.c.h.b16 %v294
  %v1472 = vunpack.c.l.b16 %v295
  %v1473 = vunpack.c.h.b16 %v295
  %v1474 = vunpack.c.l.b16 %v296
  %v1475 = vunpack.c.h.b16 %v296
  %v1476 = vunpack.c.l.b16 %v297
  %v1477 = vunpack.c.h.b16 %v297
  %v1478 = vunpack.c.l.b16 %v298
  %v1479 = vunpack.c.h.b16 %v298
  %v1480 = vunpack.c.l.b16 %v299
  %v1481 = vunpack.c.h.b16 %v299
  %v1482 = vunpack.c.l.b16 %v300
  %v1483 = vunpack.c.h.b16 %v300
  %v1484 = vunpack.c.l.b16 %v301
  %v1485 = vunpack.c.h.b16 %v301
  %v1486 = vunpack.c.l.b16 %v302
  %v1487 = vunpack.c.h.b16 %v302
  %v1488 = vunpack.c.l.b16 %v303
  %v1489 = vunpack.c.h.b16 %v303
  %v1490 = vunpack.c.l.b16 %v304
  %v1491 = vunpack.c.h.b16 %v304
  %v1492 = vunpack.c.l.b16 %v305
  %v1493 = vunpack.c.h.b16 %v305
  %v1494 = vunpack.c.l.b16 %v306
  %v1495 = vunpack.c.h.b16 %v306
  %v1496 = vunpack.c.l.b16 %v307
  %v1497 = vunpack.c.h.b16 %v307
  %v1498 = vunpack.c.l.b16 %v308
  %v1499 = vunpack.c.h.b16 %v308
  %v1500 = vunpack.c.l.b16 %v309
  %v1501 = vunpack.c.h.b16 %v309
  %v1502 = vunpack.c.l.b16 %v310
  %v1503 = vunpack.c.h.b16 %v310
  %v1504 = vunpack.c.l.b16 %v311
  %v1505 = vunpack.c.h.b16 %v311
  %v1506 = vunpack.c.l.b16 %v312
  %v1507 = vunpack.c.h.b16 %v312
  %v1508 = vunpack.c.l.b16 %v313
  %v1509 = vunpack.c.h.b16 %v313
  %v1510 = vunpack.c.l.b16 %v314
  %v1511 = vunpack.c.h.b16 %v314
  %v1512 = vunpack.c.l.b16 %v315
  %v1513 = vunpack.c.h.b16 %v315
  %v1514 = vunpack.c.l.b16 %v316
  %v1515 = vunpack.c.h.b16 %v316
  %v1516 = vunpack.c.l.b16 %v317
  %v1517 = vunpack.c.h.b16 %v317
  %v1518 = vunpack.c.l.b16 %v318
  %v1519 = vunpack.c.h.b16 %v318
  %v1520 = vunpack.c.l.b16 %v319
  %v1521 = vunpack.c.h.b16 %v319
  %v1522 = vunpack.c.l.b16 %v320
  %v1523 = vunpack.c.h.b16 %v320
  %v1524 = vunpack.c.l.b16 %v321
  %v1525 = vunpack.c.h.b16 %v321
  %v1526 = vunpack.c.l.b16 %v322
  %v1527 = vunpack.c.h.b16 %v322
  %v1528 = vunpack.c.l.b16 %v323
  %v1529 = vunpack.c.h.b16 %v323
  %v1530 = vunpack.c.l.b16 %v324
  %v1531 = vunpack.c.h.b16 %v324
  %v1532 = vunpack.c.l.b16 %v325
  %v1533 = vunpack.c.h.b16 %v325
  %v1534 = vunpack.c.l.b16 %v326
  %v1535 = vunpack.c.h.b16 %v326
  %v1536 = vunpack.c.l.b16 %v327
  %v1537 = vunpack.c.h.b16 %v327
  %v1538 = vunpack.c.l.b16 %v328
  %v1539 = vunpack.c.h.b16 %v328
  %v1540 = vunpack.c.l.b16 %v329
  %v1541 = vunpack.c.h.b16 %v329
  %v1542 = vunpack.c.l.b16 %v330
  %v1543 = vunpack.c.h.b16 %v330
  %v1544 = vunpack.c.l.b16 %v331
  %v1545 = vunpack.c.h.b16 %v331
  %v1546 = vunpack.c.l.b16 %v332
  %v1547 = vunpack.c.h.b16 %v332
  %v1548 = vunpack.c.l.b16 %v333
  %v1549 = vunpack.c.h.b16 %v333
  %v1550 = vunpack.c.l.b16 %v334
  %v1551 = vunpack.c.h.b16 %v334
  %v1552 = vunpack.c.l.b16 %v335
  %v1553 = vunpack.c.h.b16 %v335
  %v1554 = vunpack.c.l.b16 %v336
  %v1555 = vunpack.c.h.b16 %v336
  %v1556 = vunpack.c.l.b16 %v337
  %v1557 = vunpack.c.h.b16 %v337
  %v1558 = vunpack.c.l.b16 %v338
  %v1559 = vunpack.c.h.b16 %v338
  %v1560 = vunpack.c.l.b16 %v339
  %v1561 = vunpack.c.h.b16 %v339
  %v1562 = vunpack.c.l.b16 %v340
  %v1563 = vunpack.c.h.b16 %v340
  %v1564 = vunpack.c.l.b16 %v341
  %v1565 = vunpack.c.h.b16 %v341
  %v1566 = vunpack.c.l.b16 %v342
  %v1567 = vunpack.c.h.b16 %v342
  %v1568 = vunpack.c.l.b16 %v343
  %v1569 = vunpack.c.h.b16 %v343
  %v1570 = vunpack.c.l.b16 %v344
  %v1571 = vunpack.c.h.b16 %v344
  %v1572 = vunpack.c.l.b16 %v345
  %v1573 = vunpack.c.h.b16 %v345
  %v1574 = vunpack.c.l.b16 %v346
  %v1575 = vunpack.c.h.b16 %v346
  %v1576 = vunpack.c.l.b16 %v347
  %v1577 = vunpack.c.h.b16 %v347
  %v1578 = vunpack.c.l.b16 %v348
  %v1579 = vunpack.c.h.b16 %v348
  %v1580 = vunpack.c.l.b16 %v349
  %v1581 = vunpack.c.h.b16 %v349
  %v1582 = vunpack.c.l.b16 %v350
  %v1583 = vunpack.c.h.b16 %v350
  %v1584 = vunpack.c.l.b16 %v351
  %v1585 = vunpack.c.h.b16 %v351
  %v1586 = vunpack.c.l.b16 %v352
  %v1587 = vunpack.c.h.b16 %v352
  %v1588 = vunpack.c.l.b16 %v353
  %v1589 = vunpack.c.h.b16 %v353
  %v1590 = vunpack.c.l.b16 %v354
  %v1591 = vunpack.c.h.b16 %v354
  %v1592 = vunpack.c.l.b16 %v355
  %v1593 = vunpack.c.h.b16 %v355
  %v1594 = vunpack.c.l.b16 %v356
  %v1595 = vunpack.c.h.b16 %v356
  %v1596 = vunpack.c.l.b16 %v357
  %v1597 = vunpack.c.h.b16 %v357
  %v1598 = vunpack.c.l.b16 %v358
  %v1599 = vunpack.c.h.b16 %v358
  %v1600 = vunpack.c.l.b16 %v359
  %v1601 = vunpack.c.h.b16 %v359
  %v1602 = vunpack.c.l.b16 %v360
  %v1603 = vunpack.c.h.b16 %v360
  %v1604 = vunpack.c.l.b16 %v361
  %v1605 = vunpack.c.h.b16 %v361
  %v1606 = vunpack.c.l.b16 %v362
  %v1607 = vunpack.c.h.b16 %v362
  %v1608 = vunpack.c.l.b16 %v363
  %v1609 = vunpack.c.h.b16 %v363
  %v1610 = vunpack.c.l.b16 %v364
  %v1611 = vunpack.c.h.b16 %v364
  %v1612 = vunpack.c.l.b16 %v365
  %v1613 = vunpack.c.h.b16 %v365
  %v1614 = vunpack.c.l.b16 %v366
  %v1615 = vunpack.c.h.b16 %v366
  %v1616 = vunpack.c.l.b16 %v367
  %v1617 = vunpack.c.h.b16 %v367
  %v1618 = vunpack.c.l.b16 %v368
  %v1619 = vunpack.c.h.b16 %v368
  %v1620 = vunpack.c.l.b16 %v369
  %v1621 = vunpack.c.h.b16 %v369
  %v1622 = vunpack.c.l.b16 %v370
  %v1623 = vunpack.c.h.b16 %v370
  %v1624 = vunpack.c.l.b16 %v371
  %v1625 = vunpack.c.h.b16 %v371
  %v1626 = vunpack.c.l.b16 %v372
  %v1627 = vunpack.c.h.b16 %v372
  %v1628 = vunpack.c.l.b16 %v373
  %v1629 = vunpack.c.h.b16 %v373
  %v1630 = vunpack.c.l.b16 %v374
  %v1631 = vunpack.c.h.b16 %v374
  %v1632 = vunpack.c.l.b16 %v375
  %v1633 = vunpack.c.h.b16 %v375
  %v1634 = vunpack.c.l.b16 %v376
  %v1635 = vunpack.c.h.b16 %v376
  %v1636 = vunpack.c.l.b16 %v377
  %v1637 = vunpack.c.h.b16 %v377
  %v1638 = vunpack.c.l.b16 %v378
  %v1639 = vunpack.c.h.b16 %v378
  %v1640 = vunpack.c.l.b16 %v379
  %v1641 = vunpack.c.h.b16 %v379
  %v1642 = vunpack.c.l.b16 %v380
  %v1643 = vunpack.c.h.b16 %v380
  %v1644 = vunpack.c.l.b16 %v381
  %v1645 = vunpack.c.h.b16 %v381
  %v1646 = vunpack.c.l.b16 %v382
  %v1647 = vunpack.c.h.b16 %v382
  %v1648 = vunpack.c.l.b16 %v383
  %v1649 = vunpack.c.h.b16 %v383
  %v1650 = vunpack.c.l.b16 %v384
  %v1651 = vunpack.c.h.b16 %v384
  %v1652 = vunpack.c.l.b16 %v385
  %v1653 = vunpack.c.h.b16 %v385
  %v1654 = vunpack.c.l.b16 %v386
  %v1655 = vunpack.c.h.b16 %v386
  %v1656 = vunpack.c.l.b16 %v387
  %v1657 = vunpack.c.h.b16 %v387
  %v1658 = vunpack.c.l.b16 %v388
  %v1659 = vunpack.c.h.b16 %v388
  %v1660 = vunpack.c.l.b16 %v389
  %v1661 = vunpack.c.h.b16 %v389
  %v1662 = vunpack.c.l.b16 %v390
  %v1663 = vunpack.c.h.b16 %v390
  %v1664 = vunpack.c.l.b16 %v391
  %v1665 = vunpack.c.h.b16 %v391
  %v1666 = vunpack.c.l.b16 %v392
  %v1667 = vunpack.c.h.b16 %v392
  %v1668 = vunpack.c.l.b16 %v393
  %v1669 = vunpack.c.h.b16 %v393
  %v1670 = vunpack.c.l.b16 %v394
  %v1671 = vunpack.c.h.b16 %v394
  %v1672 = vunpack.c.l.b16 %v395
  %v1673 = vunpack.c.h.b16 %v395
  %v1674 = vunpack.c.l.b16 %v396
  %v1675 = vunpack.c.h.b16 %v396
  %v1676 = vunpack.c.l.b16 %v397
  %v1677 = vunpack.c.h.b16 %v397
  %v1678 = vunpack.c.l.b16 %v398
  %v1679 = vunpack.c.h.b16 %v398
  %v1680 = vunpack.c.l.b16 %v399
  %v1681 = vunpack.c.h.b16 %v399
  %v1682 = vunpack.c.l.b16 %v400
  %v1683 = vunpack.c.h.b16 %v400
  %v1684 = vunpack.c.l.b16 %v401
  %v1685 = vunpack.c.h.b16 %v401
  %v1686 = vunpack.c.l.b16 %v402
  %v1687 = vunpack.c.h.b16 %v402
  %v1688 = vunpack.c.l.b16 %v403
  %v1689 = vunpack.c.h.b16 %v403
  %v1690 = vunpack.c.l.b16 %v404
  %v1691 = vunpack.c.h.b16 %v404
  %v1692 = vunpack.c.l.b16 %v405
  %v1693 = vunpack.c.h.b16 %v405
  %v1694 = vunpack.c.l.b16 %v406
  %v1695 = vunpack.c.h.b16 %v406
  %v1696 = vunpack.c.l.b16 %v407
  %v1697 = vunpack.c.h.b16 %v407
  %v1698 = vunpack.c.l.b16 %v408
  %v1699 = vunpack.c.h.b16 %v408
  %v1700 = vunpack.c.l.b16 %v409
  %v1701 = vunpack.c.h.b16 %v409
  %v1702 = vunpack.c.l.b16 %v410
  %v1703 = vunpack.c.h.b16 %v410
  %v1704 = vunpack.c.l.b16 %v411
  %v1705 = vunpack.c.h.b16 %v411
  %v1706 = vunpack.c.l.b16 %v412
  %v1707 = vunpack.c.h.b16 %v412
  %v1708 = vunpack.c.l.b16 %v413
  %v1709 = vunpack.c.h.b16 %v413
  %v1710 = vunpack.c.l.b16 %v414
  %v1711 = vunpack.c.h.b16 %v414
  %v1712 = vunpack.c.l.b16 %v415
  %v1713 = vunpack.c.h.b16 %v415
  %v1714 = vunpack.c.l.b16 %v416
  %v1715 = vunpack.c.h.b16 %v416
  %v1716 = vunpack.c.l.b16 %v417
  %v1717 = vunpack.c.h.b16 %v417
  %v1718 = vunpack.c.l.b16 %v418
  %v1719 = vunpack.c.h.b16 %v418
  %v1720 = vunpack.c.l.b16 %v419
  %v1721 = vunpack.c.h.b16 %v419
  %v1722 = vunpack.c.l.b16 %v420
  %v1723 = vunpack.c.h.b16 %v420
  %v1724 = vunpack.c.l.b16 %v421
  %v1725 = vunpack.c.h.b16 %v421
  %v1726 = vunpack.c.l.b16 %v422
  %v1727 = vunpack.c.h.b16 %v422
  %v1728 = vunpack.c.l.b16 %v423
  %v1729 = vunpack.c.h.b16 %v423
  %v1730 = vunpack.c.l.b16 %v424
  %v1731 = vunpack.c.h.b16 %v424
  %v1732 = vunpack.c.l.b16 %v425
  %v1733 = vunpack.c.h.b16 %v425
  %v1734 = vunpack.c.l.b16 %v426
  %v1735 = vunpack.c.h.b16 %v426
  %v1736 = vunpack.c.l.b16 %v427
  %v1737 = vunpack.c.h.b16 %v427
  %v1738 = vunpack.c.l.b16 %v428
  %v1739 = vunpack.c.h.b16 %v428
  %v1740 = vunpack.c.l.b16 %v429
  %v1741 = vunpack.c.h.b16 %v429
  %v1742 = vunpack.c.l.b16 %v430
  %v1743 = vunpack.c.h.b16 %v430
  %v1744 = vunpack.c.l.b16 %v431
  %v1745 = vunpack.c.h.b16 %v431
  %v1746 = vunpack.c.l.b16 %v432
  %v1747 = vunpack.c.h.b16 %v432
  %v1748 = vunpack.c.l.b16 %v433
  %v1749 = vunpack.c.h.b16 %v433
  %v1750 = vunpack.c.l.b16 %v434
  %v1751 = vunpack.c.h.b16 %v434
  %v1752 = vunpack.c.l.b16 %v435
  %v1753 = vunpack.c.h.b16 %v435
  %v1754 = vunpack.c.l.b16 %v436
  %v1755 = vunpack.c.h.b16 %v436
  %v1756 = vunpack.c.l.b16 %v437
  %v1757 = vunpack.c.h.b16 %v437
  %v1758 = vunpack.c.l.b16 %v438
  %v1759 = vunpack.c.h.b16 %v438
  %v1760 = vunpack.c.l.b16 %v439
  %v1761 = vunpack.c.h.b16 %v439
  %v1762 = vunpack.c.l.b16 %v440
  %v1763 = vunpack.c.h.b16 %v440
  %v1764 = vunpack.c.l.b16 %v441
  %v1765 = vunpack.c.h.b16 %v441
  %v1766 = vunpack.c.l.b16 %v442
  %v1767 = vunpack.c.h.b16 %v442
  %v1768 = vunpack.c.l.b16 %v443
  %v1769 = vunpack.c.h.b16 %v443
  %v1770 = vpack.c.b16 %v972, %v970
  %v1771 = vpack.c.b16 %v973, %v971
  %v1772 = vpack.c.b16 %v976, %v974
  %v1773 = vpack.c.b16 %v977, %v975
  %v1774 = vpack.c.b16 %v980, %v978
  %v1775 = vpack.c.b16 %v981, %v979
  %v1776 = vpack.c.b16 %v984, %v982
  %v1777 = vpack.c.b16 %v985, %v983
  %v1778 = vpack.c.b16 %v988, %v986
  %v1779 = vpack.c.b16 %v989, %v987
  %v1780 = vpack.c.b16 %v992, %v990
  %v1781 = vpack.c.b16 %v993, %v991
  %v1782 = vpack.c.b16 %v996, %v994
  %v1783 = vpack.c.b16 %v997, %v995
  %v1784 = vpack.c.b16 %v1000, %v998
  %v1785 = vpack.c.b16 %v1001, %v999
  %v1786 = vpack.c.b16 %v1004, %v1002
  %v1787 = vpack.c.b16 %v1005, %v1003
  %v1788 = vpack.c.b16 %v1008, %v1006
  %v1789 = vpack.c.b16 %v1009, %v1007
  %v1790 = vpack.c.b16 %v1012, %v1010
  %v1791 = vpack.c.b16 %v1013, %v1011
  %v1792 = vpack.c.b16 %v1016, %v1014
  %v1793 = vpack.c.b16 %v1017, %v1015
  %v1794 = vpack.c.b16 %v1020, %v1018
  %v1795 = vpack.c.b16 %v1021, %v1019
  %v1796 = vpack.c.b16 %v1024, %v1022
  %v1797 = vpack.c.b16 %v1025, %v1023
  %v1798 = vpack.c.b16 %v1028, %v1026
  %v1799 = vpack.c.b16 %v1029, %v1027
  %v1800 = vpack.c.b16 %v1032, %v1030
  %v1801 = vpack.c.b16 %v1033, %v1031
  %v1802 = vpack.c.b16 %v1036, %v1034
  %v1803 = vpack.c.b16 %v1037, %v1035
  %v1804 = vpack.c.b16 %v1040, %v1038
  %v1805 = vpack.c.b16 %v1041, %v1039
  %v1806 = vpack.c.b16 %v1044, %v1042
  %v1807 = vpack.c.b16 %v1045, %v1043
  %v1808 = vpack.c.b16 %v1048, %v1046
  %v1809 = vpack.c.b16 %v1049, %v1047
  %v1810 = vpack.c.b16 %v1052, %v1050
  %v1811 = vpack.c.b16 %v1053, %v1051
  %v1812 = vpack.c.b16 %v1056, %v1054
  %v1813 = vpack.c.b16 %v1057, %v1055
  %v1814 = vpack.c.b16 %v1060, %v1058
  %v1815 = vpack.c.b16 %v1061, %v1059
  %v1816 = vpack.c.b16 %v1064, %v1062
  %v1817 = vpack.c.b16 %v1065, %v1063
  %v1818 = vpack.c.b16 %v1068, %v1066
  %v1819 = vpack.c.b16 %v1069, %v1067
  %v1820 = vpack.c.b16 %v1072, %v1070
  %v1821 = vpack.c.b16 %v1073, %v1071
  %v1822 = vpack.c.b16 %v1076, %v1074
  %v1823 = vpack.c.b16 %v1077, %v1075
  %v1824 = vpack.c.b16 %v1080, %v1078
  %v1825 = vpack.c.b16 %v1081, %v1079
  %v1826 = vpack.c.b16 %v1084, %v1082
  %v1827 = vpack.c.b16 %v1085, %v1083
  %v1828 = vpack.c.b16 %v1088, %v1086
  %v1829 = vpack.c.b16 %v1089, %v1087
  %v1830 = vpack.c.b16 %v1092, %v1090
  %v1831 = vpack.c.b16 %v1093, %v1091
  %v1832 = vpack.c.b16 %v1096, %v1094
  %v1833 = vpack.c.b16 %v1097, %v1095
  %v1834 = vpack.c.b16 %v1100, %v1098
  %v1835 = vpack.c.b16 %v1101, %v1099
  %v1836 = vpack.c.b16 %v1104, %v1102
  %v1837 = vpack.c.b16 %v1105, %v1103
  %v1838 = vpack.c.b16 %v1108, %v1106
  %v1839 = vpack.c.b16 %v1109, %v1107
  %v1840 = vpack.c.b16 %v1112, %v1110
  %v1841 = vpack.c.b16 %v1113, %v1111
  %v1842 = vpack.c.b16 %v1116, %v1114
  %v1843 = vpack.c.b16 %v1117, %v1115
  %v1844 = vpack.c.b16 %v1120, %v1118
  %v1845 = vpack.c.b16 %v1121, %v1119
  %v1846 = vpack.c.b16 %v1124, %v1122
  %v1847 = vpack.c.b16 %v1125, %v1123
  %v1848 = vpack.c.b16 %v1128, %v1126
  %v1849 = vpack.c.b16 %v1129, %v1127
  %v1850 = vpack.c.b16 %v1132, %v1130
  %v1851 = vpack.c.b16 %v1133, %v1131
  %v1852 = vpack.c.b16 %v1136, %v1134
  %v1853 = vpack.c.b16 %v1137, %v1135
  %v1854 = vpack.c.b16 %v1140, %v1138
  %v1855 = vpack.c.b16 %v1141, %v1139
  %v1856 = vpack.c.b16 %v1144, %v1142
  %v1857 = vpack.c.b16 %v1145, %v1143
  %v1858 = vpack.c.b16 %v1148, %v1146
  %v1859 = vpack.c.b16 %v1149, %v1147
  %v1860 = vpack.c.b16 %v1152, %v1150
  %v1861 = vpack.c.b16 %v1153, %v1151
  %v1862 = vpack.c.b16 %v1156, %v1154
  %v1863 = vpack.c.b16 %v1157, %v1155
  %v1864 = vpack.c.b16 %v1160, %v1158
  %v1865 = vpack.c.b16 %v1161, %v1159
  %v1866 = vpack.c.b16 %v1164, %v1162
  %v1867 = vpack.c.b16 %v1165, %v1163
  %v1868 = vpack.c.b16 %v1168, %v1166
  %v1869 = vpack.c.b16 %v1169, %v1167
  %v1870 = vpack.c.b16 %v1172, %v1170
  %v1871 = vpack.c.b16 %v1173, %v1171
  %v1872 = vpack.c.b16 %v1176, %v1174
  %v1873 = vpack.c.b16 %v1177, %v1175
  %v1874 = vpack.c.b16 %v1180, %v1178
  %v1875 = vpack.c.b16 %v1181, %v1179
  %v1876 = vpack.c.b16 %v1184, %v1182
  %v1877 = vpack.c.b16 %v1185, %v1183
  %v1878 = vpack.c.b16 %v1188, %v1186
  %v1879 = vpack.c.b16 %v1189, %v1187
  %v1880 = vpack.c.b16 %v1192, %v1190
  %v1881 = vpack.c.b16 %v1193, %v1191
  %v1882 = vpack.c.b16 %v1196, %v1194
  %v1883 = vpack.c.b16 %v1197, %v1195
  %v1884 = vpack.c.b16 %v1200, %v1198
  %v1885 = vpack.c.b16 %v1201, %v1199
  %v1886 = vpack.c.b16 %v1204, %v1202
  %v1887 = vpack.c.b16 %v1205, %v1203
  %v1888 = vpack.c.b16 %v1208, %v1206
  %v1889 = vpack.c.b16 %v1209, %v1207
  %v1890 = vpack.c.b16 %v1212, %v1210
  %v1891 = vpack.c.b16 %v1213, %v1211
  %v1892 = vpack.c.b16 %v1216, %v1214
  %v1893 = vpack.c.b16 %v1217, %v1215
  %v1894 = vpack.c.b16 %v1220, %v1218
  %v1895 = vpack.c.b16 %v1221, %v1219
  %v1896 = vpack.c.b16 %v1224, %v1222
  %v1897 = vpack.c.b16 %v1225, %v1223
  %v1898 = vpack.c.b16 %v1228, %v1226
  %v1899 = vpack.c.b16 %v1229, %v1227
  %v1900 = vpack.c.b16 %v1232, %v1230
  %v1901 = vpack.c.b16 %v1233, %v1231
  %v1902 = vpack.c.b16 %v1236, %v1234
  %v1903 = vpack.c.b16 %v1237, %v1235
  %v1904 = vpack.c.b16 %v1240, %v1238
  %v1905 = vpack.c.b16 %v1241, %v1239
  %v1906 = vpack.c.b16 %v1244, %v1242
  %v1907 = vpack.c.b16 %v1245, %v1243
  %v1908 = vpack.c.b16 %v1248, %v1246
  %v1909 = vpack.c.b16 %v1249, %v1247
  %v1910 = vpack.c.b16 %v1252, %v1250
  %v1911 = vpack.c.b16 %v1253, %v1251
  %v1912 = vpack.c.b16 %v1256, %v1254
  %v1913 = vpack.c.b16 %v1257, %v1255
  %v1914 = vpack.c.b16 %v1260, %v1258
  %v1915 = vpack.c.b16 %v1261, %v1259
  %v1916 = vpack.c.b16 %v1264, %v1262
  %v1917 = vpack.c.b16 %v1265, %v1263
  %v1918 = vpack.c.b16 %v1268, %v1266
  %v1919 = vpack.c.b16 %v1269, %v1267
  %v1920 = vpack.c.b16 %v1272, %v1270
  %v1921 = vpack.c.b16 %v1273, %v1271
  %v1922 = vpack.c.b16 %v1276, %v1274
  %v1923 = vpack.c.b16 %v1277, %v1275
  %v1924 = vpack.c.b16 %v1280, %v1278
  %v1925 = vpack.c.b16 %v1281, %v1279
  %v1926 = vpack.c.b16 %v1284, %v1282
  %v1927 = vpack.c.b16 %v1285, %v1283
  %v1928 = vpack.c.b16 %v1288, %v1286
  %v1929 = vpack.c.b16 %v1289, %v1287
  %v1930 = vpack.c.b16 %v1292, %v1290
  %v1931 = vpack.c.b16 %v1293, %v1291
  %v1932 = vpack.c.b16 %v1296, %v1294
  %v1933 = vpack.c.b16 %v1297, %v1295
  %v1934 = vpack.c.b16 %v1300, %v1298
  %v1935 = vpack.c.b16 %v1301, %v1299
  %v1936 = vpack.c.b16 %v1304, %v1302
  %v1937 = vpack.c.b16 %v1305, %v1303
  %v1938 = vpack.c.b16 %v1308, %v1306
  %v1939 = vpack.c.b16 %v1309, %v1307
  %v1940 = vpack.c.b16 %v1312, %v1310
  %v1941 = vpack.c.b16 %v1313, %v1311
  %v1942 = vpack.c.b16 %v1316, %v1314
  %v1943 = vpack.c.b16 %v1317, %v1315
  %v1944 = vpack.c.b16 %v1320, %v1318
  %v1945 = vpack.c.b16 %v1321, %v1319
  %v1946 = vpack.c.b16 %v1324, %v1322
  %v1947 = vpack.c.b16 %v1325, %v1323
  %v1948 = vpack.c.b16 %v1328, %v1326
  %v1949 = vpack.c.b16 %v1329, %v1327
  %v1950 = vpack.c.b16 %v1332, %v1330
  %v1951 = vpack.c.b16 %v1333, %v1331
  %v1952 = vpack.c.b16 %v1336, %v1334
  %v1953 = vpack.c.b16 %v1337, %v1335
  %v1954 = vpack.c.b16 %v1340, %v1338
  %v1955 = vpack.c.b16 %v1341, %v1339
  %v1956 = vpack.c.b16 %v1344, %v1342
  %v1957 = vpack.c.b16 %v1345, %v1343
  %v1958 = vpack.c.b16 %v1348, %v1346
  %v1959 = vpack.c.b16 %v1349, %v1347
  %v1960 = vpack.c.b16 %v1352, %v1350
  %v1961 = vpack.c.b16 %v1353, %v1351
  %v1962 = vpack.c.b16 %v1356, %v1354
  %v1963 = vpack.c.b16 %v1357, %v1355
  %v1964 = vpack.c.b16 %v1360, %v1358
  %v1965 = vpack.c.b16 %v1361, %v1359
  %v1966 = vpack.c.b16 %v1364, %v1362
  %v1967 = vpack.c.b16 %v1365, %v1363
  %v1968 = vpack.c.b16 %v1368, %v1366
  %v1969 = vpack.c.b16 %v1369, %v1367
  %v1970 = vpack.c.b16 %v1372, %v1370
  %v1971 = vpack.c.b16 %v1373, %v1371
  %v1972 = vpack.c.b16 %v1376, %v1374
  %v1973 = vpack.c.b16 %v1377, %v1375
  %v1974 = vpack.c.b16 %v1380, %v1378
  %v1975 = vpack.c.b16 %v1381, %v1379
  %v1976 = vpack.c.b16 %v1384, %v1382
  %v1977 = vpack.c.b16 %v1385, %v1383
  %v1978 = vpack.c.b16 %v1388, %v1386
  %v1979 = vpack.c.b16 %v1389, %v1387
  %v1980 = vpack.c.b16 %v1392, %v1390
  %v1981 = vpack.c.b16 %v1393, %v1391
  %v1982 = vpack.c.b16 %v1396, %v1394
  %v1983 = vpack.c.b16 %v1397, %v1395
  %v1984 = vpack.c.b16 %v1400, %v1398
  %v1985 = vpack.c.b16 %v1401, %v1399
  %v1986 = vpack.c.b16 %v1404, %v1402
  %v1987 = vpack.c.b16 %v1405, %v1403
  %v1988 = vpack.c.b16 %v1408, %v1406
  %v1989 = vpack.c.b16 %v1409, %v1407
  %v1990 = vpack.c.b16 %v1412, %v1410
  %v1991 = vpack.c.b16 %v1413, %v1411
  %v1992 = vpack.c.b16 %v1416, %v1414
  %v1993 = vpack.c.b16 %v1417, %v1415
  %v1994 = vpack.c.b16 %v1420, %v1418
  %v1995 = vpack.c.b16 %v1421, %v1419
  %v1996 = vpack.c.b16 %v1424, %v1422
  %v1997 = vpack.c.b16 %v1425, %v1423
  %v1998 = vpack.c.b16 %v1428, %v1426
  %v1999 = vpack.c.b16 %v1429, %v1427
  %v2000 = vpack.c.b16 %v1432, %v1430
  %v2001 = vpack.c.b16 %v1433, %v1431
  %v2002 = vpack.c.b16 %v1436, %v1434
  %v2003 = vpack.c.b16 %v1437, %v1435
  %v2004 = vpack.c.b16 %v1440, %v1438
  %v2005 = vpack.c.b16 %v1441, %v1439
  %v2006 = vpack.c.b16 %v1444, %v1442
  %v2007 = vpack.c.b16 %v1445, %v1443
  %v2008 = vpack.c.b16 %v1448, %v1446
  %v2009 = vpack.c.b16 %v1449, %v1447
  %v2010 = vpack.c.b16 %v1452, %v1450
  %v2011 = vpack.c.b16 %v1453, %v1451
  %v2012 = vpack.c.b16 %v1456, %v1454
  %v2013 = vpack.c.b16 %v1457, %v1455
  %v2014 = vpack.c.b16 %v1460, %v1458
  %v2015 = vpack.c.b16 %v1461, %v1459
  %v2016 = vpack.c.b16 %v1464, %v1462
  %v2017 = vpack.c.b16 %v1465, %v1463
  %v2018 = vpack.c.b16 %v1468, %v1466
  %v2019 = vpack.c.b16 %v1469, %v1467
  %v2020 = vpack.c.b16 %v1472, %v1470
  %v2021 = vpack.c.b16 %v1473, %v1471
  %v2022 = vpack.c.b16 %v1476, %v1474
  %v2023 = vpack.c.b16 %v1477, %v1475
  %v2024 = vpack.c.b16 %v1480, %v1478
  %v2025 = vpack.c.b16 %v1481, %v1479
  %v2026 = vpack.c.b16 %v1484, %v1482
  %v2027 = vpack.c.b16 %v1485, %v1483
  %v2028 = vpack.c.b16 %v1488, %v1486
  %v2029 = vpack.c.b16 %v1489, %v1487
  %v2030 = vpack.c.b16 %v1492, %v1490
  %v2031 = vpack.c.b16 %v1493, %v1491
  %v2032 = vpack.c.b16 %v1496, %v1494
  %v2033 = vpack.c.b16 %v1497, %v1495
  %v2034 = vpack.c.b16 %v1500, %v1498
  %v2035 = vpack.c.b16 %v1501, %v1499
  %v2036 = vpack.c.b16 %v1504, %v1502
  %v2037 = vpack.c.b16 %v1505, %v1503
  %v2038 = vpack.c.b16 %v1508, %v1506
  %v2039 = vpack.c.b16 %v1509, %v1507
  %v2040 = vpack.c.b16 %v1512, %v1510
  %v2041 = vpack.c.b16 %v1513, %v1511
  %v2042 = vpack.c.b16 %v1516, %v1514
  %v2043 = vpack.c.b16 %v1517, %v1515
  %v2044 = vpack.c.b16 %v1520, %v1518
  %v2045 = vpack.c.b16 %v1521, %v1519
  %v2046 = vpack.c.b16 %v1524, %v1522
  %v2047 = vpack.c.b16 %v1525, %v1523
  %v2048 = vpack.c.b16 %v1528, %v1526
  %v2049 = vpack.c.b16 %v1529, %v1527
  %v2050 = vpack.c.b16 %v1532, %v1530
  %v2051 = vpack.c.b16 %v1533, %v1531
  %v2052 = vpack.c.b16 %v1536, %v1534
  %v2053 = vpack.c.b16 %v1537, %v1535
  %v2054 = vpack.c.b16 %v1540, %v1538
  %v2055 = vpack.c.b16 %v1541, %v1539
  %v2056 = vpack.c.b16 %v1544, %v1542
  %v2057 = vpack.c.b16 %v1545, %v1543
  %v2058 = vpack.c.b16 %v1548, %v1546
  %v2059 = vpack.c.b16 %v1549, %v1547
  %v2060 = vpack.c.b16 %v1552, %v1550
  %v2061 = vpack.c.b16 %v1553, %v1551
  %v2062 = vpack.c.b16 %v1556, %v1554
  %v2063 = vpack.c.b16 %v1557, %v1555
  %v2064 = vpack.c.b16 %v1560, %v1558
  %v2065 = vpack.c.b16 %v1561, %v1559
  %v2066 = vpack.c.b16 %v1564, %v1562
  %v2067 = vpack.c.b16 %v1565, %v1563
  %v2068 = vpack.c.b16 %v1568, %v1566
  %v2069 = vpack.c.b16 %v1569, %v1567
  %v2070 = vpack.c.b16 %v1572, %v1570
  %v2071 = vpack.c.b16 %v1573, %v1571
  %v2072 = vpack.c.b16 %v1576, %v1574
  %v2073 = vpack.c.b16 %v1577, %v1575
  %v2074 = vpack.c.b16 %v1580, %v1578
  %v2075 = vpack.c.b16 %v1581, %v1579
  %v2076 = vpack.c.b16 %v1584, %v1582
  %v2077 = vpack.c.b16 %v1585, %v1583
  %v2078 = vpack.c.b16 %v1588, %v1586
  %v2079 = vpack.c.b16 %v1589, %v1587
  %v2080 = vpack.c.b16 %v1592, %v1590
  %v2081 = vpack.c.b16 %v1593, %v1591
  %v2082 = vpack.c.b16 %v1596, %v1594
  %v2083 = vpack.c.b16 %v1597, %v1595
  %v2084 = vpack.c.b16 %v1600, %v1598
  %v2085 = vpack.c.b16 %v1601, %v1599
  %v2086 = vpack.c.b16 %v1604, %v1602
  %v2087 = vpack.c.b16 %v1605, %v1603
  %v2088 = vpack.c.b16 %v1608, %v1606
  %v2089 = vpack.c.b16 %v1609, %v1607
  %v2090 = vpack.c.b16 %v1612, %v1610
  %v2091 = vpack.c.b16 %v1613, %v1611
  %v2092 = vpack.c.b16 %v1616, %v1614
  %v2093 = vpack.c.b16 %v1617, %v1615
  %v2094 = vpack.c.b16 %v1620, %v1618
  %v2095 = vpack.c.b16 %v1621, %v1619
  %v2096 = vpack.c.b16 %v1624, %v1622
  %v2097 = vpack.c.b16 %v1625, %v1623
  %v2098 = vpack.c.b16 %v1628, %v1626
  %v2099 = vpack.c.b16 %v1629, %v1627
  %v2100 = vpack.c.b16 %v1632, %v1630
  %v2101 = vpack.c.b16 %v1633, %v1631
  %v2102 = vpack.c.b16 %v1636, %v1634
  %v2103 = vpack.c.b16 %v1637, %v1635
  %v2104 = vpack.c.b16 %v1640, %v1638
  %v2105 = vpack.c.b16 %v1641, %v1639
  %v2106 = vpack.c.b16 %v1644, %v1642
  %v2107 = vpack.c.b16 %v1645, %v1643
  %v2108 = vpack.c.b16 %v1648, %v1646
  %v2109 = vpack.c.b16 %v1649, %v1647
  %v2110 = vpack.c.b16 %v1652, %v1650
  %v2111 = vpack.c.b16 %v1653, %v1651
  %v2112 = vpack.c.b16 %v1656, %v1654
  %v2113 = vpack.c.b16 %v1657, %v1655
  %v2114 = vpack.c.b16 %v1660, %v1658
  %v2115 = vpack.c.b16 %v1661, %v1659
  %v2116 = vpack.c.b16 %v1664, %v1662
  %v2117 = vpack.c.b16 %v1665, %v1663
  %v2118 = vpack.c.b16 %v1668, %v1666
  %v2119 = vpack.c.b16 %v1669, %v1667
  %v2120 = vpack.c.b16 %v1672, %v1670
  %v2121 = vpack.c.b16 %v1673, %v1671
  %v2122 = vpack.c.b16 %v1676, %v1674
  %v2123 = vpack.c.b16 %v1677, %v1675
  %v2124 = vpack.c.b16 %v1680, %v1678
  %v2125 = vpack.c.b16 %v1681, %v1679
  %v2126 = vpack.c.b16 %v1684, %v1682
  %v2127 = vpack.c.b16 %v1685, %v1683
  %v2128 = vpack.c.b16 %v1688, %v1686
  %v2129 = vpack.c.b16 %v1689, %v1687
  %v2130 = vpack.c.b16 %v1692, %v1690
  %v2131 = vpack.c.b16 %v1693, %v1691
  %v2132 = vpack.c.b16 %v1696, %v1694
  %v2133 = vpack.c.b16 %v1697, %v1695
  %v2134 = vpack.c.b16 %v1700, %v1698
  %v2135 = vpack.c.b16 %v1701, %v1699
  %v2136 = vpack.c.b16 %v1704, %v1702
  %v2137 = vpack.c.b16 %v1705, %v1703
  %v2138 = vpack.c.b16 %v1708, %v1706
  %v2139 = vpack.c.b16 %v1709, %v1707
  %v2140 = vpack.c.b16 %v1712, %v1710
  %v2141 = vpack.c.b16 %v1713, %v1711
  %v2142 = vpack.c.b16 %v1716, %v1714
  %v2143 = vpack.c.b16 %v1717, %v1715
  %v2144 = vpack.c.b16 %v1720, %v1718
  %v2145 = vpack.c.b16 %v1721, %v1719
  %v2146 = vpack.c.b16 %v1724, %v1722
  %v2147 = vpack.c.b16 %v1725, %v1723
  %v2148 = vpack.c.b16 %v1728, %v1726
  %v2149 = vpack.c.b16 %v1729, %v1727
  %v2150 = vpack.c.b16 %v1732, %v1730
  %v2151 = vpack.c.b16 %v1733, %v1731
  %v2152 = vpack.c.b16 %v1736, %v1734
  %v2153 = vpack.c.b16 %v1737, %v1735
  %v2154 = vpack.c.b16 %v1740, %v1738
  %v2155 = vpack.c.b16 %v1741, %v1739
  %v2156 = vpack.c.b16 %v1744, %v1742
  %v2157 = vpack.c.b16 %v1745, %v1743
  %v2158 = vpack.c.b16 %v1748, %v1746
  %v2159 = vpack.c.b16 %v1749, %v1747
  %v2160 = vpack.c.b16 %v1752, %v1750
  %v2161 = vpack.c.b16 %v1753, %v1751
  %v2162 = vpack.c.b16 %v1756, %v1754
  %v2163 = vpack.c.b16 %v1757, %v1755
  %v2164 = vpack.c.b16 %v1760, %v1758
  %v2165 = vpack.c.b16 %v1761, %v1759
  %v2166 = vpack.c.b16 %v1764, %v1762
  %v2167 = vpack.c.b16 %v1765, %v1763
  %v2168 = vpack.c.b16 %v1768, %v1766
  %v2169 = vpack.c.b16 %v1769, %v1767
  %2570 = vmatprep.subr.bf16.mxu0 %v1771
  %2571 = vmatpush1.bf16.msra.mxu0 %v1770
  %2572 = vmatprep.subr.bf16.mxu0 %v1773
  %2573 = vmatpush1.bf16.msra.mxu0 %v1772
  %2574 = vmatprep.subr.bf16.mxu0 %v1775
  %2575 = vmatpush1.bf16.msra.mxu0 %v1774
  %2576 = vmatprep.subr.bf16.mxu0 %v1777
  %2577 = vmatpush1.bf16.msra.mxu0 %v1776
  %2578 = vmatprep.subr.bf16.mxu0 %v1779
  %2579 = vmatpush1.bf16.msra.mxu0 %v1778
  %2580 = vmatprep.subr.bf16.mxu0 %v1781
  %2581 = vmatpush1.bf16.msra.mxu0 %v1780
  %2582 = vmatprep.subr.bf16.mxu0 %v1783
  %2583 = vmatpush1.bf16.msra.mxu0 %v1782
  %2584 = vmatprep.subr.bf16.mxu0 %v1785
  %2585 = vmatpush1.bf16.msra.mxu0 %v1784
  %2586 = vmatprep.subr.bf16.mxu0 %v1787
  %2587 = vmatpush1.bf16.msra.mxu0 %v1786
  %2588 = vmatprep.subr.bf16.mxu0 %v1789
  %2589 = vmatpush1.bf16.msra.mxu0 %v1788
  %2590 = vmatprep.subr.bf16.mxu0 %v1791
  %2591 = vmatpush1.bf16.msra.mxu0 %v1790
  %2592 = vmatprep.subr.bf16.mxu0 %v1793
  %2593 = vmatpush1.bf16.msra.mxu0 %v1792
  %2594 = vmatprep.subr.bf16.mxu0 %v1795
  %2595 = vmatpush1.bf16.msra.mxu0 %v1794
  %2596 = vmatprep.subr.bf16.mxu0 %v1797
  %2597 = vmatpush1.bf16.msra.mxu0 %v1796
  %2598 = vmatprep.subr.bf16.mxu0 %v1799
  %2599 = vmatpush1.bf16.msra.mxu0 %v1798
  %2600 = vmatprep.subr.bf16.mxu0 %v1801
  %2601 = vmatpush1.bf16.msra.mxu0 %v1800
  %2602 = vmatprep.mubr.bf16.mxu0 %v521
  %2603 = vmatmul.mubr.bf16.gmra.mrb[0].mxu0 %v520
  %v2604 = vpop.f32.mrb[0].mxu0
  %v2605 = vadd.f32 0.0, %v2604
  %v2606 = vpop.f32.mrb[0].mxu0
  %v2607 = vadd.f32 0.0, %v2606
  %v2608 = vpop.f32.mrb[0].mxu0
  %v2609 = vpop.f32.mrb[0].mxu0
  %2610 = vdwg.mxu0
  %2611 = vmatprep.subr.bf16.mxu0 %v1803
  %2612 = vmatpush1.bf16.msra.mxu0 %v1802
  %2613 = vmatprep.subr.bf16.mxu0 %v1805
  %2614 = vmatpush1.bf16.msra.mxu0 %v1804
  %2615 = vmatprep.subr.bf16.mxu0 %v1807
  %2616 = vmatpush1.bf16.msra.mxu0 %v1806
  %2617 = vmatprep.subr.bf16.mxu0 %v1809
  %2618 = vmatpush1.bf16.msra.mxu0 %v1808
  %2619 = vmatprep.subr.bf16.mxu0 %v1811
  %2620 = vmatpush1.bf16.msra.mxu0 %v1810
  %2621 = vmatprep.subr.bf16.mxu0 %v1813
  %2622 = vmatpush1.bf16.msra.mxu0 %v1812
  %2623 = vmatprep.subr.bf16.mxu0 %v1815
  %2624 = vmatpush1.bf16.msra.mxu0 %v1814
  %2625 = vmatprep.subr.bf16.mxu0 %v1817
  %2626 = vmatpush1.bf16.msra.mxu0 %v1816
  %2627 = vmatprep.subr.bf16.mxu0 %v1819
  %2628 = vmatpush1.bf16.msra.mxu0 %v1818
  %2629 = vmatprep.subr.bf16.mxu0 %v1821
  %2630 = vmatpush1.bf16.msra.mxu0 %v1820
  %2631 = vmatprep.subr.bf16.mxu0 %v1823
  %2632 = vmatpush1.bf16.msra.mxu0 %v1822
  %2633 = vmatprep.subr.bf16.mxu0 %v1825
  %2634 = vmatpush1.bf16.msra.mxu0 %v1824
  %2635 = vmatprep.subr.bf16.mxu0 %v1827
  %2636 = vmatpush1.bf16.msra.mxu0 %v1826
  %2637 = vmatprep.subr.bf16.mxu0 %v1829
  %2638 = vmatpush1.bf16.msra.mxu0 %v1828
  %2639 = vmatprep.subr.bf16.mxu0 %v1831
  %2640 = vmatpush1.bf16.msra.mxu0 %v1830
  %2641 = vmatprep.subr.bf16.mxu0 %v1833
  %2642 = vmatpush1.bf16.msra.mxu0 %v1832
  %2643 = vmatprep.mubr.bf16.mxu0 %v523
  %2644 = vmatmul.mubr.bf16.gmra.mrb[0].mxu0 %v522
  %v2645 = vpop.f32.mrb[0].mxu0
  %v2646 = vadd.f32 %v2605, %v2645
  %v2647 = vpop.f32.mrb[0].mxu0
  %v2648 = vadd.f32 %v2607, %v2647
  %v2649 = vpop.f32.mrb[0].mxu0
  %v2650 = vpop.f32.mrb[0].mxu0
  %2651 = vdwg.mxu0
  %2652 = vmatprep.subr.bf16.mxu0 %v1835
  %2653 = vmatpush1.bf16.msra.mxu0 %v1834
  %2654 = vmatprep.subr.bf16.mxu0 %v1837
  %2655 = vmatpush1.bf16.msra.mxu0 %v1836
  %2656 = vmatprep.subr.bf16.mxu0 %v1839
  %2657 = vmatpush1.bf16.msra.mxu0 %v1838
  %2658 = vmatprep.subr.bf16.mxu0 %v1841
  %2659 = vmatpush1.bf16.msra.mxu0 %v1840
  %2660 = vmatprep.subr.bf16.mxu0 %v1843
  %2661 = vmatpush1.bf16.msra.mxu0 %v1842
  %2662 = vmatprep.subr.bf16.mxu0 %v1845
  %2663 = vmatpush1.bf16.msra.mxu0 %v1844
  %2664 = vmatprep.subr.bf16.mxu0 %v1847
  %2665 = vmatpush1.bf16.msra.mxu0 %v1846
  %2666 = vmatprep.subr.bf16.mxu0 %v1849
  %2667 = vmatpush1.bf16.msra.mxu0 %v1848
  %2668 = vmatprep.subr.bf16.mxu0 %v1851
  %2669 = vmatpush1.bf16.msra.mxu0 %v1850
  %2670 = vmatprep.subr.bf16.mxu0 %v1853
  %2671 = vmatpush1.bf16.msra.mxu0 %v1852
  %2672 = vmatprep.subr.bf16.mxu0 %v1855
  %2673 = vmatpush1.bf16.msra.mxu0 %v1854
  %2674 = vmatprep.subr.bf16.mxu0 %v1857
  %2675 = vmatpush1.bf16.msra.mxu0 %v1856
  %2676 = vmatprep.subr.bf16.mxu0 %v1859
  %2677 = vmatpush1.bf16.msra.mxu0 %v1858
  %2678 = vmatprep.subr.bf16.mxu0 %v1861
  %2679 = vmatpush1.bf16.msra.mxu0 %v1860
  %2680 = vmatprep.subr.bf16.mxu0 %v1863
  %2681 = vmatpush1.bf16.msra.mxu0 %v1862
  %2682 = vmatprep.subr.bf16.mxu0 %v1865
  %2683 = vmatpush1.bf16.msra.mxu0 %v1864
  %2684 = vmatprep.mubr.bf16.mxu0 %v525
  %2685 = vmatmul.mubr.bf16.gmra.mrb[0].mxu0 %v524
  %v2686 = vpop.f32.mrb[0].mxu0
  %v2687 = vadd.f32 %v2646, %v2686
  %v2688 = vpop.f32.mrb[0].mxu0
  %v2689 = vadd.f32 %v2648, %v2688
  %v2690 = vpop.f32.mrb[0].mxu0
  %v2691 = vpop.f32.mrb[0].mxu0
  %2692 = vdwg.mxu0
  %2693 = vmatprep.subr.bf16.mxu0 %v1867
  %2694 = vmatpush1.bf16.msra.mxu0 %v1866
  %2695 = vmatprep.subr.bf16.mxu0 %v1869
  %2696 = vmatpush1.bf16.msra.mxu0 %v1868
  %2697 = vmatprep.subr.bf16.mxu0 %v1871
  %2698 = vmatpush1.bf16.msra.mxu0 %v1870
  %2699 = vmatprep.subr.bf16.mxu0 %v1873
  %2700 = vmatpush1.bf16.msra.mxu0 %v1872
  %2701 = vmatprep.subr.bf16.mxu0 %v1875
  %2702 = vmatpush1.bf16.msra.mxu0 %v1874
  %2703 = vmatprep.subr.bf16.mxu0 %v1877
  %2704 = vmatpush1.bf16.msra.mxu0 %v1876
  %2705 = vmatprep.subr.bf16.mxu0 %v1879
  %2706 = vmatpush1.bf16.msra.mxu0 %v1878
  %2707 = vmatprep.subr.bf16.mxu0 %v1881
  %2708 = vmatpush1.bf16.msra.mxu0 %v1880
  %2709 = vmatprep.subr.bf16.mxu0 %v1883
  %2710 = vmatpush1.bf16.msra.mxu0 %v1882
  %2711 = vmatprep.subr.bf16.mxu0 %v1885
  %2712 = vmatpush1.bf16.msra.mxu0 %v1884
  %2713 = vmatprep.subr.bf16.mxu0 %v1887
  %2714 = vmatpush1.bf16.msra.mxu0 %v1886
  %2715 = vmatprep.subr.bf16.mxu0 %v1889
  %2716 = vmatpush1.bf16.msra.mxu0 %v1888
  %2717 = vmatprep.subr.bf16.mxu0 %v1891
  %2718 = vmatpush1.bf16.msra.mxu0 %v1890
  %2719 = vmatprep.subr.bf16.mxu0 %v1893
  %2720 = vmatpush1.bf16.msra.mxu0 %v1892
  %2721 = vmatprep.subr.bf16.mxu0 %v1895
  %2722 = vmatpush1.bf16.msra.mxu0 %v1894
  %2723 = vmatprep.subr.bf16.mxu0 %v1897
  %2724 = vmatpush1.bf16.msra.mxu0 %v1896
  %2725 = vmatprep.mubr.bf16.mxu0 %v527
  %2726 = vmatmul.mubr.bf16.gmra.mrb[0].mxu0 %v526
  %v2727 = vpop.f32.mrb[0].mxu0
  %v2728 = vadd.f32 %v2687, %v2727
  %v2729 = vpop.f32.mrb[0].mxu0
  %v2730 = vadd.f32 %v2689, %v2729
  %v2731 = vpop.f32.mrb[0].mxu0
  %v2732 = vpop.f32.mrb[0].mxu0
  %2733 = vdwg.mxu0
  %2734 = vmatprep.subr.bf16.mxu0 %v1899
  %2735 = vmatpush1.bf16.msra.mxu0 %v1898
  %2736 = vmatprep.subr.bf16.mxu0 %v1901
  %2737 = vmatpush1.bf16.msra.mxu0 %v1900
  %2738 = vmatprep.subr.bf16.mxu0 %v1903
  %2739 = vmatpush1.bf16.msra.mxu0 %v1902
  %2740 = vmatprep.subr.bf16.mxu0 %v1905
  %2741 = vmatpush1.bf16.msra.mxu0 %v1904
  %2742 = vmatprep.subr.bf16.mxu0 %v1907
  %2743 = vmatpush1.bf16.msra.mxu0 %v1906
  %2744 = vmatprep.subr.bf16.mxu0 %v1909
  %2745 = vmatpush1.bf16.msra.mxu0 %v1908
  %2746 = vmatprep.subr.bf16.mxu0 %v1911
  %2747 = vmatpush1.bf16.msra.mxu0 %v1910
  %2748 = vmatprep.subr.bf16.mxu0 %v1913
  %2749 = vmatpush1.bf16.msra.mxu0 %v1912
  %2750 = vmatprep.subr.bf16.mxu0 %v1915
  %2751 = vmatpush1.bf16.msra.mxu0 %v1914
  %2752 = vmatprep.subr.bf16.mxu0 %v1917
  %2753 = vmatpush1.bf16.msra.mxu0 %v1916
  %2754 = vmatprep.subr.bf16.mxu0 %v1919
  %2755 = vmatpush1.bf16.msra.mxu0 %v1918
  %2756 = vmatprep.subr.bf16.mxu0 %v1921
  %2757 = vmatpush1.bf16.msra.mxu0 %v1920
  %2758 = vmatprep.subr.bf16.mxu0 %v1923
  %2759 = vmatpush1.bf16.msra.mxu0 %v1922
  %2760 = vmatprep.subr.bf16.mxu0 %v1925
  %2761 = vmatpush1.bf16.msra.mxu0 %v1924
  %2762 = vmatprep.subr.bf16.mxu0 %v1927
  %2763 = vmatpush1.bf16.msra.mxu0 %v1926
  %2764 = vmatprep.subr.bf16.mxu0 %v1929
  %2765 = vmatpush1.bf16.msra.mxu0 %v1928
  %2766 = vmatprep.mubr.bf16.mxu0 %v529
  %2767 = vmatmul.mubr.bf16.gmra.mrb[0].mxu0 %v528
  %v2768 = vpop.f32.mrb[0].mxu0
  %v2769 = vadd.f32 %v2728, %v2768
  %v2770 = vpop.f32.mrb[0].mxu0
  %v2771 = vadd.f32 %v2730, %v2770
  %v2772 = vpop.f32.mrb[0].mxu0
  %v2773 = vpop.f32.mrb[0].mxu0
  %2774 = vdwg.mxu0
  %2775 = vmatprep.subr.bf16.mxu0 %v1931
  %2776 = vmatpush1.bf16.msra.mxu0 %v1930
  %2777 = vmatprep.subr.bf16.mxu0 %v1933
  %2778 = vmatpush1.bf16.msra.mxu0 %v1932
  %2779 = vmatprep.subr.bf16.mxu0 %v1935
  %2780 = vmatpush1.bf16.msra.mxu0 %v1934
  %2781 = vmatprep.subr.bf16.mxu0 %v1937
  %2782 = vmatpush1.bf16.msra.mxu0 %v1936
  %2783 = vmatprep.subr.bf16.mxu0 %v1939
  %2784 = vmatpush1.bf16.msra.mxu0 %v1938
  %2785 = vmatprep.subr.bf16.mxu0 %v1941
  %2786 = vmatpush1.bf16.msra.mxu0 %v1940
  %2787 = vmatprep.subr.bf16.mxu0 %v1943
  %2788 = vmatpush1.bf16.msra.mxu0 %v1942
  %2789 = vmatprep.subr.bf16.mxu0 %v1945
  %2790 = vmatpush1.bf16.msra.mxu0 %v1944
  %2791 = vmatprep.subr.bf16.mxu0 %v1947
  %2792 = vmatpush1.bf16.msra.mxu0 %v1946
  %2793 = vmatprep.subr.bf16.mxu0 %v1949
  %2794 = vmatpush1.bf16.msra.mxu0 %v1948
  %2795 = vmatprep.subr.bf16.mxu0 %v1951
  %2796 = vmatpush1.bf16.msra.mxu0 %v1950
  %2797 = vmatprep.subr.bf16.mxu0 %v1953
  %2798 = vmatpush1.bf16.msra.mxu0 %v1952
  %2799 = vmatprep.subr.bf16.mxu0 %v1955
  %2800 = vmatpush1.bf16.msra.mxu0 %v1954
  %2801 = vmatprep.subr.bf16.mxu0 %v1957
  %2802 = vmatpush1.bf16.msra.mxu0 %v1956
  %2803 = vmatprep.subr.bf16.mxu0 %v1959
  %2804 = vmatpush1.bf16.msra.mxu0 %v1958
  %2805 = vmatprep.subr.bf16.mxu0 %v1961
  %2806 = vmatpush1.bf16.msra.mxu0 %v1960
  %2807 = vmatprep.mubr.bf16.mxu0 %v531
  %2808 = vmatmul.mubr.bf16.gmra.mrb[0].mxu0 %v530
  %v2809 = vpop.f32.mrb[0].mxu0
  %v2810 = vadd.f32 %v2769, %v2809
  %v2811 = vpop.f32.mrb[0].mxu0
  %v2812 = vadd.f32 %v2771, %v2811
  %v2813 = vpop.f32.mrb[0].mxu0
  %v2814 = vpop.f32.mrb[0].mxu0
  %2815 = vdwg.mxu0
  %2816 = vmatprep.subr.bf16.mxu0 %v1963
  %2817 = vmatpush1.bf16.msra.mxu0 %v1962
  %2818 = vmatprep.subr.bf16.mxu0 %v1965
  %2819 = vmatpush1.bf16.msra.mxu0 %v1964
  %2820 = vmatprep.subr.bf16.mxu0 %v1967
  %2821 = vmatpush1.bf16.msra.mxu0 %v1966
  %2822 = vmatprep.subr.bf16.mxu0 %v1969
  %2823 = vmatpush1.bf16.msra.mxu0 %v1968
  %2824 = vmatprep.subr.bf16.mxu0 %v1971
  %2825 = vmatpush1.bf16.msra.mxu0 %v1970
  %2826 = vmatprep.subr.bf16.mxu0 %v1973
  %2827 = vmatpush1.bf16.msra.mxu0 %v1972
  %2828 = vmatprep.subr.bf16.mxu0 %v1975
  %2829 = vmatpush1.bf16.msra.mxu0 %v1974
  %2830 = vmatprep.subr.bf16.mxu0 %v1977
  %2831 = vmatpush1.bf16.msra.mxu0 %v1976
  %2832 = vmatprep.subr.bf16.mxu0 %v1979
  %2833 = vmatpush1.bf16.msra.mxu0 %v1978
  %2834 = vmatprep.subr.bf16.mxu0 %v1981
  %2835 = vmatpush1.bf16.msra.mxu0 %v1980
  %2836 = vmatprep.subr.bf16.mxu0 %v1983
  %2837 = vmatpush1.bf16.msra.mxu0 %v1982
  %2838 = vmatprep.subr.bf16.mxu0 %v1985
  %2839 = vmatpush1.bf16.msra.mxu0 %v1984
  %2840 = vmatprep.subr.bf16.mxu0 %v1987
  %2841 = vmatpush1.bf16.msra.mxu0 %v1986
  %2842 = vmatprep.subr.bf16.mxu0 %v1989
  %2843 = vmatpush1.bf16.msra.mxu0 %v1988
  %2844 = vmatprep.subr.bf16.mxu0 %v1991
  %2845 = vmatpush1.bf16.msra.mxu0 %v1990
  %2846 = vmatprep.subr.bf16.mxu0 %v1993
  %2847 = vmatpush1.bf16.msra.mxu0 %v1992
  %2848 = vmatprep.mubr.bf16.mxu0 %v533
  %2849 = vmatmul.mubr.bf16.gmra.mrb[0].mxu0 %v532
  %v2850 = vpop.f32.mrb[0].mxu0
  %v2851 = vadd.f32 %v2810, %v2850
  %v2852 = vpop.f32.mrb[0].mxu0
  %v2853 = vadd.f32 %v2812, %v2852
  %v2854 = vpop.f32.mrb[0].mxu0
  %v2855 = vpop.f32.mrb[0].mxu0
  %2856 = vdwg.mxu0
  %2857 = vmatprep.subr.bf16.mxu0 %v1995
  %2858 = vmatpush1.bf16.msra.mxu0 %v1994
  %2859 = vmatprep.subr.bf16.mxu0 %v1997
  %2860 = vmatpush1.bf16.msra.mxu0 %v1996
  %2861 = vmatprep.subr.bf16.mxu0 %v1999
  %2862 = vmatpush1.bf16.msra.mxu0 %v1998
  %2863 = vmatprep.subr.bf16.mxu0 %v2001
  %2864 = vmatpush1.bf16.msra.mxu0 %v2000
  %2865 = vmatprep.subr.bf16.mxu0 %v2003
  %2866 = vmatpush1.bf16.msra.mxu0 %v2002
  %2867 = vmatprep.subr.bf16.mxu0 %v2005
  %2868 = vmatpush1.bf16.msra.mxu0 %v2004
  %2869 = vmatprep.subr.bf16.mxu0 %v2007
  %2870 = vmatpush1.bf16.msra.mxu0 %v2006
  %2871 = vmatprep.subr.bf16.mxu0 %v2009
  %2872 = vmatpush1.bf16.msra.mxu0 %v2008
  %2873 = vmatprep.subr.bf16.mxu0 %v2011
  %2874 = vmatpush1.bf16.msra.mxu0 %v2010
  %2875 = vmatprep.subr.bf16.mxu0 %v2013
  %2876 = vmatpush1.bf16.msra.mxu0 %v2012
  %2877 = vmatprep.subr.bf16.mxu0 %v2015
  %2878 = vmatpush1.bf16.msra.mxu0 %v2014
  %2879 = vmatprep.subr.bf16.mxu0 %v2017
  %2880 = vmatpush1.bf16.msra.mxu0 %v2016
  %2881 = vmatprep.subr.bf16.mxu0 %v2019
  %2882 = vmatpush1.bf16.msra.mxu0 %v2018
  %2883 = vmatprep.subr.bf16.mxu0 %v2021
  %2884 = vmatpush1.bf16.msra.mxu0 %v2020
  %2885 = vmatprep.subr.bf16.mxu0 %v2023
  %2886 = vmatpush1.bf16.msra.mxu0 %v2022
  %2887 = vmatprep.subr.bf16.mxu0 %v2025
  %2888 = vmatpush1.bf16.msra.mxu0 %v2024
  %2889 = vmatprep.mubr.bf16.mxu0 %v535
  %2890 = vmatmul.mubr.bf16.gmra.mrb[0].mxu0 %v534
  %v2891 = vpop.f32.mrb[0].mxu0
  %v2892 = vadd.f32 %v2851, %v2891
  %v2893 = vpop.f32.mrb[0].mxu0
  %v2894 = vadd.f32 %v2853, %v2893
  %v2895 = vpop.f32.mrb[0].mxu0
  %v2896 = vpop.f32.mrb[0].mxu0
  %2897 = vdwg.mxu0
  %2898 = vmatprep.subr.bf16.mxu0 %v2027
  %2899 = vmatpush1.bf16.msra.mxu0 %v2026
  %2900 = vmatprep.subr.bf16.mxu0 %v2029
  %2901 = vmatpush1.bf16.msra.mxu0 %v2028
  %2902 = vmatprep.subr.bf16.mxu0 %v2031
  %2903 = vmatpush1.bf16.msra.mxu0 %v2030
  %2904 = vmatprep.subr.bf16.mxu0 %v2033
  %2905 = vmatpush1.bf16.msra.mxu0 %v2032
  %2906 = vmatprep.subr.bf16.mxu0 %v2035
  %2907 = vmatpush1.bf16.msra.mxu0 %v2034
  %2908 = vmatprep.subr.bf16.mxu0 %v2037
  %2909 = vmatpush1.bf16.msra.mxu0 %v2036
  %2910 = vmatprep.subr.bf16.mxu0 %v2039
  %2911 = vmatpush1.bf16.msra.mxu0 %v2038
  %2912 = vmatprep.subr.bf16.mxu0 %v2041
  %2913 = vmatpush1.bf16.msra.mxu0 %v2040
  %2914 = vmatprep.subr.bf16.mxu0 %v2043
  %2915 = vmatpush1.bf16.msra.mxu0 %v2042
  %2916 = vmatprep.subr.bf16.mxu0 %v2045
  %2917 = vmatpush1.bf16.msra.mxu0 %v2044
  %2918 = vmatprep.subr.bf16.mxu0 %v2047
  %2919 = vmatpush1.bf16.msra.mxu0 %v2046
  %2920 = vmatprep.subr.bf16.mxu0 %v2049
  %2921 = vmatpush1.bf16.msra.mxu0 %v2048
  %2922 = vmatprep.subr.bf16.mxu0 %v2051
  %2923 = vmatpush1.bf16.msra.mxu0 %v2050
  %2924 = vmatprep.subr.bf16.mxu0 %v2053
  %2925 = vmatpush1.bf16.msra.mxu0 %v2052
  %2926 = vmatprep.subr.bf16.mxu0 %v2055
  %2927 = vmatpush1.bf16.msra.mxu0 %v2054
  %2928 = vmatprep.subr.bf16.mxu0 %v2057
  %2929 = vmatpush1.bf16.msra.mxu0 %v2056
  %2930 = vmatprep.mubr.bf16.mxu0 %v537
  %2931 = vmatmul.mubr.bf16.gmra.mrb[0].mxu0 %v536
  %v2932 = vpop.f32.mrb[0].mxu0
  %v2933 = vadd.f32 %v2892, %v2932
  %v2934 = vpop.f32.mrb[0].mxu0
  %v2935 = vadd.f32 %v2894, %v2934
  %v2936 = vpop.f32.mrb[0].mxu0
  %v2937 = vpop.f32.mrb[0].mxu0
  %2938 = vdwg.mxu0
  %2939 = vmatprep.subr.bf16.mxu0 %v2059
  %2940 = vmatpush1.bf16.msra.mxu0 %v2058
  %2941 = vmatprep.subr.bf16.mxu0 %v2061
  %2942 = vmatpush1.bf16.msra.mxu0 %v2060
  %2943 = vmatprep.subr.bf16.mxu0 %v2063
  %2944 = vmatpush1.bf16.msra.mxu0 %v2062
  %2945 = vmatprep.subr.bf16.mxu0 %v2065
  %2946 = vmatpush1.bf16.msra.mxu0 %v2064
  %2947 = vmatprep.subr.bf16.mxu0 %v2067
  %2948 = vmatpush1.bf16.msra.mxu0 %v2066
  %2949 = vmatprep.subr.bf16.mxu0 %v2069
  %2950 = vmatpush1.bf16.msra.mxu0 %v2068
  %2951 = vmatprep.subr.bf16.mxu0 %v2071
  %2952 = vmatpush1.bf16.msra.mxu0 %v2070
  %2953 = vmatprep.subr.bf16.mxu0 %v2073
  %2954 = vmatpush1.bf16.msra.mxu0 %v2072
  %2955 = vmatprep.subr.bf16.mxu0 %v2075
  %2956 = vmatpush1.bf16.msra.mxu0 %v2074
  %2957 = vmatprep.subr.bf16.mxu0 %v2077
  %2958 = vmatpush1.bf16.msra.mxu0 %v2076
  %2959 = vmatprep.subr.bf16.mxu0 %v2079
  %2960 = vmatpush1.bf16.msra.mxu0 %v2078
  %2961 = vmatprep.subr.bf16.mxu0 %v2081
  %2962 = vmatpush1.bf16.msra.mxu0 %v2080
  %2963 = vmatprep.subr.bf16.mxu0 %v2083
  %2964 = vmatpush1.bf16.msra.mxu0 %v2082
  %2965 = vmatprep.subr.bf16.mxu0 %v2085
  %2966 = vmatpush1.bf16.msra.mxu0 %v2084
  %2967 = vmatprep.subr.bf16.mxu0 %v2087
  %2968 = vmatpush1.bf16.msra.mxu0 %v2086
  %2969 = vmatprep.subr.bf16.mxu0 %v2089
  %2970 = vmatpush1.bf16.msra.mxu0 %v2088
  %2971 = vmatprep.mubr.bf16.mxu0 %v539
  %2972 = vmatmul.mubr.bf16.gmra.mrb[0].mxu0 %v538
  %v2973 = vpop.f32.mrb[0].mxu0
  %v2974 = vadd.f32 %v2933, %v2973
  %v2975 = vpop.f32.mrb[0].mxu0
  %v2976 = vadd.f32 %v2935, %v2975
  %v2977 = vpop.f32.mrb[0].mxu0
  %v2978 = vpop.f32.mrb[0].mxu0
  %2979 = vdwg.mxu0
  %2980 = vmatprep.subr.bf16.mxu0 %v2091
  %2981 = vmatpush1.bf16.msra.mxu0 %v2090
  %2982 = vmatprep.subr.bf16.mxu0 %v2093
  %2983 = vmatpush1.bf16.msra.mxu0 %v2092
  %2984 = vmatprep.subr.bf16.mxu0 %v2095
  %2985 = vmatpush1.bf16.msra.mxu0 %v2094
  %2986 = vmatprep.subr.bf16.mxu0 %v2097
  %2987 = vmatpush1.bf16.msra.mxu0 %v2096
  %2988 = vmatprep.subr.bf16.mxu0 %v2099
  %2989 = vmatpush1.bf16.msra.mxu0 %v2098
  %2990 = vmatprep.subr.bf16.mxu0 %v2101
  %2991 = vmatpush1.bf16.msra.mxu0 %v2100
  %2992 = vmatprep.subr.bf16.mxu0 %v2103
  %2993 = vmatpush1.bf16.msra.mxu0 %v2102
  %2994 = vmatprep.subr.bf16.mxu0 %v2105
  %2995 = vmatpush1.bf16.msra.mxu0 %v2104
  %2996 = vmatprep.subr.bf16.mxu0 %v2107
  %2997 = vmatpush1.bf16.msra.mxu0 %v2106
  %2998 = vmatprep.subr.bf16.mxu0 %v2109
  %2999 = vmatpush1.bf16.msra.mxu0 %v2108
  %3000 = vmatprep.subr.bf16.mxu0 %v2111
  %3001 = vmatpush1.bf16.msra.mxu0 %v2110
  %3002 = vmatprep.subr.bf16.mxu0 %v2113
  %3003 = vmatpush1.bf16.msra.mxu0 %v2112
  %3004 = vmatprep.subr.bf16.mxu0 %v2115
  %3005 = vmatpush1.bf16.msra.mxu0 %v2114
  %3006 = vmatprep.subr.bf16.mxu0 %v2117
  %3007 = vmatpush1.bf16.msra.mxu0 %v2116
  %3008 = vmatprep.subr.bf16.mxu0 %v2119
  %3009 = vmatpush1.bf16.msra.mxu0 %v2118
  %3010 = vmatprep.subr.bf16.mxu0 %v2121
  %3011 = vmatpush1.bf16.msra.mxu0 %v2120
  %3012 = vmatprep.mubr.bf16.mxu0 %v541
  %3013 = vmatmul.mubr.bf16.gmra.mrb[0].mxu0 %v540
  %v3014 = vpop.f32.mrb[0].mxu0
  %v3015 = vadd.f32 %v2974, %v3014
  %v3016 = vpop.f32.mrb[0].mxu0
  %v3017 = vadd.f32 %v2976, %v3016
  %v3018 = vpop.f32.mrb[0].mxu0
  %v3019 = vpop.f32.mrb[0].mxu0
  %3020 = vdwg.mxu0
  %3021 = vmatprep.subr.bf16.mxu0 %v2123
  %3022 = vmatpush1.bf16.msra.mxu0 %v2122
  %3023 = vmatprep.subr.bf16.mxu0 %v2125
  %3024 = vmatpush1.bf16.msra.mxu0 %v2124
  %3025 = vmatprep.subr.bf16.mxu0 %v2127
  %3026 = vmatpush1.bf16.msra.mxu0 %v2126
  %3027 = vmatprep.subr.bf16.mxu0 %v2129
  %3028 = vmatpush1.bf16.msra.mxu0 %v2128
  %3029 = vmatprep.subr.bf16.mxu0 %v2131
  %3030 = vmatpush1.bf16.msra.mxu0 %v2130
  %3031 = vmatprep.subr.bf16.mxu0 %v2133
  %3032 = vmatpush1.bf16.msra.mxu0 %v2132
  %3033 = vmatprep.subr.bf16.mxu0 %v2135
  %3034 = vmatpush1.bf16.msra.mxu0 %v2134
  %3035 = vmatprep.subr.bf16.mxu0 %v2137
  %3036 = vmatpush1.bf16.msra.mxu0 %v2136
  %3037 = vmatprep.subr.bf16.mxu0 %v2139
  %3038 = vmatpush1.bf16.msra.mxu0 %v2138
  %3039 = vmatprep.subr.bf16.mxu0 %v2141
  %3040 = vmatpush1.bf16.msra.mxu0 %v2140
  %3041 = vmatprep.subr.bf16.mxu0 %v2143
  %3042 = vmatpush1.bf16.msra.mxu0 %v2142
  %3043 = vmatprep.subr.bf16.mxu0 %v2145
  %3044 = vmatpush1.bf16.msra.mxu0 %v2144
  %3045 = vmatprep.subr.bf16.mxu0 %v2147
  %3046 = vmatpush1.bf16.msra.mxu0 %v2146
  %3047 = vmatprep.subr.bf16.mxu0 %v2149
  %3048 = vmatpush1.bf16.msra.mxu0 %v2148
  %3049 = vmatprep.subr.bf16.mxu0 %v2151
  %3050 = vmatpush1.bf16.msra.mxu0 %v2150
  %3051 = vmatprep.subr.bf16.mxu0 %v2153
  %3052 = vmatpush1.bf16.msra.mxu0 %v2152
  %3053 = vmatprep.mubr.bf16.mxu0 %v543
  %3054 = vmatmul.mubr.bf16.gmra.mrb[0].mxu0 %v542
  %v3055 = vpop.f32.mrb[0].mxu0
  %v3056 = vadd.f32 %v3015, %v3055
  %v3057 = vpop.f32.mrb[0].mxu0
  %v3058 = vadd.f32 %v3017, %v3057
  %v3059 = vpop.f32.mrb[0].mxu0
  %v3060 = vpop.f32.mrb[0].mxu0
  %3061 = vdwg.mxu0
  %3062 = vmatprep.subr.bf16.mxu0 %v2155
  %3063 = vmatpush1.bf16.msra.mxu0 %v2154
  %3064 = vmatprep.subr.bf16.mxu0 %v2157
  %3065 = vmatpush1.bf16.msra.mxu0 %v2156
  %3066 = vmatprep.subr.bf16.mxu0 %v2159
  %3067 = vmatpush1.bf16.msra.mxu0 %v2158
  %3068 = vmatprep.subr.bf16.mxu0 %v2161
  %3069 = vmatpush1.bf16.msra.mxu0 %v2160
  %3070 = vmatprep.subr.bf16.mxu0 %v2163
  %3071 = vmatpush1.bf16.msra.mxu0 %v2162
  %3072 = vmatprep.subr.bf16.mxu0 %v2165
  %3073 = vmatpush1.bf16.msra.mxu0 %v2164
  %3074 = vmatprep.subr.bf16.mxu0 %v2167
  %3075 = vmatpush1.bf16.msra.mxu0 %v2166
  %3076 = vmatprep.subr.bf16.mxu0 %v2169
  %3077 = vmatpush1.bf16.msra.mxu0 %v2168
  %3078 = vmatprep.subr.bf16.mxu0 0
  %3079 = vmatpush1.bf16.msra.mxu0 0
  %3080 = vmatprep.subr.bf16.mxu0 0
  %3081 = vmatpush1.bf16.msra.mxu0 0
  %3082 = vmatprep.subr.bf16.mxu0 0
  %3083 = vmatpush1.bf16.msra.mxu0 0
  %3084 = vmatprep.subr.bf16.mxu0 0
  %3085 = vmatpush1.bf16.msra.mxu0 0
  %3086 = vmatprep.subr.bf16.mxu0 0
  %3087 = vmatpush1.bf16.msra.mxu0 0
  %3088 = vmatprep.subr.bf16.mxu0 0
  %3089 = vmatpush1.bf16.msra.mxu0 0
  %3090 = vmatprep.subr.bf16.mxu0 0
  %3091 = vmatpush1.bf16.msra.mxu0 0
  %3092 = vmatprep.subr.bf16.mxu0 0
  %3093 = vmatpush1.bf16.msra.mxu0 0
  %3094 = vmatprep.mubr.bf16.mxu0 0
  %3095 = vmatmul.mubr.bf16.gmra.mrb[0].mxu0 %v544
  %v3096 = vpop.f32.mrb[0].mxu0
  %v3097 = vadd.f32 %v3056, %v3096
  %v3098 = vpop.f32.mrb[0].mxu0
  %v3099 = vadd.f32 %v3058, %v3098
  %v3100 = vpop.f32.mrb[0].mxu0
  %v3101 = vpop.f32.mrb[0].mxu0
  %3102 = vdwg.mxu0
  %v3103 = vmul.f32 %v3097, 0.2
  %v3104 = vmul.f32 %v3099, 0.2
  %v3105 = vmax.f32 %v3097, %v3103
  %v3106 = vmax.f32 %v3099, %v3104
  %3107 = vst [vmem:[#allocation2] sm:$0xff] 0.0
  %3108 = vst [vmem:[#allocation2 + $0x8] sm:$0xff] 0.0
  %3109 = vst [vmem:[#allocation2 + $0x10] sm:$0xff] 0.0
  %3110 = vst [vmem:[#allocation2 + $0x18] sm:$0xff] 0.0
  %3111 = vst [vmem:[#allocation2 + $0x20] sm:$0xff] 0.0
  %3112 = vst [vmem:[#allocation2 + $0x28] sm:$0xff] 0.0
  %3113 = vst [vmem:[#allocation2 + $0x30] sm:$0xff] 0.0
  %3114 = vst [vmem:[#allocation2 + $0x38] sm:$0xff] 0.0
  %v3117 = vcombine.low %v3105, %v3106
  %v3119 = vunpack.c.l.s4 1966171168
  %v3120 = vunpack.c.0.s8 %v3119
  %v3121 = vlaneseq
  %v3122 = vshrl.u32 %v3121, 7
  %v3123 = vsub.s32 %v3120, %v3122
  %v3124 = vrot.slane %v3117, %v3123
  %v3126 = vunpack.c.l.s4 1966171168
  %v3127 = vunpack.c.0.s8 %v3126
  %v3128 = vlaneseq
  %v3129 = vshrl.u32 %v3128, 7
  %v3130 = vsub.s32 %v3127, %v3129
  %v3131 = vrot.slane %v3124, %v3130
  %v3133 = vlaneseq
  %vm3134 = vcmp.ge.s32.totalorder %v3133, 0
  %vm3135 = vcmp.lt.s32.totalorder %v3133, 256
  %vm3136 = vmand %vm3134, %vm3135
  %3137 = vst.msk [vmem:[#allocation2] ss:$8 sm:$0x3] %vm3136, %v3131
  %3138 = vst.msk [vmem:[#allocation2] ss:$8 sm:$0x0] %vm3136, %v3131
  %v3139 = vcombine.high %v3124, %v3124
  %v3141 = vunpack.c.l.s4 1966171168
  %v3142 = vunpack.c.0.s8 %v3141
  %v3143 = vlaneseq
  %v3144 = vshrl.u32 %v3143, 7
  %v3145 = vsub.s32 %v3142, %v3144
  %v3146 = vrot.slane %v3139, %v3145
  %s3148 = scalar_lea.vmem [#allocation2], 16
  %3149 = vst.msk [vmem:[%s3148] ss:$8 sm:$0x3] %vm3136, %v3146
  %3150 = vst.msk [vmem:[%s3148] ss:$8 sm:$0x0] %vm3136, %v3146
  %v3151 = vcombine.high %v3131, %v3131
  %s3153 = scalar_lea.vmem [#allocation2], 32
  %3154 = vst.msk [vmem:[%s3153] ss:$8 sm:$0x3] %vm3136, %v3151
  %3155 = vst.msk [vmem:[%s3153] ss:$8 sm:$0x0] %vm3136, %v3151
  %v3156 = vcombine.high %v3146, %v3146
  %s3158 = scalar_lea.vmem [#allocation2], 48
  %3159 = vst.msk [vmem:[%s3158] ss:$8 sm:$0x3] %vm3136, %v3156
  %3160 = vst.msk [vmem:[%s3158] ss:$8 sm:$0x0] %vm3136, %v3156
  %v3161 = vcombine.high %v3105, %v3106
  %v3163 = vunpack.c.l.s4 1966171168
  %v3164 = vunpack.c.0.s8 %v3163
  %v3165 = vlaneseq
  %v3166 = vshrl.u32 %v3165, 7
  %v3167 = vsub.s32 %v3164, %v3166
  %v3168 = vrot.slane %v3161, %v3167
  %v3170 = vunpack.c.l.s4 1966171168
  %v3171 = vunpack.c.0.s8 %v3170
  %v3172 = vlaneseq
  %v3173 = vshrl.u32 %v3172, 7
  %v3174 = vsub.s32 %v3171, %v3173
  %v3175 = vrot.slane %v3168, %v3174
  %s3177 = scalar_lea.vmem [#allocation2], 1
  %3178 = vst.msk [vmem:[%s3177] ss:$8 sm:$0x3] %vm3136, %v3175
  %3179 = vst.msk [vmem:[%s3177] ss:$8 sm:$0x0] %vm3136, %v3175
  %v3180 = vcombine.high %v3168, %v3168
  %v3182 = vunpack.c.l.s4 1966171168
  %v3183 = vunpack.c.0.s8 %v3182
  %v3184 = vlaneseq
  %v3185 = vshrl.u32 %v3184, 7
  %v3186 = vsub.s32 %v3183, %v3185
  %v3187 = vrot.slane %v3180, %v3186
  %s3189 = scalar_lea.vmem [#allocation2], 17
  %3190 = vst.msk [vmem:[%s3189] ss:$8 sm:$0x3] %vm3136, %v3187
  %3191 = vst.msk [vmem:[%s3189] ss:$8 sm:$0x0] %vm3136, %v3187
  %v3192 = vcombine.high %v3175, %v3175
  %s3194 = scalar_lea.vmem [#allocation2], 33
  %3195 = vst.msk [vmem:[%s3194] ss:$8 sm:$0x3] %vm3136, %v3192
  %3196 = vst.msk [vmem:[%s3194] ss:$8 sm:$0x0] %vm3136, %v3192
  %v3197 = vcombine.high %v3187, %v3187
  %s3199 = scalar_lea.vmem [#allocation2], 49
  %3200 = vst.msk [vmem:[%s3199] ss:$8 sm:$0x3] %vm3136, %v3197
  %3201 = vst.msk [vmem:[%s3199] ss:$8 sm:$0x0] %vm3136, %v3197
  %v3202 = vld [vmem:[#allocation2] sm:$0xff]
  %v3203 = vld [vmem:[#allocation2 + $0x8] sm:$0xff]
  %v3204 = vld [vmem:[#allocation2 + $0x10] sm:$0xff]
  %v3205 = vld [vmem:[#allocation2 + $0x18] sm:$0xff]
  %v3206 = vld [vmem:[#allocation2 + $0x20] sm:$0xff]
  %v3207 = vld [vmem:[#allocation2 + $0x28] sm:$0xff]
  %v3208 = vld [vmem:[#allocation2 + $0x30] sm:$0xff]
  %v3209 = vld [vmem:[#allocation2 + $0x38] sm:$0xff]
  %v3210 = vpack.c.bf16 %v3202, %v3202
  %v3211 = vpack.c.bf16 %v3203, %v3203
  %v3212 = vpack.c.bf16 %v3204, %v3204
  %v3213 = vpack.c.bf16 %v3205, %v3205
  %v3214 = vpack.c.bf16 %v3206, %v3206
  %v3215 = vpack.c.bf16 %v3207, %v3207
  %v3216 = vpack.c.bf16 %v3208, %v3208
  %v3217 = vpack.c.bf16 %v3209, %v3209
  %v3218 = vld [vmem:[%s2] sm:$0xff]
  %v3219 = vld [vmem:[%s2 + $0x8] sm:$0xff]
  %v3220 = vld [vmem:[%s2 + $0x10] sm:$0xff]
  %v3221 = vld [vmem:[%s2 + $0x18] sm:$0xff]
  %v3222 = vld [vmem:[%s2 + $0x20] sm:$0xff]
  %v3223 = vld [vmem:[%s2 + $0x28] sm:$0xff]
  %v3224 = vld [vmem:[%s2 + $0x30] sm:$0xff]
  %v3225 = vld [vmem:[%s2 + $0x38] sm:$0xff]
  %v3226 = vld [vmem:[%s2 + $0x40] sm:$0xff]
  %v3227 = vld [vmem:[%s2 + $0x48] sm:$0xff]
  %v3228 = vld [vmem:[%s2 + $0x50] sm:$0xff]
  %v3229 = vld [vmem:[%s2 + $0x58] sm:$0xff]
  %v3230 = vld [vmem:[%s2 + $0x60] sm:$0xff]
  %v3231 = vld [vmem:[%s2 + $0x68] sm:$0xff]
  %v3232 = vld [vmem:[%s2 + $0x70] sm:$0xff]
  %v3233 = vld [vmem:[%s2 + $0x78] sm:$0xff]
  %v3234 = vld [vmem:[%s2 + $0x80] sm:$0xff]
  %v3235 = vld [vmem:[%s2 + $0x88] sm:$0xff]
  %v3236 = vld [vmem:[%s2 + $0x90] sm:$0xff]
  %v3237 = vld [vmem:[%s2 + $0x98] sm:$0xff]
  %v3238 = vld [vmem:[%s2 + $0xa0] sm:$0xff]
  %v3239 = vld [vmem:[%s2 + $0xa8] sm:$0xff]
  %v3240 = vld [vmem:[%s2 + $0xb0] sm:$0xff]
  %v3241 = vld [vmem:[%s2 + $0xb8] sm:$0xff]
  %v3242 = vld [vmem:[%s2 + $0xc0] sm:$0xff]
  %v3243 = vld [vmem:[%s2 + $0xc8] sm:$0xff]
  %v3244 = vld [vmem:[%s2 + $0xd0] sm:$0xff]
  %v3245 = vld [vmem:[%s2 + $0xd8] sm:$0xff]
  %v3246 = vld [vmem:[%s2 + $0xe0] sm:$0xff]
  %v3247 = vld [vmem:[%s2 + $0xe8] sm:$0xff]
  %v3248 = vld [vmem:[%s2 + $0xf0] sm:$0xff]
  %v3249 = vld [vmem:[%s2 + $0xf8] sm:$0xff]
  %v3250 = vld [vmem:[%s2 + $0x100] sm:$0xff]
  %v3251 = vld [vmem:[%s2 + $0x108] sm:$0xff]
  %v3252 = vld [vmem:[%s2 + $0x110] sm:$0xff]
  %v3253 = vld [vmem:[%s2 + $0x118] sm:$0xff]
  %v3254 = vld [vmem:[%s2 + $0x120] sm:$0xff]
  %v3255 = vld [vmem:[%s2 + $0x128] sm:$0xff]
  %v3256 = vld [vmem:[%s2 + $0x130] sm:$0xff]
  %v3257 = vld [vmem:[%s2 + $0x138] sm:$0xff]
  %v3258 = vld [vmem:[%s2 + $0x140] sm:$0xff]
  %v3259 = vld [vmem:[%s2 + $0x148] sm:$0xff]
  %v3260 = vld [vmem:[%s2 + $0x150] sm:$0xff]
  %v3261 = vld [vmem:[%s2 + $0x158] sm:$0xff]
  %v3262 = vld [vmem:[%s2 + $0x160] sm:$0xff]
  %v3263 = vld [vmem:[%s2 + $0x168] sm:$0xff]
  %v3264 = vld [vmem:[%s2 + $0x170] sm:$0xff]
  %v3265 = vld [vmem:[%s2 + $0x178] sm:$0xff]
  %v3266 = vld [vmem:[%s2 + $0x180] sm:$0xff]
  %v3267 = vld [vmem:[%s2 + $0x188] sm:$0xff]
  %v3268 = vld [vmem:[%s2 + $0x190] sm:$0xff]
  %v3269 = vld [vmem:[%s2 + $0x198] sm:$0xff]
  %v3270 = vld [vmem:[%s2 + $0x1a0] sm:$0xff]
  %v3271 = vld [vmem:[%s2 + $0x1a8] sm:$0xff]
  %v3272 = vld [vmem:[%s2 + $0x1b0] sm:$0xff]
  %v3273 = vld [vmem:[%s2 + $0x1b8] sm:$0xff]
  %v3274 = vld [vmem:[%s2 + $0x1c0] sm:$0xff]
  %v3275 = vld [vmem:[%s2 + $0x1c8] sm:$0xff]
  %v3276 = vld [vmem:[%s2 + $0x1d0] sm:$0xff]
  %v3277 = vld [vmem:[%s2 + $0x1d8] sm:$0xff]
  %v3278 = vld [vmem:[%s2 + $0x1e0] sm:$0xff]
  %v3279 = vld [vmem:[%s2 + $0x1e8] sm:$0xff]
  %v3280 = vld [vmem:[%s2 + $0x1f0] sm:$0xff]
  %v3281 = vld [vmem:[%s2 + $0x1f8] sm:$0xff]
  %v3282 = vld [vmem:[%s2 + $0x200] sm:$0xff]
  %v3283 = vld [vmem:[%s2 + $0x208] sm:$0xff]
  %v3284 = vld [vmem:[%s2 + $0x210] sm:$0xff]
  %v3285 = vld [vmem:[%s2 + $0x218] sm:$0xff]
  %v3286 = vld [vmem:[%s2 + $0x220] sm:$0xff]
  %v3287 = vld [vmem:[%s2 + $0x228] sm:$0xff]
  %v3288 = vld [vmem:[%s2 + $0x230] sm:$0xff]
  %v3289 = vld [vmem:[%s2 + $0x238] sm:$0xff]
  %v3290 = vld [vmem:[%s2 + $0x240] sm:$0xff]
  %v3291 = vld [vmem:[%s2 + $0x248] sm:$0xff]
  %v3292 = vld [vmem:[%s2 + $0x250] sm:$0xff]
  %v3293 = vld [vmem:[%s2 + $0x258] sm:$0xff]
  %v3294 = vld [vmem:[%s2 + $0x260] sm:$0xff]
  %v3295 = vld [vmem:[%s2 + $0x268] sm:$0xff]
  %v3296 = vld [vmem:[%s2 + $0x270] sm:$0xff]
  %v3297 = vld [vmem:[%s2 + $0x278] sm:$0xff]
  %v3298 = vld [vmem:[%s2 + $0x280] sm:$0xff]
  %v3299 = vld [vmem:[%s2 + $0x288] sm:$0xff]
  %v3300 = vld [vmem:[%s2 + $0x290] sm:$0xff]
  %v3301 = vld [vmem:[%s2 + $0x298] sm:$0xff]
  %v3302 = vld [vmem:[%s2 + $0x2a0] sm:$0xff]
  %v3303 = vld [vmem:[%s2 + $0x2a8] sm:$0xff]
  %v3304 = vld [vmem:[%s2 + $0x2b0] sm:$0xff]
  %v3305 = vld [vmem:[%s2 + $0x2b8] sm:$0xff]
  %v3306 = vld [vmem:[%s2 + $0x2c0] sm:$0xff]
  %v3307 = vld [vmem:[%s2 + $0x2c8] sm:$0xff]
  %v3308 = vld [vmem:[%s2 + $0x2d0] sm:$0xff]
  %v3309 = vld [vmem:[%s2 + $0x2d8] sm:$0xff]
  %v3310 = vld [vmem:[%s2 + $0x2e0] sm:$0xff]
  %v3311 = vld [vmem:[%s2 + $0x2e8] sm:$0xff]
  %v3312 = vld [vmem:[%s2 + $0x2f0] sm:$0xff]
  %v3313 = vld [vmem:[%s2 + $0x2f8] sm:$0xff]
  %v3314 = vld [vmem:[%s2 + $0x300] sm:$0xff]
  %v3315 = vld [vmem:[%s2 + $0x308] sm:$0xff]
  %v3316 = vld [vmem:[%s2 + $0x310] sm:$0xff]
  %v3317 = vld [vmem:[%s2 + $0x318] sm:$0xff]
  %v3318 = vld [vmem:[%s2 + $0x320] sm:$0xff]
  %v3319 = vld [vmem:[%s2 + $0x328] sm:$0xff]
  %v3320 = vld [vmem:[%s2 + $0x330] sm:$0xff]
  %v3321 = vld [vmem:[%s2 + $0x338] sm:$0xff]
  %v3322 = vld [vmem:[%s2 + $0x340] sm:$0xff]
  %v3323 = vld [vmem:[%s2 + $0x348] sm:$0xff]
  %v3324 = vld [vmem:[%s2 + $0x350] sm:$0xff]
  %v3325 = vld [vmem:[%s2 + $0x358] sm:$0xff]
  %v3326 = vld [vmem:[%s2 + $0x360] sm:$0xff]
  %v3327 = vld [vmem:[%s2 + $0x368] sm:$0xff]
  %v3328 = vld [vmem:[%s2 + $0x370] sm:$0xff]
  %v3329 = vld [vmem:[%s2 + $0x378] sm:$0xff]
  %v3330 = vld [vmem:[%s2 + $0x380] sm:$0xff]
  %v3331 = vld [vmem:[%s2 + $0x388] sm:$0xff]
  %v3332 = vld [vmem:[%s2 + $0x390] sm:$0xff]
  %v3333 = vld [vmem:[%s2 + $0x398] sm:$0xff]
  %v3334 = vld [vmem:[%s2 + $0x3a0] sm:$0xff]
  %v3335 = vld [vmem:[%s2 + $0x3a8] sm:$0xff]
  %v3336 = vld [vmem:[%s2 + $0x3b0] sm:$0xff]
  %v3337 = vld [vmem:[%s2 + $0x3b8] sm:$0xff]
  %v3338 = vld [vmem:[%s2 + $0x3c0] sm:$0xff]
  %v3339 = vld [vmem:[%s2 + $0x3c8] sm:$0xff]
  %v3340 = vld [vmem:[%s2 + $0x3d0] sm:$0xff]
  %v3341 = vld [vmem:[%s2 + $0x3d8] sm:$0xff]
  %v3342 = vld [vmem:[%s2 + $0x3e0] sm:$0xff]
  %v3343 = vld [vmem:[%s2 + $0x3e8] sm:$0xff]
  %v3344 = vld [vmem:[%s2 + $0x3f0] sm:$0xff]
  %v3345 = vld [vmem:[%s2 + $0x3f8] sm:$0xff]
  %v3474 = vunpack.c.l.b16 %v3218
  %v3475 = vunpack.c.h.b16 %v3218
  %v3476 = vunpack.c.l.b16 %v3219
  %v3477 = vunpack.c.h.b16 %v3219
  %v3478 = vunpack.c.l.b16 %v3220
  %v3479 = vunpack.c.h.b16 %v3220
  %v3480 = vunpack.c.l.b16 %v3221
  %v3481 = vunpack.c.h.b16 %v3221
  %v3482 = vunpack.c.l.b16 %v3222
  %v3483 = vunpack.c.h.b16 %v3222
  %v3484 = vunpack.c.l.b16 %v3223
  %v3485 = vunpack.c.h.b16 %v3223
  %v3486 = vunpack.c.l.b16 %v3224
  %v3487 = vunpack.c.h.b16 %v3224
  %v3488 = vunpack.c.l.b16 %v3225
  %v3489 = vunpack.c.h.b16 %v3225
  %v3490 = vunpack.c.l.b16 %v3226
  %v3491 = vunpack.c.h.b16 %v3226
  %v3492 = vunpack.c.l.b16 %v3227
  %v3493 = vunpack.c.h.b16 %v3227
  %v3494 = vunpack.c.l.b16 %v3228
  %v3495 = vunpack.c.h.b16 %v3228
  %v3496 = vunpack.c.l.b16 %v3229
  %v3497 = vunpack.c.h.b16 %v3229
  %v3498 = vunpack.c.l.b16 %v3230
  %v3499 = vunpack.c.h.b16 %v3230
  %v3500 = vunpack.c.l.b16 %v3231
  %v3501 = vunpack.c.h.b16 %v3231
  %v3502 = vunpack.c.l.b16 %v3232
  %v3503 = vunpack.c.h.b16 %v3232
  %v3504 = vunpack.c.l.b16 %v3233
  %v3505 = vunpack.c.h.b16 %v3233
  %v3506 = vunpack.c.l.b16 %v3234
  %v3507 = vunpack.c.h.b16 %v3234
  %v3508 = vunpack.c.l.b16 %v3235
  %v3509 = vunpack.c.h.b16 %v3235
  %v3510 = vunpack.c.l.b16 %v3236
  %v3511 = vunpack.c.h.b16 %v3236
  %v3512 = vunpack.c.l.b16 %v3237
  %v3513 = vunpack.c.h.b16 %v3237
  %v3514 = vunpack.c.l.b16 %v3238
  %v3515 = vunpack.c.h.b16 %v3238
  %v3516 = vunpack.c.l.b16 %v3239
  %v3517 = vunpack.c.h.b16 %v3239
  %v3518 = vunpack.c.l.b16 %v3240
  %v3519 = vunpack.c.h.b16 %v3240
  %v3520 = vunpack.c.l.b16 %v3241
  %v3521 = vunpack.c.h.b16 %v3241
  %v3522 = vunpack.c.l.b16 %v3242
  %v3523 = vunpack.c.h.b16 %v3242
  %v3524 = vunpack.c.l.b16 %v3243
  %v3525 = vunpack.c.h.b16 %v3243
  %v3526 = vunpack.c.l.b16 %v3244
  %v3527 = vunpack.c.h.b16 %v3244
  %v3528 = vunpack.c.l.b16 %v3245
  %v3529 = vunpack.c.h.b16 %v3245
  %v3530 = vunpack.c.l.b16 %v3246
  %v3531 = vunpack.c.h.b16 %v3246
  %v3532 = vunpack.c.l.b16 %v3247
  %v3533 = vunpack.c.h.b16 %v3247
  %v3534 = vunpack.c.l.b16 %v3248
  %v3535 = vunpack.c.h.b16 %v3248
  %v3536 = vunpack.c.l.b16 %v3249
  %v3537 = vunpack.c.h.b16 %v3249
  %v3538 = vunpack.c.l.b16 %v3250
  %v3539 = vunpack.c.h.b16 %v3250
  %v3540 = vunpack.c.l.b16 %v3251
  %v3541 = vunpack.c.h.b16 %v3251
  %v3542 = vunpack.c.l.b16 %v3252
  %v3543 = vunpack.c.h.b16 %v3252
  %v3544 = vunpack.c.l.b16 %v3253
  %v3545 = vunpack.c.h.b16 %v3253
  %v3546 = vunpack.c.l.b16 %v3254
  %v3547 = vunpack.c.h.b16 %v3254
  %v3548 = vunpack.c.l.b16 %v3255
  %v3549 = vunpack.c.h.b16 %v3255
  %v3550 = vunpack.c.l.b16 %v3256
  %v3551 = vunpack.c.h.b16 %v3256
  %v3552 = vunpack.c.l.b16 %v3257
  %v3553 = vunpack.c.h.b16 %v3257
  %v3554 = vunpack.c.l.b16 %v3258
  %v3555 = vunpack.c.h.b16 %v3258
  %v3556 = vunpack.c.l.b16 %v3259
  %v3557 = vunpack.c.h.b16 %v3259
  %v3558 = vunpack.c.l.b16 %v3260
  %v3559 = vunpack.c.h.b16 %v3260
  %v3560 = vunpack.c.l.b16 %v3261
  %v3561 = vunpack.c.h.b16 %v3261
  %v3562 = vunpack.c.l.b16 %v3262
  %v3563 = vunpack.c.h.b16 %v3262
  %v3564 = vunpack.c.l.b16 %v3263
  %v3565 = vunpack.c.h.b16 %v3263
  %v3566 = vunpack.c.l.b16 %v3264
  %v3567 = vunpack.c.h.b16 %v3264
  %v3568 = vunpack.c.l.b16 %v3265
  %v3569 = vunpack.c.h.b16 %v3265
  %v3570 = vunpack.c.l.b16 %v3266
  %v3571 = vunpack.c.h.b16 %v3266
  %v3572 = vunpack.c.l.b16 %v3267
  %v3573 = vunpack.c.h.b16 %v3267
  %v3574 = vunpack.c.l.b16 %v3268
  %v3575 = vunpack.c.h.b16 %v3268
  %v3576 = vunpack.c.l.b16 %v3269
  %v3577 = vunpack.c.h.b16 %v3269
  %v3578 = vunpack.c.l.b16 %v3270
  %v3579 = vunpack.c.h.b16 %v3270
  %v3580 = vunpack.c.l.b16 %v3271
  %v3581 = vunpack.c.h.b16 %v3271
  %v3582 = vunpack.c.l.b16 %v3272
  %v3583 = vunpack.c.h.b16 %v3272
  %v3584 = vunpack.c.l.b16 %v3273
  %v3585 = vunpack.c.h.b16 %v3273
  %v3586 = vunpack.c.l.b16 %v3274
  %v3587 = vunpack.c.h.b16 %v3274
  %v3588 = vunpack.c.l.b16 %v3275
  %v3589 = vunpack.c.h.b16 %v3275
  %v3590 = vunpack.c.l.b16 %v3276
  %v3591 = vunpack.c.h.b16 %v3276
  %v3592 = vunpack.c.l.b16 %v3277
  %v3593 = vunpack.c.h.b16 %v3277
  %v3594 = vunpack.c.l.b16 %v3278
  %v3595 = vunpack.c.h.b16 %v3278
  %v3596 = vunpack.c.l.b16 %v3279
  %v3597 = vunpack.c.h.b16 %v3279
  %v3598 = vunpack.c.l.b16 %v3280
  %v3599 = vunpack.c.h.b16 %v3280
  %v3600 = vunpack.c.l.b16 %v3281
  %v3601 = vunpack.c.h.b16 %v3281
  %v3602 = vunpack.c.l.b16 %v3282
  %v3603 = vunpack.c.h.b16 %v3282
  %v3604 = vunpack.c.l.b16 %v3283
  %v3605 = vunpack.c.h.b16 %v3283
  %v3606 = vunpack.c.l.b16 %v3284
  %v3607 = vunpack.c.h.b16 %v3284
  %v3608 = vunpack.c.l.b16 %v3285
  %v3609 = vunpack.c.h.b16 %v3285
  %v3610 = vunpack.c.l.b16 %v3286
  %v3611 = vunpack.c.h.b16 %v3286
  %v3612 = vunpack.c.l.b16 %v3287
  %v3613 = vunpack.c.h.b16 %v3287
  %v3614 = vunpack.c.l.b16 %v3288
  %v3615 = vunpack.c.h.b16 %v3288
  %v3616 = vunpack.c.l.b16 %v3289
  %v3617 = vunpack.c.h.b16 %v3289
  %v3618 = vunpack.c.l.b16 %v3290
  %v3619 = vunpack.c.h.b16 %v3290
  %v3620 = vunpack.c.l.b16 %v3291
  %v3621 = vunpack.c.h.b16 %v3291
  %v3622 = vunpack.c.l.b16 %v3292
  %v3623 = vunpack.c.h.b16 %v3292
  %v3624 = vunpack.c.l.b16 %v3293
  %v3625 = vunpack.c.h.b16 %v3293
  %v3626 = vunpack.c.l.b16 %v3294
  %v3627 = vunpack.c.h.b16 %v3294
  %v3628 = vunpack.c.l.b16 %v3295
  %v3629 = vunpack.c.h.b16 %v3295
  %v3630 = vunpack.c.l.b16 %v3296
  %v3631 = vunpack.c.h.b16 %v3296
  %v3632 = vunpack.c.l.b16 %v3297
  %v3633 = vunpack.c.h.b16 %v3297
  %v3634 = vunpack.c.l.b16 %v3298
  %v3635 = vunpack.c.h.b16 %v3298
  %v3636 = vunpack.c.l.b16 %v3299
  %v3637 = vunpack.c.h.b16 %v3299
  %v3638 = vunpack.c.l.b16 %v3300
  %v3639 = vunpack.c.h.b16 %v3300
  %v3640 = vunpack.c.l.b16 %v3301
  %v3641 = vunpack.c.h.b16 %v3301
  %v3642 = vunpack.c.l.b16 %v3302
  %v3643 = vunpack.c.h.b16 %v3302
  %v3644 = vunpack.c.l.b16 %v3303
  %v3645 = vunpack.c.h.b16 %v3303
  %v3646 = vunpack.c.l.b16 %v3304
  %v3647 = vunpack.c.h.b16 %v3304
  %v3648 = vunpack.c.l.b16 %v3305
  %v3649 = vunpack.c.h.b16 %v3305
  %v3650 = vunpack.c.l.b16 %v3306
  %v3651 = vunpack.c.h.b16 %v3306
  %v3652 = vunpack.c.l.b16 %v3307
  %v3653 = vunpack.c.h.b16 %v3307
  %v3654 = vunpack.c.l.b16 %v3308
  %v3655 = vunpack.c.h.b16 %v3308
  %v3656 = vunpack.c.l.b16 %v3309
  %v3657 = vunpack.c.h.b16 %v3309
  %v3658 = vunpack.c.l.b16 %v3310
  %v3659 = vunpack.c.h.b16 %v3310
  %v3660 = vunpack.c.l.b16 %v3311
  %v3661 = vunpack.c.h.b16 %v3311
  %v3662 = vunpack.c.l.b16 %v3312
  %v3663 = vunpack.c.h.b16 %v3312
  %v3664 = vunpack.c.l.b16 %v3313
  %v3665 = vunpack.c.h.b16 %v3313
  %v3666 = vunpack.c.l.b16 %v3314
  %v3667 = vunpack.c.h.b16 %v3314
  %v3668 = vunpack.c.l.b16 %v3315
  %v3669 = vunpack.c.h.b16 %v3315
  %v3670 = vunpack.c.l.b16 %v3316
  %v3671 = vunpack.c.h.b16 %v3316
  %v3672 = vunpack.c.l.b16 %v3317
  %v3673 = vunpack.c.h.b16 %v3317
  %v3674 = vunpack.c.l.b16 %v3318
  %v3675 = vunpack.c.h.b16 %v3318
  %v3676 = vunpack.c.l.b16 %v3319
  %v3677 = vunpack.c.h.b16 %v3319
  %v3678 = vunpack.c.l.b16 %v3320
  %v3679 = vunpack.c.h.b16 %v3320
  %v3680 = vunpack.c.l.b16 %v3321
  %v3681 = vunpack.c.h.b16 %v3321
  %v3682 = vunpack.c.l.b16 %v3322
  %v3683 = vunpack.c.h.b16 %v3322
  %v3684 = vunpack.c.l.b16 %v3323
  %v3685 = vunpack.c.h.b16 %v3323
  %v3686 = vunpack.c.l.b16 %v3324
  %v3687 = vunpack.c.h.b16 %v3324
  %v3688 = vunpack.c.l.b16 %v3325
  %v3689 = vunpack.c.h.b16 %v3325
  %v3690 = vunpack.c.l.b16 %v3326
  %v3691 = vunpack.c.h.b16 %v3326
  %v3692 = vunpack.c.l.b16 %v3327
  %v3693 = vunpack.c.h.b16 %v3327
  %v3694 = vunpack.c.l.b16 %v3328
  %v3695 = vunpack.c.h.b16 %v3328
  %v3696 = vunpack.c.l.b16 %v3329
  %v3697 = vunpack.c.h.b16 %v3329
  %v3698 = vunpack.c.l.b16 %v3330
  %v3699 = vunpack.c.h.b16 %v3330
  %v3700 = vunpack.c.l.b16 %v3331
  %v3701 = vunpack.c.h.b16 %v3331
  %v3702 = vunpack.c.l.b16 %v3332
  %v3703 = vunpack.c.h.b16 %v3332
  %v3704 = vunpack.c.l.b16 %v3333
  %v3705 = vunpack.c.h.b16 %v3333
  %v3706 = vunpack.c.l.b16 %v3334
  %v3707 = vunpack.c.h.b16 %v3334
  %v3708 = vunpack.c.l.b16 %v3335
  %v3709 = vunpack.c.h.b16 %v3335
  %v3710 = vunpack.c.l.b16 %v3336
  %v3711 = vunpack.c.h.b16 %v3336
  %v3712 = vunpack.c.l.b16 %v3337
  %v3713 = vunpack.c.h.b16 %v3337
  %v3714 = vunpack.c.l.b16 %v3338
  %v3715 = vunpack.c.h.b16 %v3338
  %v3716 = vunpack.c.l.b16 %v3339
  %v3717 = vunpack.c.h.b16 %v3339
  %v3718 = vunpack.c.l.b16 %v3340
  %v3719 = vunpack.c.h.b16 %v3340
  %v3720 = vunpack.c.l.b16 %v3341
  %v3721 = vunpack.c.h.b16 %v3341
  %v3722 = vunpack.c.l.b16 %v3342
  %v3723 = vunpack.c.h.b16 %v3342
  %v3724 = vunpack.c.l.b16 %v3343
  %v3725 = vunpack.c.h.b16 %v3343
  %v3726 = vunpack.c.l.b16 %v3344
  %v3727 = vunpack.c.h.b16 %v3344
  %v3728 = vunpack.c.l.b16 %v3345
  %v3729 = vunpack.c.h.b16 %v3345
  %v3730 = vpack.c.b16 %v3476, %v3474
  %v3731 = vpack.c.b16 %v3477, %v3475
  %v3732 = vpack.c.b16 %v3480, %v3478
  %v3733 = vpack.c.b16 %v3481, %v3479
  %v3734 = vpack.c.b16 %v3484, %v3482
  %v3735 = vpack.c.b16 %v3485, %v3483
  %v3736 = vpack.c.b16 %v3488, %v3486
  %v3737 = vpack.c.b16 %v3489, %v3487
  %v3738 = vpack.c.b16 %v3492, %v3490
  %v3739 = vpack.c.b16 %v3493, %v3491
  %v3740 = vpack.c.b16 %v3496, %v3494
  %v3741 = vpack.c.b16 %v3497, %v3495
  %v3742 = vpack.c.b16 %v3500, %v3498
  %v3743 = vpack.c.b16 %v3501, %v3499
  %v3744 = vpack.c.b16 %v3504, %v3502
  %v3745 = vpack.c.b16 %v3505, %v3503
  %v3746 = vpack.c.b16 %v3508, %v3506
  %v3747 = vpack.c.b16 %v3509, %v3507
  %v3748 = vpack.c.b16 %v3512, %v3510
  %v3749 = vpack.c.b16 %v3513, %v3511
  %v3750 = vpack.c.b16 %v3516, %v3514
  %v3751 = vpack.c.b16 %v3517, %v3515
  %v3752 = vpack.c.b16 %v3520, %v3518
  %v3753 = vpack.c.b16 %v3521, %v3519
  %v3754 = vpack.c.b16 %v3524, %v3522
  %v3755 = vpack.c.b16 %v3525, %v3523
  %v3756 = vpack.c.b16 %v3528, %v3526
  %v3757 = vpack.c.b16 %v3529, %v3527
  %v3758 = vpack.c.b16 %v3532, %v3530
  %v3759 = vpack.c.b16 %v3533, %v3531
  %v3760 = vpack.c.b16 %v3536, %v3534
  %v3761 = vpack.c.b16 %v3537, %v3535
  %v3762 = vpack.c.b16 %v3540, %v3538
  %v3763 = vpack.c.b16 %v3541, %v3539
  %v3764 = vpack.c.b16 %v3544, %v3542
  %v3765 = vpack.c.b16 %v3545, %v3543
  %v3766 = vpack.c.b16 %v3548, %v3546
  %v3767 = vpack.c.b16 %v3549, %v3547
  %v3768 = vpack.c.b16 %v3552, %v3550
  %v3769 = vpack.c.b16 %v3553, %v3551
  %v3770 = vpack.c.b16 %v3556, %v3554
  %v3771 = vpack.c.b16 %v3557, %v3555
  %v3772 = vpack.c.b16 %v3560, %v3558
  %v3773 = vpack.c.b16 %v3561, %v3559
  %v3774 = vpack.c.b16 %v3564, %v3562
  %v3775 = vpack.c.b16 %v3565, %v3563
  %v3776 = vpack.c.b16 %v3568, %v3566
  %v3777 = vpack.c.b16 %v3569, %v3567
  %v3778 = vpack.c.b16 %v3572, %v3570
  %v3779 = vpack.c.b16 %v3573, %v3571
  %v3780 = vpack.c.b16 %v3576, %v3574
  %v3781 = vpack.c.b16 %v3577, %v3575
  %v3782 = vpack.c.b16 %v3580, %v3578
  %v3783 = vpack.c.b16 %v3581, %v3579
  %v3784 = vpack.c.b16 %v3584, %v3582
  %v3785 = vpack.c.b16 %v3585, %v3583
  %v3786 = vpack.c.b16 %v3588, %v3586
  %v3787 = vpack.c.b16 %v3589, %v3587
  %v3788 = vpack.c.b16 %v3592, %v3590
  %v3789 = vpack.c.b16 %v3593, %v3591
  %v3790 = vpack.c.b16 %v3596, %v3594
  %v3791 = vpack.c.b16 %v3597, %v3595
  %v3792 = vpack.c.b16 %v3600, %v3598
  %v3793 = vpack.c.b16 %v3601, %v3599
  %v3794 = vpack.c.b16 %v3604, %v3602
  %v3795 = vpack.c.b16 %v3605, %v3603
  %v3796 = vpack.c.b16 %v3608, %v3606
  %v3797 = vpack.c.b16 %v3609, %v3607
  %v3798 = vpack.c.b16 %v3612, %v3610
  %v3799 = vpack.c.b16 %v3613, %v3611
  %v3800 = vpack.c.b16 %v3616, %v3614
  %v3801 = vpack.c.b16 %v3617, %v3615
  %v3802 = vpack.c.b16 %v3620, %v3618
  %v3803 = vpack.c.b16 %v3621, %v3619
  %v3804 = vpack.c.b16 %v3624, %v3622
  %v3805 = vpack.c.b16 %v3625, %v3623
  %v3806 = vpack.c.b16 %v3628, %v3626
  %v3807 = vpack.c.b16 %v3629, %v3627
  %v3808 = vpack.c.b16 %v3632, %v3630
  %v3809 = vpack.c.b16 %v3633, %v3631
  %v3810 = vpack.c.b16 %v3636, %v3634
  %v3811 = vpack.c.b16 %v3637, %v3635
  %v3812 = vpack.c.b16 %v3640, %v3638
  %v3813 = vpack.c.b16 %v3641, %v3639
  %v3814 = vpack.c.b16 %v3644, %v3642
  %v3815 = vpack.c.b16 %v3645, %v3643
  %v3816 = vpack.c.b16 %v3648, %v3646
  %v3817 = vpack.c.b16 %v3649, %v3647
  %v3818 = vpack.c.b16 %v3652, %v3650
  %v3819 = vpack.c.b16 %v3653, %v3651
  %v3820 = vpack.c.b16 %v3656, %v3654
  %v3821 = vpack.c.b16 %v3657, %v3655
  %v3822 = vpack.c.b16 %v3660, %v3658
  %v3823 = vpack.c.b16 %v3661, %v3659
  %v3824 = vpack.c.b16 %v3664, %v3662
  %v3825 = vpack.c.b16 %v3665, %v3663
  %v3826 = vpack.c.b16 %v3668, %v3666
  %v3827 = vpack.c.b16 %v3669, %v3667
  %v3828 = vpack.c.b16 %v3672, %v3670
  %v3829 = vpack.c.b16 %v3673, %v3671
  %v3830 = vpack.c.b16 %v3676, %v3674
  %v3831 = vpack.c.b16 %v3677, %v3675
  %v3832 = vpack.c.b16 %v3680, %v3678
  %v3833 = vpack.c.b16 %v3681, %v3679
  %v3834 = vpack.c.b16 %v3684, %v3682
  %v3835 = vpack.c.b16 %v3685, %v3683
  %v3836 = vpack.c.b16 %v3688, %v3686
  %v3837 = vpack.c.b16 %v3689, %v3687
  %v3838 = vpack.c.b16 %v3692, %v3690
  %v3839 = vpack.c.b16 %v3693, %v3691
  %v3840 = vpack.c.b16 %v3696, %v3694
  %v3841 = vpack.c.b16 %v3697, %v3695
  %v3842 = vpack.c.b16 %v3700, %v3698
  %v3843 = vpack.c.b16 %v3701, %v3699
  %v3844 = vpack.c.b16 %v3704, %v3702
  %v3845 = vpack.c.b16 %v3705, %v3703
  %v3846 = vpack.c.b16 %v3708, %v3706
  %v3847 = vpack.c.b16 %v3709, %v3707
  %v3848 = vpack.c.b16 %v3712, %v3710
  %v3849 = vpack.c.b16 %v3713, %v3711
  %v3850 = vpack.c.b16 %v3716, %v3714
  %v3851 = vpack.c.b16 %v3717, %v3715
  %v3852 = vpack.c.b16 %v3720, %v3718
  %v3853 = vpack.c.b16 %v3721, %v3719
  %v3854 = vpack.c.b16 %v3724, %v3722
  %v3855 = vpack.c.b16 %v3725, %v3723
  %v3856 = vpack.c.b16 %v3728, %v3726
  %v3857 = vpack.c.b16 %v3729, %v3727
  %3986 = vmatprep.subr.bf16.mxu0 %v3731
  %3987 = vmatpush1.bf16.msra.mxu0 %v3730
  %3988 = vmatprep.subr.bf16.mxu0 %v3733
  %3989 = vmatpush1.bf16.msra.mxu0 %v3732
  %3990 = vmatprep.subr.bf16.mxu0 %v3735
  %3991 = vmatpush1.bf16.msra.mxu0 %v3734
  %3992 = vmatprep.subr.bf16.mxu0 %v3737
  %3993 = vmatpush1.bf16.msra.mxu0 %v3736
  %3994 = vmatprep.subr.bf16.mxu0 %v3739
  %3995 = vmatpush1.bf16.msra.mxu0 %v3738
  %3996 = vmatprep.subr.bf16.mxu0 %v3741
  %3997 = vmatpush1.bf16.msra.mxu0 %v3740
  %3998 = vmatprep.subr.bf16.mxu0 %v3743
  %3999 = vmatpush1.bf16.msra.mxu0 %v3742
  %4000 = vmatprep.subr.bf16.mxu0 %v3745
  %4001 = vmatpush1.bf16.msra.mxu0 %v3744
  %4002 = vmatprep.subr.bf16.mxu0 %v3747
  %4003 = vmatpush1.bf16.msra.mxu0 %v3746
  %4004 = vmatprep.subr.bf16.mxu0 %v3749
  %4005 = vmatpush1.bf16.msra.mxu0 %v3748
  %4006 = vmatprep.subr.bf16.mxu0 %v3751
  %4007 = vmatpush1.bf16.msra.mxu0 %v3750
  %4008 = vmatprep.subr.bf16.mxu0 %v3753
  %4009 = vmatpush1.bf16.msra.mxu0 %v3752
  %4010 = vmatprep.subr.bf16.mxu0 %v3755
  %4011 = vmatpush1.bf16.msra.mxu0 %v3754
  %4012 = vmatprep.subr.bf16.mxu0 %v3757
  %4013 = vmatpush1.bf16.msra.mxu0 %v3756
  %4014 = vmatprep.subr.bf16.mxu0 %v3759
  %4015 = vmatpush1.bf16.msra.mxu0 %v3758
  %4016 = vmatprep.subr.bf16.mxu0 %v3761
  %4017 = vmatpush1.bf16.msra.mxu0 %v3760
  %4018 = vmatprep.mubr.bf16.mxu0 %v3211
  %4019 = vmatmul.mubr.bf16.gmra.mrb[0].mxu0 %v3210
  %v4020 = vpop.f32.mrb[0].mxu0
  %v4021 = vadd.f32 0.0, %v4020
  %v4022 = vpop.f32.mrb[0].mxu0
  %v4023 = vadd.f32 0.0, %v4022
  %v4024 = vpop.f32.mrb[0].mxu0
  %v4025 = vpop.f32.mrb[0].mxu0
  %4026 = vdwg.mxu0
  %4027 = vmatprep.subr.bf16.mxu0 %v3763
  %4028 = vmatpush1.bf16.msra.mxu0 %v3762
  %4029 = vmatprep.subr.bf16.mxu0 %v3765
  %4030 = vmatpush1.bf16.msra.mxu0 %v3764
  %4031 = vmatprep.subr.bf16.mxu0 %v3767
  %4032 = vmatpush1.bf16.msra.mxu0 %v3766
  %4033 = vmatprep.subr.bf16.mxu0 %v3769
  %4034 = vmatpush1.bf16.msra.mxu0 %v3768
  %4035 = vmatprep.subr.bf16.mxu0 %v3771
  %4036 = vmatpush1.bf16.msra.mxu0 %v3770
  %4037 = vmatprep.subr.bf16.mxu0 %v3773
  %4038 = vmatpush1.bf16.msra.mxu0 %v3772
  %4039 = vmatprep.subr.bf16.mxu0 %v3775
  %4040 = vmatpush1.bf16.msra.mxu0 %v3774
  %4041 = vmatprep.subr.bf16.mxu0 %v3777
  %4042 = vmatpush1.bf16.msra.mxu0 %v3776
  %4043 = vmatprep.subr.bf16.mxu0 %v3779
  %4044 = vmatpush1.bf16.msra.mxu0 %v3778
  %4045 = vmatprep.subr.bf16.mxu0 %v3781
  %4046 = vmatpush1.bf16.msra.mxu0 %v3780
  %4047 = vmatprep.subr.bf16.mxu0 %v3783
  %4048 = vmatpush1.bf16.msra.mxu0 %v3782
  %4049 = vmatprep.subr.bf16.mxu0 %v3785
  %4050 = vmatpush1.bf16.msra.mxu0 %v3784
  %4051 = vmatprep.subr.bf16.mxu0 %v3787
  %4052 = vmatpush1.bf16.msra.mxu0 %v3786
  %4053 = vmatprep.subr.bf16.mxu0 %v3789
  %4054 = vmatpush1.bf16.msra.mxu0 %v3788
  %4055 = vmatprep.subr.bf16.mxu0 %v3791
  %4056 = vmatpush1.bf16.msra.mxu0 %v3790
  %4057 = vmatprep.subr.bf16.mxu0 %v3793
  %4058 = vmatpush1.bf16.msra.mxu0 %v3792
  %4059 = vmatprep.mubr.bf16.mxu0 %v3213
  %4060 = vmatmul.mubr.bf16.gmra.mrb[0].mxu0 %v3212
  %v4061 = vpop.f32.mrb[0].mxu0
  %v4062 = vadd.f32 %v4021, %v4061
  %v4063 = vpop.f32.mrb[0].mxu0
  %v4064 = vadd.f32 %v4023, %v4063
  %v4065 = vpop.f32.mrb[0].mxu0
  %v4066 = vpop.f32.mrb[0].mxu0
  %4067 = vdwg.mxu0
  %4068 = vmatprep.subr.bf16.mxu0 %v3795
  %4069 = vmatpush1.bf16.msra.mxu0 %v3794
  %4070 = vmatprep.subr.bf16.mxu0 %v3797
  %4071 = vmatpush1.bf16.msra.mxu0 %v3796
  %4072 = vmatprep.subr.bf16.mxu0 %v3799
  %4073 = vmatpush1.bf16.msra.mxu0 %v3798
  %4074 = vmatprep.subr.bf16.mxu0 %v3801
  %4075 = vmatpush1.bf16.msra.mxu0 %v3800
  %4076 = vmatprep.subr.bf16.mxu0 %v3803
  %4077 = vmatpush1.bf16.msra.mxu0 %v3802
  %4078 = vmatprep.subr.bf16.mxu0 %v3805
  %4079 = vmatpush1.bf16.msra.mxu0 %v3804
  %4080 = vmatprep.subr.bf16.mxu0 %v3807
  %4081 = vmatpush1.bf16.msra.mxu0 %v3806
  %4082 = vmatprep.subr.bf16.mxu0 %v3809
  %4083 = vmatpush1.bf16.msra.mxu0 %v3808
  %4084 = vmatprep.subr.bf16.mxu0 %v3811
  %4085 = vmatpush1.bf16.msra.mxu0 %v3810
  %4086 = vmatprep.subr.bf16.mxu0 %v3813
  %4087 = vmatpush1.bf16.msra.mxu0 %v3812
  %4088 = vmatprep.subr.bf16.mxu0 %v3815
  %4089 = vmatpush1.bf16.msra.mxu0 %v3814
  %4090 = vmatprep.subr.bf16.mxu0 %v3817
  %4091 = vmatpush1.bf16.msra.mxu0 %v3816
  %4092 = vmatprep.subr.bf16.mxu0 %v3819
  %4093 = vmatpush1.bf16.msra.mxu0 %v3818
  %4094 = vmatprep.subr.bf16.mxu0 %v3821
  %4095 = vmatpush1.bf16.msra.mxu0 %v3820
  %4096 = vmatprep.subr.bf16.mxu0 %v3823
  %4097 = vmatpush1.bf16.msra.mxu0 %v3822
  %4098 = vmatprep.subr.bf16.mxu0 %v3825
  %4099 = vmatpush1.bf16.msra.mxu0 %v3824
  %4100 = vmatprep.mubr.bf16.mxu0 %v3215
  %4101 = vmatmul.mubr.bf16.gmra.mrb[0].mxu0 %v3214
  %v4102 = vpop.f32.mrb[0].mxu0
  %v4103 = vadd.f32 %v4062, %v4102
  %v4104 = vpop.f32.mrb[0].mxu0
  %v4105 = vadd.f32 %v4064, %v4104
  %v4106 = vpop.f32.mrb[0].mxu0
  %v4107 = vpop.f32.mrb[0].mxu0
  %4108 = vdwg.mxu0
  %4109 = vmatprep.subr.bf16.mxu0 %v3827
  %4110 = vmatpush1.bf16.msra.mxu0 %v3826
  %4111 = vmatprep.subr.bf16.mxu0 %v3829
  %4112 = vmatpush1.bf16.msra.mxu0 %v3828
  %4113 = vmatprep.subr.bf16.mxu0 %v3831
  %4114 = vmatpush1.bf16.msra.mxu0 %v3830
  %4115 = vmatprep.subr.bf16.mxu0 %v3833
  %4116 = vmatpush1.bf16.msra.mxu0 %v3832
  %4117 = vmatprep.subr.bf16.mxu0 %v3835
  %4118 = vmatpush1.bf16.msra.mxu0 %v3834
  %4119 = vmatprep.subr.bf16.mxu0 %v3837
  %4120 = vmatpush1.bf16.msra.mxu0 %v3836
  %4121 = vmatprep.subr.bf16.mxu0 %v3839
  %4122 = vmatpush1.bf16.msra.mxu0 %v3838
  %4123 = vmatprep.subr.bf16.mxu0 %v3841
  %4124 = vmatpush1.bf16.msra.mxu0 %v3840
  %4125 = vmatprep.subr.bf16.mxu0 %v3843
  %4126 = vmatpush1.bf16.msra.mxu0 %v3842
  %4127 = vmatprep.subr.bf16.mxu0 %v3845
  %4128 = vmatpush1.bf16.msra.mxu0 %v3844
  %4129 = vmatprep.subr.bf16.mxu0 %v3847
  %4130 = vmatpush1.bf16.msra.mxu0 %v3846
  %4131 = vmatprep.subr.bf16.mxu0 %v3849
  %4132 = vmatpush1.bf16.msra.mxu0 %v3848
  %4133 = vmatprep.subr.bf16.mxu0 %v3851
  %4134 = vmatpush1.bf16.msra.mxu0 %v3850
  %4135 = vmatprep.subr.bf16.mxu0 %v3853
  %4136 = vmatpush1.bf16.msra.mxu0 %v3852
  %4137 = vmatprep.subr.bf16.mxu0 %v3855
  %4138 = vmatpush1.bf16.msra.mxu0 %v3854
  %4139 = vmatprep.subr.bf16.mxu0 %v3857
  %4140 = vmatpush1.bf16.msra.mxu0 %v3856
  %4141 = vmatprep.mubr.bf16.mxu0 %v3217
  %4142 = vmatmul.mubr.bf16.gmra.mrb[0].mxu0 %v3216
  %v4143 = vpop.f32.mrb[0].mxu0
  %v4144 = vadd.f32 %v4103, %v4143
  %v4145 = vpop.f32.mrb[0].mxu0
  %v4146 = vadd.f32 %v4105, %v4145
  %v4147 = vpop.f32.mrb[0].mxu0
  %v4148 = vpop.f32.mrb[0].mxu0
  %4149 = vdwg.mxu0
  %v4150 = vmul.f32 %v4144, 0.2
  %v4151 = vmul.f32 %v4146, 0.2
  %v4152 = vmax.f32 %v4144, %v4150
  %v4153 = vmax.f32 %v4146, %v4151
  %v4154 = vpack.c.bf16 %v4152, %v4152
  %v4155 = vpack.c.bf16 %v4153, %v4153
  %v4156 = vld [vmem:[%s3] sm:$0xff]
  %v4157 = vld [vmem:[%s3 + $0x8] sm:$0xff]
  %v4158 = vld [vmem:[%s3 + $0x10] sm:$0xff]
  %v4159 = vld [vmem:[%s3 + $0x18] sm:$0xff]
  %v4160 = vld [vmem:[%s3 + $0x20] sm:$0xff]
  %v4161 = vld [vmem:[%s3 + $0x28] sm:$0xff]
  %v4162 = vld [vmem:[%s3 + $0x30] sm:$0xff]
  %v4163 = vld [vmem:[%s3 + $0x38] sm:$0xff]
  %v4164 = vld [vmem:[%s3 + $0x40] sm:$0xff]
  %v4165 = vld [vmem:[%s3 + $0x48] sm:$0xff]
  %v4166 = vld [vmem:[%s3 + $0x50] sm:$0xff]
  %v4167 = vld [vmem:[%s3 + $0x58] sm:$0xff]
  %v4168 = vld [vmem:[%s3 + $0x60] sm:$0xff]
  %v4169 = vld [vmem:[%s3 + $0x68] sm:$0xff]
  %v4170 = vld [vmem:[%s3 + $0x70] sm:$0xff]
  %v4171 = vld [vmem:[%s3 + $0x78] sm:$0xff]
  %v4172 = vld [vmem:[%s3 + $0x80] sm:$0xff]
  %v4173 = vld [vmem:[%s3 + $0x88] sm:$0xff]
  %v4174 = vld [vmem:[%s3 + $0x90] sm:$0xff]
  %v4175 = vld [vmem:[%s3 + $0x98] sm:$0xff]
  %v4176 = vld [vmem:[%s3 + $0xa0] sm:$0xff]
  %v4177 = vld [vmem:[%s3 + $0xa8] sm:$0xff]
  %v4178 = vld [vmem:[%s3 + $0xb0] sm:$0xff]
  %v4179 = vld [vmem:[%s3 + $0xb8] sm:$0xff]
  %v4180 = vld [vmem:[%s3 + $0xc0] sm:$0xff]
  %v4181 = vld [vmem:[%s3 + $0xc8] sm:$0xff]
  %v4182 = vld [vmem:[%s3 + $0xd0] sm:$0xff]
  %v4183 = vld [vmem:[%s3 + $0xd8] sm:$0xff]
  %v4184 = vld [vmem:[%s3 + $0xe0] sm:$0xff]
  %v4185 = vld [vmem:[%s3 + $0xe8] sm:$0xff]
  %v4186 = vld [vmem:[%s3 + $0xf0] sm:$0xff]
  %v4187 = vld [vmem:[%s3 + $0xf8] sm:$0xff]
  %v4220 = vunpack.c.l.b16 %v4156
  %v4221 = vunpack.c.h.b16 %v4156
  %v4222 = vunpack.c.l.b16 %v4157
  %v4223 = vunpack.c.h.b16 %v4157
  %v4224 = vunpack.c.l.b16 %v4158
  %v4225 = vunpack.c.h.b16 %v4158
  %v4226 = vunpack.c.l.b16 %v4159
  %v4227 = vunpack.c.h.b16 %v4159
  %v4228 = vunpack.c.l.b16 %v4160
  %v4229 = vunpack.c.h.b16 %v4160
  %v4230 = vunpack.c.l.b16 %v4161
  %v4231 = vunpack.c.h.b16 %v4161
  %v4232 = vunpack.c.l.b16 %v4162
  %v4233 = vunpack.c.h.b16 %v4162
  %v4234 = vunpack.c.l.b16 %v4163
  %v4235 = vunpack.c.h.b16 %v4163
  %v4236 = vunpack.c.l.b16 %v4164
  %v4237 = vunpack.c.h.b16 %v4164
  %v4238 = vunpack.c.l.b16 %v4165
  %v4239 = vunpack.c.h.b16 %v4165
  %v4240 = vunpack.c.l.b16 %v4166
  %v4241 = vunpack.c.h.b16 %v4166
  %v4242 = vunpack.c.l.b16 %v4167
  %v4243 = vunpack.c.h.b16 %v4167
  %v4244 = vunpack.c.l.b16 %v4168
  %v4245 = vunpack.c.h.b16 %v4168
  %v4246 = vunpack.c.l.b16 %v4169
  %v4247 = vunpack.c.h.b16 %v4169
  %v4248 = vunpack.c.l.b16 %v4170
  %v4249 = vunpack.c.h.b16 %v4170
  %v4250 = vunpack.c.l.b16 %v4171
  %v4251 = vunpack.c.h.b16 %v4171
  %v4252 = vunpack.c.l.b16 %v4172
  %v4253 = vunpack.c.h.b16 %v4172
  %v4254 = vunpack.c.l.b16 %v4173
  %v4255 = vunpack.c.h.b16 %v4173
  %v4256 = vunpack.c.l.b16 %v4174
  %v4257 = vunpack.c.h.b16 %v4174
  %v4258 = vunpack.c.l.b16 %v4175
  %v4259 = vunpack.c.h.b16 %v4175
  %v4260 = vunpack.c.l.b16 %v4176
  %v4261 = vunpack.c.h.b16 %v4176
  %v4262 = vunpack.c.l.b16 %v4177
  %v4263 = vunpack.c.h.b16 %v4177
  %v4264 = vunpack.c.l.b16 %v4178
  %v4265 = vunpack.c.h.b16 %v4178
  %v4266 = vunpack.c.l.b16 %v4179
  %v4267 = vunpack.c.h.b16 %v4179
  %v4268 = vunpack.c.l.b16 %v4180
  %v4269 = vunpack.c.h.b16 %v4180
  %v4270 = vunpack.c.l.b16 %v4181
  %v4271 = vunpack.c.h.b16 %v4181
  %v4272 = vunpack.c.l.b16 %v4182
  %v4273 = vunpack.c.h.b16 %v4182
  %v4274 = vunpack.c.l.b16 %v4183
  %v4275 = vunpack.c.h.b16 %v4183
  %v4276 = vunpack.c.l.b16 %v4184
  %v4277 = vunpack.c.h.b16 %v4184
  %v4278 = vunpack.c.l.b16 %v4185
  %v4279 = vunpack.c.h.b16 %v4185
  %v4280 = vunpack.c.l.b16 %v4186
  %v4281 = vunpack.c.h.b16 %v4186
  %v4282 = vunpack.c.l.b16 %v4187
  %v4283 = vunpack.c.h.b16 %v4187
  %v4284 = vpack.c.b16 %v4222, %v4220
  %v4285 = vpack.c.b16 %v4223, %v4221
  %v4286 = vpack.c.b16 %v4226, %v4224
  %v4287 = vpack.c.b16 %v4227, %v4225
  %v4288 = vpack.c.b16 %v4230, %v4228
  %v4289 = vpack.c.b16 %v4231, %v4229
  %v4290 = vpack.c.b16 %v4234, %v4232
  %v4291 = vpack.c.b16 %v4235, %v4233
  %v4292 = vpack.c.b16 %v4238, %v4236
  %v4293 = vpack.c.b16 %v4239, %v4237
  %v4294 = vpack.c.b16 %v4242, %v4240
  %v4295 = vpack.c.b16 %v4243, %v4241
  %v4296 = vpack.c.b16 %v4246, %v4244
  %v4297 = vpack.c.b16 %v4247, %v4245
  %v4298 = vpack.c.b16 %v4250, %v4248
  %v4299 = vpack.c.b16 %v4251, %v4249
  %v4300 = vpack.c.b16 %v4254, %v4252
  %v4301 = vpack.c.b16 %v4255, %v4253
  %v4302 = vpack.c.b16 %v4258, %v4256
  %v4303 = vpack.c.b16 %v4259, %v4257
  %v4304 = vpack.c.b16 %v4262, %v4260
  %v4305 = vpack.c.b16 %v4263, %v4261
  %v4306 = vpack.c.b16 %v4266, %v4264
  %v4307 = vpack.c.b16 %v4267, %v4265
  %v4308 = vpack.c.b16 %v4270, %v4268
  %v4309 = vpack.c.b16 %v4271, %v4269
  %v4310 = vpack.c.b16 %v4274, %v4272
  %v4311 = vpack.c.b16 %v4275, %v4273
  %v4312 = vpack.c.b16 %v4278, %v4276
  %v4313 = vpack.c.b16 %v4279, %v4277
  %v4314 = vpack.c.b16 %v4282, %v4280
  %v4315 = vpack.c.b16 %v4283, %v4281
  %4348 = vmatprep.subr.bf16.mxu0 %v4285
  %4349 = vmatpush1.bf16.msra.mxu0 %v4284
  %4350 = vmatprep.subr.bf16.mxu0 %v4287
  %4351 = vmatpush1.bf16.msra.mxu0 %v4286
  %4352 = vmatprep.subr.bf16.mxu0 %v4289
  %4353 = vmatpush1.bf16.msra.mxu0 %v4288
  %4354 = vmatprep.subr.bf16.mxu0 %v4291
  %4355 = vmatpush1.bf16.msra.mxu0 %v4290
  %4356 = vmatprep.subr.bf16.mxu0 %v4293
  %4357 = vmatpush1.bf16.msra.mxu0 %v4292
  %4358 = vmatprep.subr.bf16.mxu0 %v4295
  %4359 = vmatpush1.bf16.msra.mxu0 %v4294
  %4360 = vmatprep.subr.bf16.mxu0 %v4297
  %4361 = vmatpush1.bf16.msra.mxu0 %v4296
  %4362 = vmatprep.subr.bf16.mxu0 %v4299
  %4363 = vmatpush1.bf16.msra.mxu0 %v4298
  %4364 = vmatprep.subr.bf16.mxu0 %v4301
  %4365 = vmatpush1.bf16.msra.mxu0 %v4300
  %4366 = vmatprep.subr.bf16.mxu0 %v4303
  %4367 = vmatpush1.bf16.msra.mxu0 %v4302
  %4368 = vmatprep.subr.bf16.mxu0 %v4305
  %4369 = vmatpush1.bf16.msra.mxu0 %v4304
  %4370 = vmatprep.subr.bf16.mxu0 %v4307
  %4371 = vmatpush1.bf16.msra.mxu0 %v4306
  %4372 = vmatprep.subr.bf16.mxu0 %v4309
  %4373 = vmatpush1.bf16.msra.mxu0 %v4308
  %4374 = vmatprep.subr.bf16.mxu0 %v4311
  %4375 = vmatpush1.bf16.msra.mxu0 %v4310
  %4376 = vmatprep.subr.bf16.mxu0 %v4313
  %4377 = vmatpush1.bf16.msra.mxu0 %v4312
  %4378 = vmatprep.subr.bf16.mxu0 %v4315
  %4379 = vmatpush1.bf16.msra.mxu0 %v4314
  %4380 = vmatprep.mubr.bf16.mxu0 %v4155
  %4381 = vmatmul.mubr.bf16.gmra.mrb[0].mxu0 %v4154
  %v4382 = vpop.f32.mrb[0].mxu0
  %v4383 = vadd.f32 0.0, %v4382
  %v4384 = vpop.f32.mrb[0].mxu0
  %v4385 = vadd.f32 0.0, %v4384
  %v4386 = vpop.f32.mrb[0].mxu0
  %v4387 = vpop.f32.mrb[0].mxu0
  %4388 = vdwg.mxu0
  %v4389 = vmul.f32 %v4383, 0.2
  %v4390 = vmul.f32 %v4385, 0.2
  %v4391 = vmax.f32 %v4383, %v4389
  %v4392 = vmax.f32 %v4385, %v4390
  %4393 = vst [vmem:[%s4] sm:$0xff] %v4391
  %4394 = vst [vmem:[%s4 + $0x8] sm:$0xff] %v4392
  // Predicated region
  $region18: #{discriminator_forward.5} parent=0 // pred_check
    _
  $region19: #{discriminator_forward.5} parent=0 // pred_check_branch
    %4396 = sbr.rel (0) target = $region21
  $region20: #{discriminator_forward.5} parent=0 // pred_region
    _
  $region21: #{discriminator_forward.5} parent=0 // pred_fallthru
    _
  // Predicated region
  $region22: #{discriminator_forward.5} parent=0 // pred_check
    _
  $region23: #{discriminator_forward.5} parent=0 // pred_check_branch
    %4398 = sbr.rel (0) target = $region25
  $region24: #{discriminator_forward.5} parent=0 // pred_region
    _
  $region25: #{discriminator_forward.5} parent=0 // pred_fallthru
    _

</llo_original>
